<compile_context>
chip_gen: v7x
topology: tpu7x:2x2x1
jax: 0.10.0
libtpu: 0.0.40
codegen_flags: <defaults>
</compile_context>

<pallas_src>
import math
import numpy as np
import jax
import jax.numpy as jnp
from jax.experimental import pallas as pl
from jax.experimental.pallas import tpu as pltpu

MSSSIM_WEIGHTS = (0.0448, 0.2856, 0.3001, 0.2363, 0.1333)
MSSSIM_LEVELS = 5
WINDOW_SIZE = 11
SIGMA = 1.5
_SUB = 8  # sublane alignment


def _round_up(x, m):
    return ((x + m - 1) // m) * m


def _gaussian_1d(size, sigma=SIGMA):
    """gaussian() from the reference: normalized 1-D gaussian (f32, sums to 1)."""
    g = np.array(
        [math.exp(-((x - size // 2) ** 2) / float(2 * sigma ** 2)) for x in range(size)],
        dtype=np.float32,
    )
    return (g / g.sum()).astype(np.float32)


# ------------------------- constant banded operator builders -------------------------
def _filter_rows_mat(g, h, hpad, ho_pad, n_ops=5):
    """(n_ops*ho_pad, n_ops*hpad) block-banded: 'valid' Gaussian filter along H for a
    sublane stack of n_ops operands (input block stride hpad, output stride ho_pad)."""
    K = g.shape[0]
    ho = h - K + 1
    M = np.zeros((n_ops * ho_pad, n_ops * hpad), np.float32)
    for k in range(n_ops):
        for i in range(ho):
            M[k * ho_pad + i, k * hpad + i: k * hpad + i + K] = g
    return M


def _filter_cols_mat(g, w, n_planes):
    """(n_planes*w, n_planes*wo) block-diagonal banded: 'valid' Gaussian filter along W
    applied independently per folded (b, c) plane (lane groups of width w)."""
    K = g.shape[0]
    wo = w - K + 1
    M = np.zeros((n_planes * w, n_planes * wo), np.float32)
    for p in range(n_planes):
        for j in range(wo):
            M[p * w + j: p * w + j + K, p * wo + j] = g
    return M


def _pool_rows_mat(h, hpad, h2pad, n_ops=2):
    """(n_ops*h2pad, n_ops*hpad): 2x avg-pool along H for the [x1; x2] sublane stack."""
    h2 = h // 2
    M = np.zeros((n_ops * h2pad, n_ops * hpad), np.float32)
    for k in range(n_ops):
        for i in range(h2):
            M[k * h2pad + i, k * hpad + 2 * i] = 0.5
            M[k * h2pad + i, k * hpad + 2 * i + 1] = 0.5
    return M


def _pool_cols_mat(w, n_planes):
    """(n_planes*w, n_planes*(w//2)): 2x avg-pool along W per folded plane."""
    w2 = w // 2
    M = np.zeros((n_planes * w, n_planes * w2), np.float32)
    for p in range(n_planes):
        for j in range(w2):
            M[p * w + 2 * j, p * w2 + j] = 0.5
            M[p * w + 2 * j + 1, p * w2 + j] = 0.5
    return M


# ----------------------------- fused MS-SSIM loss kernel ------------------------------
def _build_fused_msssim_loss(n_planes, H, W):
    """Builds (pallas_fn, const_mats).

    pallas_fn(img1, img2, *const_mats) -> (1, 1) f32 containing
    1 - msssim(img1, img2, normalize=True).  Images are passed lane-dense folded as
    (round_up(H, 8), n_planes*W) with zero rows beyond H.
    """
    levels = []
    const_mats = []
    h, w = H, W
    hpad = _round_up(h, _SUB)
    for lvl in range(MSSSIM_LEVELS):
        K = min(WINDOW_SIZE, h, w)  # real_size = min(window_size, height, width)
        ho, wo = h - K + 1, w - K + 1
        ho_pad = _round_up(ho, _SUB)
        g = _gaussian_1d(K)
        mat_base = len(const_mats)
        const_mats.append(_filter_rows_mat(g, h, hpad, ho_pad))
        const_mats.append(_filter_cols_mat(g, w, n_planes))
        has_pool = lvl < MSSSIM_LEVELS - 1
        info = dict(hpad=hpad, ho=ho, wo=wo, ho_pad=ho_pad,
                    mat_base=mat_base, has_pool=has_pool)
        if has_pool:
            h2, w2 = h // 2, w // 2
            h2pad = _round_up(max(h2, 1), _SUB)
            const_mats.append(_pool_rows_mat(h, hpad, h2pad))
            const_mats.append(_pool_cols_mat(w, n_planes))
            info["h2pad"] = h2pad
            h, w, hpad = h2, w2, h2pad
        levels.append(info)

    n_mats = len(const_mats)

    def kernel(img1_ref, img2_ref, *rest):
        mat_refs = rest[:n_mats]
        out_ref = rest[n_mats]

        x1 = img1_ref[...]          # (hpad0, n_planes*W); rows >= H are zero
        x2 = img2_ref[...]
        ones11 = jnp.ones((1, 1), jnp.float32)
        log_out = jnp.zeros((1, 1), jnp.float32)

        for lvl, info in enumerate(levels):
            mb = info["mat_base"]
            ho, wo, ho_pad = info["ho"], info["wo"], info["ho_pad"]

            # dynamic range L (val_range=None branch) from the current-level prediction
            # (the zero padding rows cannot flip either threshold).
            mx = jnp.max(x1)
            mn = jnp.min(x1)
            max_val = jnp.where(mx > 128.0, 255.0, 1.0)
            min_val = jnp.where(mn < -0.5, -1.0, 0.0)
            L = max_val - min_val
            C1 = (0.01 * L) * (0.01 * L)
            C2 = (0.03 * L) * (0.03 * L)

            # All five filter operands in one 8-aligned sublane stack; depthwise
            # separable Gaussian filtering = TWO MXU matmuls (rows pass first).
            stack = jnp.concatenate([x1, x2, x1 * x1, x2 * x2, x1 * x2], axis=0)
            gh = mat_refs[mb][...]          # (5*ho_pad, 5*hpad) block-banded
            gw = mat_refs[mb + 1][...]      # (n*w, n*wo) block-diagonal banded
            t = jnp.dot(gh, stack, preferred_element_type=jnp.float32)
            u = jnp.dot(t, gw, preferred_element_type=jnp.float32)

            mu1 = u[0 * ho_pad: 0 * ho_pad + ho]
            mu2 = u[1 * ho_pad: 1 * ho_pad + ho]
            e11 = u[2 * ho_pad: 2 * ho_pad + ho]
            e22 = u[3 * ho_pad: 3 * ho_pad + ho]
            e12 = u[4 * ho_pad: 4 * ho_pad + ho]

            mu1_sq = mu1 * mu1
            mu2_sq = mu2 * mu2
            mu1_mu2 = mu1 * mu2
            v1 = 2.0 * (e12 - mu1_mu2) + C2            # 2*sigma12 + C2
            v2 = (e11 - mu1_sq) + (e22 - mu2_sq) + C2  # sigma1_sq + sigma2_sq + C2
            inv_count = 1.0 / float(n_planes * ho * wo)

            if lvl < MSSSIM_LEVELS - 1:
                # only mcs[lvl] reaches prod(pow1[:-1] * pow2[-1]) at non-final levels
                stat = jnp.sum(v1 * pl.reciprocal(v2, approx=True)) * inv_count
                w_eff = MSSSIM_WEIGHTS[lvl]
            else:
                # only mssim[-1] reaches the product; it appears with exponent 4*w[-1]
                # (pow2[-1] multiplies each of the 4 elements of pow1[:-1])
                num = (2.0 * mu1_mu2 + C1) * v1
                den = (mu1_sq + mu2_sq + C1) * v2
                stat = jnp.sum(num * pl.reciprocal(den, approx=True)) * inv_count
                w_eff = 4.0 * MSSSIM_WEIGHTS[lvl]

            # normalize=True epilogue folded in: sum_k w_k * log((s_k + 1)/2) on the EUP
            norm = ((stat + 1.0) * 0.5) * ones11       # (1,1) vector
            log_out = log_out + w_eff * jnp.log(norm)

            if info["has_pool"]:
                # F.avg_pool2d(x, (2,2)) for [x1; x2] = two banded matmuls; stays in VMEM
                h2pad = info["h2pad"]
                ph = mat_refs[mb + 2][...]
                pw = mat_refs[mb + 3][...]
                s2 = stack[0: 2 * info["hpad"]]        # leading [x1; x2] rows of the stack
                tp = jnp.dot(ph, s2, preferred_element_type=jnp.float32)
                p = jnp.dot(tp, pw, preferred_element_type=jnp.float32)
                x1 = p[0:h2pad]                        # padded rows are exactly zero
                x2 = p[h2pad: 2 * h2pad]

        out_ref[...] = 1.0 - jnp.exp(log_out)          # final loss scalar, (1,1)

    n_inputs = 2 + n_mats
    fn = pl.pallas_call(
        kernel,
        out_shape=jax.ShapeDtypeStruct((1, 1), jnp.float32),
        in_specs=[pl.BlockSpec(memory_space=pltpu.MemorySpace.VMEM)] * n_inputs,
        out_specs=pl.BlockSpec(memory_space=pltpu.MemorySpace.VMEM),
    )
    return fn, const_mats


# --------------------------------- public forward ------------------------------------
def reconstruction_loss(prediction, target):
    """ReconstructionLoss.forward: 1 - msssim(prediction, target, normalize=True)."""
    B, C, H, W = prediction.shape
    n_planes = B * C
    hpad = _round_up(H, _SUB)

    def fold(x):
        # lane-dense fold (H, B*C*W); pure layout glue, done outside the kernel
        x = jnp.transpose(x.astype(jnp.float32), (2, 0, 1, 3))
        x = jnp.reshape(x, (H, n_planes * W))
        if hpad != H:
            x = jnp.pad(x, ((0, hpad - H), (0, 0)))
        return x

    fn, const_mats = _build_fused_msssim_loss(n_planes, H, W)
    loss = fn(fold(prediction), fold(target), *[jnp.asarray(m) for m in const_mats])
    return loss[0, 0]


# ------------------------ NumPy reference (validation only) --------------------------
def _np_filter_valid(x, g):
    K = g.shape[0]
    ho = x.shape[-2] - K + 1
    wo = x.shape[-1] - K + 1
    t = np.zeros(x.shape[:-2] + (ho, x.shape[-1]), np.float32)
    for k in range(K):
        t += g[k] * x[..., k:k + ho, :]
    out = np.zeros(x.shape[:-2] + (ho, wo), np.float32)
    for k in range(K):
        out += g[k] * t[..., :, k:k + wo]
    return out


def _np_pool2(x):
    hc = (x.shape[-2] // 2) * 2
    wc = (x.shape[-1] // 2) * 2
    x = x[..., :hc, :wc]
    return 0.25 * (x[..., 0::2, 0::2] + x[..., 1::2, 0::2]
                   + x[..., 0::2, 1::2] + x[..., 1::2, 1::2])


def _np_reconstruction_loss(pred, targ):
    """Plain NumPy re-implementation of the PyTorch reference."""
    img1 = np.asarray(pred, np.float32)
    img2 = np.asarray(targ, np.float32)
    weights = np.array(MSSSIM_WEIGHTS, np.float32)
    mssim, mcs = [], []
    for _ in range(MSSSIM_LEVELS):
        max_val = 255.0 if img1.max() > 128 else 1.0
        min_val = -1.0 if img1.min() < -0.5 else 0.0
        L = max_val - min_val
        C1 = (0.01 * L) ** 2
        C2 = (0.03 * L) ** 2
        K = min(WINDOW_SIZE, img1.shape[-2], img1.shape[-1])
        g = _gaussian_1d(K)
        mu1 = _np_filter_valid(img1, g)
        mu2 = _np_filter_valid(img2, g)
        mu1_sq, mu2_sq, mu1_mu2 = mu1 * mu1, mu2 * mu2, mu1 * mu2
        s1 = _np_filter_valid(img1 * img1, g) - mu1_sq
        s2 = _np_filter_valid(img2 * img2, g) - mu2_sq
        s12 = _np_filter_valid(img1 * img2, g) - mu1_mu2
        v1 = 2.0 * s12 + C2
        v2 = s1 + s2 + C2
        mcs.append((v1 / v2).mean())
        mssim.append((((2.0 * mu1_mu2 + C1) * v1) / ((mu1_sq + mu2_sq + C1) * v2)).mean())
        img1 = _np_pool2(img1)
        img2 = _np_pool2(img2)
    mssim = (np.array(mssim, np.float32) + 1.0) / 2.0
    mcs = (np.array(mcs, np.float32) + 1.0) / 2.0
    pow1 = mcs ** weights
    pow2 = mssim ** weights
    return float(1.0 - np.prod(pow1[:-1] * pow2[-1]))


if __name__ == "__main__":
    key = jax.random.PRNGKey(0)
    k1, k2 = jax.random.split(key)
    # Spatial size 32 so all 5 MS-SSIM pyramid levels are non-degenerate (32->16->8->4->2).
    prediction = jax.random.uniform(k1, (2, 3, 32, 32), dtype=jnp.float32)
    target = jax.random.uniform(k2, (2, 3, 32, 32), dtype=jnp.float32)

    loss = jax.jit(reconstruction_loss)(prediction, target)
    loss = jax.block_until_ready(loss)

    ref = _np_reconstruction_loss(np.asarray(prediction), np.asarray(target))
    assert abs(float(loss) - ref) < 1e-2, (float(loss), ref)
    print("KERNEL_OK")
</pallas_src>

<mosaic_0001>
module attributes {stable_mosaic.version = 11 : i64} {
  func.func @kernel(%arg0: memref<32x192xf32, #tpu.memory_space<vmem>>, %arg1: memref<32x192xf32, #tpu.memory_space<vmem>>, %arg2: memref<120x160xf32, #tpu.memory_space<vmem>>, %arg3: memref<192x132xf32, #tpu.memory_space<vmem>>, %arg4: memref<32x64xf32, #tpu.memory_space<vmem>>, %arg5: memref<192x96xf32, #tpu.memory_space<vmem>>, %arg6: memref<40x80xf32, #tpu.memory_space<vmem>>, %arg7: memref<96x36xf32, #tpu.memory_space<vmem>>, %arg8: memref<16x32xf32, #tpu.memory_space<vmem>>, %arg9: memref<96x48xf32, #tpu.memory_space<vmem>>, %arg10: memref<40x40xf32, #tpu.memory_space<vmem>>, %arg11: memref<48x6xf32, #tpu.memory_space<vmem>>, %arg12: memref<16x16xf32, #tpu.memory_space<vmem>>, %arg13: memref<48x24xf32, #tpu.memory_space<vmem>>, %arg14: memref<40x40xf32, #tpu.memory_space<vmem>>, %arg15: memref<24x6xf32, #tpu.memory_space<vmem>>, %arg16: memref<16x16xf32, #tpu.memory_space<vmem>>, %arg17: memref<24x12xf32, #tpu.memory_space<vmem>>, %arg18: memref<40x40xf32, #tpu.memory_space<vmem>>, %arg19: memref<12x6xf32, #tpu.memory_space<vmem>>, %arg20: memref<1x1xf32, #tpu.memory_space<vmem>>) attributes {dimension_semantics = [], scalar_prefetch = 0 : i64, scratch_operands = 0 : i64, tpu.core_type = #tpu.core_type<tc>} {
    %c0 = arith.constant 0 : index
    %c0_0 = arith.constant 0 : index
    %0 = vector.load %arg0[%c0, %c0_0] : memref<32x192xf32, #tpu.memory_space<vmem>>, vector<32x192xf32>
    %c0_1 = arith.constant 0 : index
    %c0_2 = arith.constant 0 : index
    %1 = vector.load %arg1[%c0_1, %c0_2] : memref<32x192xf32, #tpu.memory_space<vmem>>, vector<32x192xf32>
    %cst = arith.constant 1.000000e+00 : f32
    %2 = vector.broadcast %cst : f32 to vector<1x1xf32>
    %cst_3 = arith.constant 0.000000e+00 : f32
    %3 = vector.broadcast %cst_3 : f32 to vector<1x1xf32>
    %4 = vector.shape_cast %0 : vector<32x192xf32> to vector<1x32x192xf32>
    %cst_4 = arith.constant dense<0xFF800000> : vector<1xf32>
    %5 = vector.multi_reduction <maximumf>, %4, %cst_4 [1, 2] : vector<1x32x192xf32> to vector<1xf32>
    %6 = vector.shape_cast %5 : vector<1xf32> to vector<1x1x1xf32>
    %7 = vector.extract %6[0, 0, 0] : f32 from vector<1x1x1xf32>
    %8 = vector.shape_cast %0 : vector<32x192xf32> to vector<1x32x192xf32>
    %cst_5 = arith.constant dense<0x7F800000> : vector<1xf32>
    %9 = vector.multi_reduction <minimumf>, %8, %cst_5 [1, 2] : vector<1x32x192xf32> to vector<1xf32>
    %10 = vector.shape_cast %9 : vector<1xf32> to vector<1x1x1xf32>
    %11 = vector.extract %10[0, 0, 0] : f32 from vector<1x1x1xf32>
    %cst_6 = arith.constant 1.280000e+02 : f32
    %12 = arith.cmpf ogt, %7, %cst_6 : f32
    %cst_7 = arith.constant 2.550000e+02 : f32
    %cst_8 = arith.constant 1.000000e+00 : f32
    %13 = arith.select %12, %cst_7, %cst_8 : f32
    %cst_9 = arith.constant -5.000000e-01 : f32
    %14 = arith.cmpf olt, %11, %cst_9 : f32
    %cst_10 = arith.constant -1.000000e+00 : f32
    %cst_11 = arith.constant 0.000000e+00 : f32
    %15 = arith.select %14, %cst_10, %cst_11 : f32
    %16 = arith.subf %13, %15 : f32
    %cst_12 = arith.constant 3.000000e-02 : f32
    %17 = arith.mulf %cst_12, %16 : f32
    %cst_13 = arith.constant 3.000000e-02 : f32
    %18 = arith.mulf %cst_13, %16 : f32
    %19 = arith.mulf %17, %18 : f32
    %20 = arith.mulf %0, %0 : vector<32x192xf32>
    %21 = arith.mulf %1, %1 : vector<32x192xf32>
    %22 = arith.mulf %0, %1 : vector<32x192xf32>
    %23 = tpu.concatenate %0, %1, %20, %21, %22 in 0 : vector<32x192xf32>, vector<32x192xf32>, vector<32x192xf32>, vector<32x192xf32>, vector<32x192xf32> -> vector<160x192xf32>
    %c0_14 = arith.constant 0 : index
    %c0_15 = arith.constant 0 : index
    %24 = vector.load %arg2[%c0_14, %c0_15] : memref<120x160xf32, #tpu.memory_space<vmem>>, vector<120x160xf32>
    %c0_16 = arith.constant 0 : index
    %c0_17 = arith.constant 0 : index
    %25 = vector.load %arg3[%c0_16, %c0_17] : memref<192x132xf32, #tpu.memory_space<vmem>>, vector<192x132xf32>
    %cst_18 = arith.constant dense<0.000000e+00> : vector<120x192xf32>
    %26 = tpu.matmul %24, %23, %cst_18 {dimension_numbers = #tpu.dot_dimension_numbers<[1], [0], [0], [1], [0, 0, 1, 1], [], []>} : vector<120x160xf32>, vector<160x192xf32>, vector<120x192xf32> -> vector<120x192xf32>
    %cst_19 = arith.constant dense<0.000000e+00> : vector<120x132xf32>
    %27 = tpu.matmul %26, %25, %cst_19 {dimension_numbers = #tpu.dot_dimension_numbers<[1], [0], [0], [1], [0, 0, 1, 1], [], []>} : vector<120x192xf32>, vector<192x132xf32>, vector<120x132xf32> -> vector<120x132xf32>
    %28 = vector.extract_strided_slice %27 {offsets = [0, 0], sizes = [22, 132], strides = [1, 1]} : vector<120x132xf32> to vector<22x132xf32>
    %29 = vector.extract_strided_slice %27 {offsets = [24, 0], sizes = [22, 132], strides = [1, 1]} : vector<120x132xf32> to vector<22x132xf32>
    %30 = vector.extract_strided_slice %27 {offsets = [48, 0], sizes = [22, 132], strides = [1, 1]} : vector<120x132xf32> to vector<22x132xf32>
    %31 = vector.extract_strided_slice %27 {offsets = [72, 0], sizes = [22, 132], strides = [1, 1]} : vector<120x132xf32> to vector<22x132xf32>
    %32 = vector.extract_strided_slice %27 {offsets = [96, 0], sizes = [22, 132], strides = [1, 1]} : vector<120x132xf32> to vector<22x132xf32>
    %33 = arith.mulf %28, %28 : vector<22x132xf32>
    %34 = arith.mulf %29, %29 : vector<22x132xf32>
    %35 = arith.mulf %28, %29 : vector<22x132xf32>
    %36 = arith.subf %32, %35 : vector<22x132xf32>
    %cst_20 = arith.constant 2.000000e+00 : f32
    %37 = vector.broadcast %cst_20 : f32 to vector<22x132xf32>
    %38 = arith.mulf %37, %36 : vector<22x132xf32>
    %39 = vector.broadcast %19 : f32 to vector<22x132xf32>
    %40 = arith.addf %38, %39 : vector<22x132xf32>
    %41 = arith.subf %30, %33 : vector<22x132xf32>
    %42 = arith.subf %31, %34 : vector<22x132xf32>
    %43 = arith.addf %41, %42 : vector<22x132xf32>
    %44 = vector.broadcast %19 : f32 to vector<22x132xf32>
    %45 = arith.addf %43, %44 : vector<22x132xf32>
    %46 = tpu.reciprocal %45 {approx = true} : vector<22x132xf32> -> vector<22x132xf32>
    %47 = arith.mulf %40, %46 : vector<22x132xf32>
    %48 = vector.shape_cast %47 : vector<22x132xf32> to vector<1x22x132xf32>
    %cst_21 = arith.constant dense<0.000000e+00> : vector<1xf32>
    %49 = vector.multi_reduction <add>, %48, %cst_21 [1, 2] : vector<1x22x132xf32> to vector<1xf32>
    %50 = vector.shape_cast %49 : vector<1xf32> to vector<1x1x1xf32>
    %51 = vector.extract %50[0, 0, 0] : f32 from vector<1x1x1xf32>
    %cst_22 = arith.constant 3.44352622E-4 : f32
    %52 = arith.mulf %51, %cst_22 : f32
    %cst_23 = arith.constant 1.000000e+00 : f32
    %53 = arith.addf %52, %cst_23 : f32
    %cst_24 = arith.constant 5.000000e-01 : f32
    %54 = arith.mulf %53, %cst_24 : f32
    %55 = vector.broadcast %54 : f32 to vector<1x1xf32>
    %56 = arith.mulf %55, %2 : vector<1x1xf32>
    %57 = math.log %56 : vector<1x1xf32>
    %cst_25 = arith.constant 4.480000e-02 : f32
    %58 = vector.broadcast %cst_25 : f32 to vector<1x1xf32>
    %59 = arith.mulf %58, %57 : vector<1x1xf32>
    %60 = arith.addf %3, %59 : vector<1x1xf32>
    %c0_26 = arith.constant 0 : index
    %c0_27 = arith.constant 0 : index
    %61 = vector.load %arg4[%c0_26, %c0_27] : memref<32x64xf32, #tpu.memory_space<vmem>>, vector<32x64xf32>
    %c0_28 = arith.constant 0 : index
    %c0_29 = arith.constant 0 : index
    %62 = vector.load %arg5[%c0_28, %c0_29] : memref<192x96xf32, #tpu.memory_space<vmem>>, vector<192x96xf32>
    %63 = vector.extract_strided_slice %23 {offsets = [0, 0], sizes = [64, 192], strides = [1, 1]} : vector<160x192xf32> to vector<64x192xf32>
    %cst_30 = arith.constant dense<0.000000e+00> : vector<32x192xf32>
    %64 = tpu.matmul %61, %63, %cst_30 {dimension_numbers = #tpu.dot_dimension_numbers<[1], [0], [0], [1], [0, 0, 1, 1], [], []>} : vector<32x64xf32>, vector<64x192xf32>, vector<32x192xf32> -> vector<32x192xf32>
    %cst_31 = arith.constant dense<0.000000e+00> : vector<32x96xf32>
    %65 = tpu.matmul %64, %62, %cst_31 {dimension_numbers = #tpu.dot_dimension_numbers<[1], [0], [0], [1], [0, 0, 1, 1], [], []>} : vector<32x192xf32>, vector<192x96xf32>, vector<32x96xf32> -> vector<32x96xf32>
    %66 = vector.extract_strided_slice %65 {offsets = [0, 0], sizes = [16, 96], strides = [1, 1]} : vector<32x96xf32> to vector<16x96xf32>
    %67 = vector.extract_strided_slice %65 {offsets = [16, 0], sizes = [16, 96], strides = [1, 1]} : vector<32x96xf32> to vector<16x96xf32>
    %68 = vector.shape_cast %66 : vector<16x96xf32> to vector<1x16x96xf32>
    %cst_32 = arith.constant dense<0xFF800000> : vector<1xf32>
    %69 = vector.multi_reduction <maximumf>, %68, %cst_32 [1, 2] : vector<1x16x96xf32> to vector<1xf32>
    %70 = vector.shape_cast %69 : vector<1xf32> to vector<1x1x1xf32>
    %71 = vector.extract %70[0, 0, 0] : f32 from vector<1x1x1xf32>
    %72 = vector.shape_cast %66 : vector<16x96xf32> to vector<1x16x96xf32>
    %cst_33 = arith.constant dense<0x7F800000> : vector<1xf32>
    %73 = vector.multi_reduction <minimumf>, %72, %cst_33 [1, 2] : vector<1x16x96xf32> to vector<1xf32>
    %74 = vector.shape_cast %73 : vector<1xf32> to vector<1x1x1xf32>
    %75 = vector.extract %74[0, 0, 0] : f32 from vector<1x1x1xf32>
    %cst_34 = arith.constant 1.280000e+02 : f32
    %76 = arith.cmpf ogt, %71, %cst_34 : f32
    %cst_35 = arith.constant 2.550000e+02 : f32
    %cst_36 = arith.constant 1.000000e+00 : f32
    %77 = arith.select %76, %cst_35, %cst_36 : f32
    %cst_37 = arith.constant -5.000000e-01 : f32
    %78 = arith.cmpf olt, %75, %cst_37 : f32
    %cst_38 = arith.constant -1.000000e+00 : f32
    %cst_39 = arith.constant 0.000000e+00 : f32
    %79 = arith.select %78, %cst_38, %cst_39 : f32
    %80 = arith.subf %77, %79 : f32
    %cst_40 = arith.constant 3.000000e-02 : f32
    %81 = arith.mulf %cst_40, %80 : f32
    %cst_41 = arith.constant 3.000000e-02 : f32
    %82 = arith.mulf %cst_41, %80 : f32
    %83 = arith.mulf %81, %82 : f32
    %84 = arith.mulf %66, %66 : vector<16x96xf32>
    %85 = arith.mulf %67, %67 : vector<16x96xf32>
    %86 = arith.mulf %66, %67 : vector<16x96xf32>
    %87 = tpu.concatenate %66, %67, %84, %85, %86 in 0 : vector<16x96xf32>, vector<16x96xf32>, vector<16x96xf32>, vector<16x96xf32>, vector<16x96xf32> -> vector<80x96xf32>
    %c0_42 = arith.constant 0 : index
    %c0_43 = arith.constant 0 : index
    %88 = vector.load %arg6[%c0_42, %c0_43] : memref<40x80xf32, #tpu.memory_space<vmem>>, vector<40x80xf32>
    %c0_44 = arith.constant 0 : index
    %c0_45 = arith.constant 0 : index
    %89 = vector.load %arg7[%c0_44, %c0_45] : memref<96x36xf32, #tpu.memory_space<vmem>>, vector<96x36xf32>
    %cst_46 = arith.constant dense<0.000000e+00> : vector<40x96xf32>
    %90 = tpu.matmul %88, %87, %cst_46 {dimension_numbers = #tpu.dot_dimension_numbers<[1], [0], [0], [1], [0, 0, 1, 1], [], []>} : vector<40x80xf32>, vector<80x96xf32>, vector<40x96xf32> -> vector<40x96xf32>
    %cst_47 = arith.constant dense<0.000000e+00> : vector<40x36xf32>
    %91 = tpu.matmul %90, %89, %cst_47 {dimension_numbers = #tpu.dot_dimension_numbers<[1], [0], [0], [1], [0, 0, 1, 1], [], []>} : vector<40x96xf32>, vector<96x36xf32>, vector<40x36xf32> -> vector<40x36xf32>
    %92 = vector.extract_strided_slice %91 {offsets = [0, 0], sizes = [6, 36], strides = [1, 1]} : vector<40x36xf32> to vector<6x36xf32>
    %93 = vector.extract_strided_slice %91 {offsets = [8, 0], sizes = [6, 36], strides = [1, 1]} : vector<40x36xf32> to vector<6x36xf32>
    %94 = vector.extract_strided_slice %91 {offsets = [16, 0], sizes = [6, 36], strides = [1, 1]} : vector<40x36xf32> to vector<6x36xf32>
    %95 = vector.extract_strided_slice %91 {offsets = [24, 0], sizes = [6, 36], strides = [1, 1]} : vector<40x36xf32> to vector<6x36xf32>
    %96 = vector.extract_strided_slice %91 {offsets = [32, 0], sizes = [6, 36], strides = [1, 1]} : vector<40x36xf32> to vector<6x36xf32>
    %97 = arith.mulf %92, %92 : vector<6x36xf32>
    %98 = arith.mulf %93, %93 : vector<6x36xf32>
    %99 = arith.mulf %92, %93 : vector<6x36xf32>
    %100 = arith.subf %96, %99 : vector<6x36xf32>
    %cst_48 = arith.constant 2.000000e+00 : f32
    %101 = vector.broadcast %cst_48 : f32 to vector<6x36xf32>
    %102 = arith.mulf %101, %100 : vector<6x36xf32>
    %103 = vector.broadcast %83 : f32 to vector<6x36xf32>
    %104 = arith.addf %102, %103 : vector<6x36xf32>
    %105 = arith.subf %94, %97 : vector<6x36xf32>
    %106 = arith.subf %95, %98 : vector<6x36xf32>
    %107 = arith.addf %105, %106 : vector<6x36xf32>
    %108 = vector.broadcast %83 : f32 to vector<6x36xf32>
    %109 = arith.addf %107, %108 : vector<6x36xf32>
    %110 = tpu.reciprocal %109 {approx = true} : vector<6x36xf32> -> vector<6x36xf32>
    %111 = arith.mulf %104, %110 : vector<6x36xf32>
    %112 = vector.shape_cast %111 : vector<6x36xf32> to vector<1x6x36xf32>
    %cst_49 = arith.constant dense<0.000000e+00> : vector<1xf32>
    %113 = vector.multi_reduction <add>, %112, %cst_49 [1, 2] : vector<1x6x36xf32> to vector<1xf32>
    %114 = vector.shape_cast %113 : vector<1xf32> to vector<1x1x1xf32>
    %115 = vector.extract %114[0, 0, 0] : f32 from vector<1x1x1xf32>
    %cst_50 = arith.constant 0.00462962966 : f32
    %116 = arith.mulf %115, %cst_50 : f32
    %cst_51 = arith.constant 1.000000e+00 : f32
    %117 = arith.addf %116, %cst_51 : f32
    %cst_52 = arith.constant 5.000000e-01 : f32
    %118 = arith.mulf %117, %cst_52 : f32
    %119 = vector.broadcast %118 : f32 to vector<1x1xf32>
    %120 = arith.mulf %119, %2 : vector<1x1xf32>
    %121 = math.log %120 : vector<1x1xf32>
    %cst_53 = arith.constant 2.856000e-01 : f32
    %122 = vector.broadcast %cst_53 : f32 to vector<1x1xf32>
    %123 = arith.mulf %122, %121 : vector<1x1xf32>
    %124 = arith.addf %60, %123 : vector<1x1xf32>
    %c0_54 = arith.constant 0 : index
    %c0_55 = arith.constant 0 : index
    %125 = vector.load %arg8[%c0_54, %c0_55] : memref<16x32xf32, #tpu.memory_space<vmem>>, vector<16x32xf32>
    %c0_56 = arith.constant 0 : index
    %c0_57 = arith.constant 0 : index
    %126 = vector.load %arg9[%c0_56, %c0_57] : memref<96x48xf32, #tpu.memory_space<vmem>>, vector<96x48xf32>
    %127 = vector.extract_strided_slice %87 {offsets = [0, 0], sizes = [32, 96], strides = [1, 1]} : vector<80x96xf32> to vector<32x96xf32>
    %cst_58 = arith.constant dense<0.000000e+00> : vector<16x96xf32>
    %128 = tpu.matmul %125, %127, %cst_58 {dimension_numbers = #tpu.dot_dimension_numbers<[1], [0], [0], [1], [0, 0, 1, 1], [], []>} : vector<16x32xf32>, vector<32x96xf32>, vector<16x96xf32> -> vector<16x96xf32>
    %cst_59 = arith.constant dense<0.000000e+00> : vector<16x48xf32>
    %129 = tpu.matmul %128, %126, %cst_59 {dimension_numbers = #tpu.dot_dimension_numbers<[1], [0], [0], [1], [0, 0, 1, 1], [], []>} : vector<16x96xf32>, vector<96x48xf32>, vector<16x48xf32> -> vector<16x48xf32>
    %130 = vector.extract_strided_slice %129 {offsets = [0, 0], sizes = [8, 48], strides = [1, 1]} : vector<16x48xf32> to vector<8x48xf32>
    %131 = vector.extract_strided_slice %129 {offsets = [8, 0], sizes = [8, 48], strides = [1, 1]} : vector<16x48xf32> to vector<8x48xf32>
    %132 = vector.shape_cast %130 : vector<8x48xf32> to vector<1x8x48xf32>
    %cst_60 = arith.constant dense<0xFF800000> : vector<1xf32>
    %133 = vector.multi_reduction <maximumf>, %132, %cst_60 [1, 2] : vector<1x8x48xf32> to vector<1xf32>
    %134 = vector.shape_cast %133 : vector<1xf32> to vector<1x1x1xf32>
    %135 = vector.extract %134[0, 0, 0] : f32 from vector<1x1x1xf32>
    %136 = vector.shape_cast %130 : vector<8x48xf32> to vector<1x8x48xf32>
    %cst_61 = arith.constant dense<0x7F800000> : vector<1xf32>
    %137 = vector.multi_reduction <minimumf>, %136, %cst_61 [1, 2] : vector<1x8x48xf32> to vector<1xf32>
    %138 = vector.shape_cast %137 : vector<1xf32> to vector<1x1x1xf32>
    %139 = vector.extract %138[0, 0, 0] : f32 from vector<1x1x1xf32>
    %cst_62 = arith.constant 1.280000e+02 : f32
    %140 = arith.cmpf ogt, %135, %cst_62 : f32
    %cst_63 = arith.constant 2.550000e+02 : f32
    %cst_64 = arith.constant 1.000000e+00 : f32
    %141 = arith.select %140, %cst_63, %cst_64 : f32
    %cst_65 = arith.constant -5.000000e-01 : f32
    %142 = arith.cmpf olt, %139, %cst_65 : f32
    %cst_66 = arith.constant -1.000000e+00 : f32
    %cst_67 = arith.constant 0.000000e+00 : f32
    %143 = arith.select %142, %cst_66, %cst_67 : f32
    %144 = arith.subf %141, %143 : f32
    %cst_68 = arith.constant 3.000000e-02 : f32
    %145 = arith.mulf %cst_68, %144 : f32
    %cst_69 = arith.constant 3.000000e-02 : f32
    %146 = arith.mulf %cst_69, %144 : f32
    %147 = arith.mulf %145, %146 : f32
    %148 = arith.mulf %130, %130 : vector<8x48xf32>
    %149 = arith.mulf %131, %131 : vector<8x48xf32>
    %150 = arith.mulf %130, %131 : vector<8x48xf32>
    %151 = tpu.concatenate %130, %131, %148, %149, %150 in 0 : vector<8x48xf32>, vector<8x48xf32>, vector<8x48xf32>, vector<8x48xf32>, vector<8x48xf32> -> vector<40x48xf32>
    %c0_70 = arith.constant 0 : index
    %c0_71 = arith.constant 0 : index
    %152 = vector.load %arg10[%c0_70, %c0_71] : memref<40x40xf32, #tpu.memory_space<vmem>>, vector<40x40xf32>
    %c0_72 = arith.constant 0 : index
    %c0_73 = arith.constant 0 : index
    %153 = vector.load %arg11[%c0_72, %c0_73] : memref<48x6xf32, #tpu.memory_space<vmem>>, vector<48x6xf32>
    %cst_74 = arith.constant dense<0.000000e+00> : vector<40x48xf32>
    %154 = tpu.matmul %152, %151, %cst_74 {dimension_numbers = #tpu.dot_dimension_numbers<[1], [0], [0], [1], [0, 0, 1, 1], [], []>} : vector<40x40xf32>, vector<40x48xf32>, vector<40x48xf32> -> vector<40x48xf32>
    %cst_75 = arith.constant dense<0.000000e+00> : vector<40x6xf32>
    %155 = tpu.matmul %154, %153, %cst_75 {dimension_numbers = #tpu.dot_dimension_numbers<[1], [0], [0], [1], [0, 0, 1, 1], [], []>} : vector<40x48xf32>, vector<48x6xf32>, vector<40x6xf32> -> vector<40x6xf32>
    %156 = vector.extract_strided_slice %155 {offsets = [0, 0], sizes = [1, 6], strides = [1, 1]} : vector<40x6xf32> to vector<1x6xf32>
    %157 = vector.extract_strided_slice %155 {offsets = [8, 0], sizes = [1, 6], strides = [1, 1]} : vector<40x6xf32> to vector<1x6xf32>
    %158 = vector.extract_strided_slice %155 {offsets = [16, 0], sizes = [1, 6], strides = [1, 1]} : vector<40x6xf32> to vector<1x6xf32>
    %159 = vector.extract_strided_slice %155 {offsets = [24, 0], sizes = [1, 6], strides = [1, 1]} : vector<40x6xf32> to vector<1x6xf32>
    %160 = vector.extract_strided_slice %155 {offsets = [32, 0], sizes = [1, 6], strides = [1, 1]} : vector<40x6xf32> to vector<1x6xf32>
    %161 = arith.mulf %156, %156 : vector<1x6xf32>
    %162 = arith.mulf %157, %157 : vector<1x6xf32>
    %163 = arith.mulf %156, %157 : vector<1x6xf32>
    %164 = arith.subf %160, %163 : vector<1x6xf32>
    %cst_76 = arith.constant 2.000000e+00 : f32
    %165 = vector.broadcast %cst_76 : f32 to vector<1x6xf32>
    %166 = arith.mulf %165, %164 : vector<1x6xf32>
    %167 = vector.broadcast %147 : f32 to vector<1x6xf32>
    %168 = arith.addf %166, %167 : vector<1x6xf32>
    %169 = arith.subf %158, %161 : vector<1x6xf32>
    %170 = arith.subf %159, %162 : vector<1x6xf32>
    %171 = arith.addf %169, %170 : vector<1x6xf32>
    %172 = vector.broadcast %147 : f32 to vector<1x6xf32>
    %173 = arith.addf %171, %172 : vector<1x6xf32>
    %174 = tpu.reciprocal %173 {approx = true} : vector<1x6xf32> -> vector<1x6xf32>
    %175 = arith.mulf %168, %174 : vector<1x6xf32>
    %176 = vector.shape_cast %175 : vector<1x6xf32> to vector<1x1x6xf32>
    %cst_77 = arith.constant dense<0.000000e+00> : vector<1xf32>
    %177 = vector.multi_reduction <add>, %176, %cst_77 [1, 2] : vector<1x1x6xf32> to vector<1xf32>
    %178 = vector.shape_cast %177 : vector<1xf32> to vector<1x1x1xf32>
    %179 = vector.extract %178[0, 0, 0] : f32 from vector<1x1x1xf32>
    %cst_78 = arith.constant 0.166666672 : f32
    %180 = arith.mulf %179, %cst_78 : f32
    %cst_79 = arith.constant 1.000000e+00 : f32
    %181 = arith.addf %180, %cst_79 : f32
    %cst_80 = arith.constant 5.000000e-01 : f32
    %182 = arith.mulf %181, %cst_80 : f32
    %183 = vector.broadcast %182 : f32 to vector<1x1xf32>
    %184 = arith.mulf %183, %2 : vector<1x1xf32>
    %185 = math.log %184 : vector<1x1xf32>
    %cst_81 = arith.constant 3.001000e-01 : f32
    %186 = vector.broadcast %cst_81 : f32 to vector<1x1xf32>
    %187 = arith.mulf %186, %185 : vector<1x1xf32>
    %188 = arith.addf %124, %187 : vector<1x1xf32>
    %c0_82 = arith.constant 0 : index
    %c0_83 = arith.constant 0 : index
    %189 = vector.load %arg12[%c0_82, %c0_83] : memref<16x16xf32, #tpu.memory_space<vmem>>, vector<16x16xf32>
    %c0_84 = arith.constant 0 : index
    %c0_85 = arith.constant 0 : index
    %190 = vector.load %arg13[%c0_84, %c0_85] : memref<48x24xf32, #tpu.memory_space<vmem>>, vector<48x24xf32>
    %191 = vector.extract_strided_slice %151 {offsets = [0, 0], sizes = [16, 48], strides = [1, 1]} : vector<40x48xf32> to vector<16x48xf32>
    %cst_86 = arith.constant dense<0.000000e+00> : vector<16x48xf32>
    %192 = tpu.matmul %189, %191, %cst_86 {dimension_numbers = #tpu.dot_dimension_numbers<[1], [0], [0], [1], [0, 0, 1, 1], [], []>} : vector<16x16xf32>, vector<16x48xf32>, vector<16x48xf32> -> vector<16x48xf32>
    %cst_87 = arith.constant dense<0.000000e+00> : vector<16x24xf32>
    %193 = tpu.matmul %192, %190, %cst_87 {dimension_numbers = #tpu.dot_dimension_numbers<[1], [0], [0], [1], [0, 0, 1, 1], [], []>} : vector<16x48xf32>, vector<48x24xf32>, vector<16x24xf32> -> vector<16x24xf32>
    %194 = vector.extract_strided_slice %193 {offsets = [0, 0], sizes = [8, 24], strides = [1, 1]} : vector<16x24xf32> to vector<8x24xf32>
    %195 = vector.extract_strided_slice %193 {offsets = [8, 0], sizes = [8, 24], strides = [1, 1]} : vector<16x24xf32> to vector<8x24xf32>
    %196 = vector.shape_cast %194 : vector<8x24xf32> to vector<1x8x24xf32>
    %cst_88 = arith.constant dense<0xFF800000> : vector<1xf32>
    %197 = vector.multi_reduction <maximumf>, %196, %cst_88 [1, 2] : vector<1x8x24xf32> to vector<1xf32>
    %198 = vector.shape_cast %197 : vector<1xf32> to vector<1x1x1xf32>
    %199 = vector.extract %198[0, 0, 0] : f32 from vector<1x1x1xf32>
    %200 = vector.shape_cast %194 : vector<8x24xf32> to vector<1x8x24xf32>
    %cst_89 = arith.constant dense<0x7F800000> : vector<1xf32>
    %201 = vector.multi_reduction <minimumf>, %200, %cst_89 [1, 2] : vector<1x8x24xf32> to vector<1xf32>
    %202 = vector.shape_cast %201 : vector<1xf32> to vector<1x1x1xf32>
    %203 = vector.extract %202[0, 0, 0] : f32 from vector<1x1x1xf32>
    %cst_90 = arith.constant 1.280000e+02 : f32
    %204 = arith.cmpf ogt, %199, %cst_90 : f32
    %cst_91 = arith.constant 2.550000e+02 : f32
    %cst_92 = arith.constant 1.000000e+00 : f32
    %205 = arith.select %204, %cst_91, %cst_92 : f32
    %cst_93 = arith.constant -5.000000e-01 : f32
    %206 = arith.cmpf olt, %203, %cst_93 : f32
    %cst_94 = arith.constant -1.000000e+00 : f32
    %cst_95 = arith.constant 0.000000e+00 : f32
    %207 = arith.select %206, %cst_94, %cst_95 : f32
    %208 = arith.subf %205, %207 : f32
    %cst_96 = arith.constant 3.000000e-02 : f32
    %209 = arith.mulf %cst_96, %208 : f32
    %cst_97 = arith.constant 3.000000e-02 : f32
    %210 = arith.mulf %cst_97, %208 : f32
    %211 = arith.mulf %209, %210 : f32
    %212 = arith.mulf %194, %194 : vector<8x24xf32>
    %213 = arith.mulf %195, %195 : vector<8x24xf32>
    %214 = arith.mulf %194, %195 : vector<8x24xf32>
    %215 = tpu.concatenate %194, %195, %212, %213, %214 in 0 : vector<8x24xf32>, vector<8x24xf32>, vector<8x24xf32>, vector<8x24xf32>, vector<8x24xf32> -> vector<40x24xf32>
    %c0_98 = arith.constant 0 : index
    %c0_99 = arith.constant 0 : index
    %216 = vector.load %arg14[%c0_98, %c0_99] : memref<40x40xf32, #tpu.memory_space<vmem>>, vector<40x40xf32>
    %c0_100 = arith.constant 0 : index
    %c0_101 = arith.constant 0 : index
    %217 = vector.load %arg15[%c0_100, %c0_101] : memref<24x6xf32, #tpu.memory_space<vmem>>, vector<24x6xf32>
    %cst_102 = arith.constant dense<0.000000e+00> : vector<40x24xf32>
    %218 = tpu.matmul %216, %215, %cst_102 {dimension_numbers = #tpu.dot_dimension_numbers<[1], [0], [0], [1], [0, 0, 1, 1], [], []>} : vector<40x40xf32>, vector<40x24xf32>, vector<40x24xf32> -> vector<40x24xf32>
    %cst_103 = arith.constant dense<0.000000e+00> : vector<40x6xf32>
    %219 = tpu.matmul %218, %217, %cst_103 {dimension_numbers = #tpu.dot_dimension_numbers<[1], [0], [0], [1], [0, 0, 1, 1], [], []>} : vector<40x24xf32>, vector<24x6xf32>, vector<40x6xf32> -> vector<40x6xf32>
    %220 = vector.extract_strided_slice %219 {offsets = [0, 0], sizes = [1, 6], strides = [1, 1]} : vector<40x6xf32> to vector<1x6xf32>
    %221 = vector.extract_strided_slice %219 {offsets = [8, 0], sizes = [1, 6], strides = [1, 1]} : vector<40x6xf32> to vector<1x6xf32>
    %222 = vector.extract_strided_slice %219 {offsets = [16, 0], sizes = [1, 6], strides = [1, 1]} : vector<40x6xf32> to vector<1x6xf32>
    %223 = vector.extract_strided_slice %219 {offsets = [24, 0], sizes = [1, 6], strides = [1, 1]} : vector<40x6xf32> to vector<1x6xf32>
    %224 = vector.extract_strided_slice %219 {offsets = [32, 0], sizes = [1, 6], strides = [1, 1]} : vector<40x6xf32> to vector<1x6xf32>
    %225 = arith.mulf %220, %220 : vector<1x6xf32>
    %226 = arith.mulf %221, %221 : vector<1x6xf32>
    %227 = arith.mulf %220, %221 : vector<1x6xf32>
    %228 = arith.subf %224, %227 : vector<1x6xf32>
    %cst_104 = arith.constant 2.000000e+00 : f32
    %229 = vector.broadcast %cst_104 : f32 to vector<1x6xf32>
    %230 = arith.mulf %229, %228 : vector<1x6xf32>
    %231 = vector.broadcast %211 : f32 to vector<1x6xf32>
    %232 = arith.addf %230, %231 : vector<1x6xf32>
    %233 = arith.subf %222, %225 : vector<1x6xf32>
    %234 = arith.subf %223, %226 : vector<1x6xf32>
    %235 = arith.addf %233, %234 : vector<1x6xf32>
    %236 = vector.broadcast %211 : f32 to vector<1x6xf32>
    %237 = arith.addf %235, %236 : vector<1x6xf32>
    %238 = tpu.reciprocal %237 {approx = true} : vector<1x6xf32> -> vector<1x6xf32>
    %239 = arith.mulf %232, %238 : vector<1x6xf32>
    %240 = vector.shape_cast %239 : vector<1x6xf32> to vector<1x1x6xf32>
    %cst_105 = arith.constant dense<0.000000e+00> : vector<1xf32>
    %241 = vector.multi_reduction <add>, %240, %cst_105 [1, 2] : vector<1x1x6xf32> to vector<1xf32>
    %242 = vector.shape_cast %241 : vector<1xf32> to vector<1x1x1xf32>
    %243 = vector.extract %242[0, 0, 0] : f32 from vector<1x1x1xf32>
    %cst_106 = arith.constant 0.166666672 : f32
    %244 = arith.mulf %243, %cst_106 : f32
    %cst_107 = arith.constant 1.000000e+00 : f32
    %245 = arith.addf %244, %cst_107 : f32
    %cst_108 = arith.constant 5.000000e-01 : f32
    %246 = arith.mulf %245, %cst_108 : f32
    %247 = vector.broadcast %246 : f32 to vector<1x1xf32>
    %248 = arith.mulf %247, %2 : vector<1x1xf32>
    %249 = math.log %248 : vector<1x1xf32>
    %cst_109 = arith.constant 2.363000e-01 : f32
    %250 = vector.broadcast %cst_109 : f32 to vector<1x1xf32>
    %251 = arith.mulf %250, %249 : vector<1x1xf32>
    %252 = arith.addf %188, %251 : vector<1x1xf32>
    %c0_110 = arith.constant 0 : index
    %c0_111 = arith.constant 0 : index
    %253 = vector.load %arg16[%c0_110, %c0_111] : memref<16x16xf32, #tpu.memory_space<vmem>>, vector<16x16xf32>
    %c0_112 = arith.constant 0 : index
    %c0_113 = arith.constant 0 : index
    %254 = vector.load %arg17[%c0_112, %c0_113] : memref<24x12xf32, #tpu.memory_space<vmem>>, vector<24x12xf32>
    %255 = vector.extract_strided_slice %215 {offsets = [0, 0], sizes = [16, 24], strides = [1, 1]} : vector<40x24xf32> to vector<16x24xf32>
    %cst_114 = arith.constant dense<0.000000e+00> : vector<16x24xf32>
    %256 = tpu.matmul %253, %255, %cst_114 {dimension_numbers = #tpu.dot_dimension_numbers<[1], [0], [0], [1], [0, 0, 1, 1], [], []>} : vector<16x16xf32>, vector<16x24xf32>, vector<16x24xf32> -> vector<16x24xf32>
    %cst_115 = arith.constant dense<0.000000e+00> : vector<16x12xf32>
    %257 = tpu.matmul %256, %254, %cst_115 {dimension_numbers = #tpu.dot_dimension_numbers<[1], [0], [0], [1], [0, 0, 1, 1], [], []>} : vector<16x24xf32>, vector<24x12xf32>, vector<16x12xf32> -> vector<16x12xf32>
    %258 = vector.extract_strided_slice %257 {offsets = [0, 0], sizes = [8, 12], strides = [1, 1]} : vector<16x12xf32> to vector<8x12xf32>
    %259 = vector.extract_strided_slice %257 {offsets = [8, 0], sizes = [8, 12], strides = [1, 1]} : vector<16x12xf32> to vector<8x12xf32>
    %260 = vector.shape_cast %258 : vector<8x12xf32> to vector<1x8x12xf32>
    %cst_116 = arith.constant dense<0xFF800000> : vector<1xf32>
    %261 = vector.multi_reduction <maximumf>, %260, %cst_116 [1, 2] : vector<1x8x12xf32> to vector<1xf32>
    %262 = vector.shape_cast %261 : vector<1xf32> to vector<1x1x1xf32>
    %263 = vector.extract %262[0, 0, 0] : f32 from vector<1x1x1xf32>
    %264 = vector.shape_cast %258 : vector<8x12xf32> to vector<1x8x12xf32>
    %cst_117 = arith.constant dense<0x7F800000> : vector<1xf32>
    %265 = vector.multi_reduction <minimumf>, %264, %cst_117 [1, 2] : vector<1x8x12xf32> to vector<1xf32>
    %266 = vector.shape_cast %265 : vector<1xf32> to vector<1x1x1xf32>
    %267 = vector.extract %266[0, 0, 0] : f32 from vector<1x1x1xf32>
    %cst_118 = arith.constant 1.280000e+02 : f32
    %268 = arith.cmpf ogt, %263, %cst_118 : f32
    %cst_119 = arith.constant 2.550000e+02 : f32
    %cst_120 = arith.constant 1.000000e+00 : f32
    %269 = arith.select %268, %cst_119, %cst_120 : f32
    %cst_121 = arith.constant -5.000000e-01 : f32
    %270 = arith.cmpf olt, %267, %cst_121 : f32
    %cst_122 = arith.constant -1.000000e+00 : f32
    %cst_123 = arith.constant 0.000000e+00 : f32
    %271 = arith.select %270, %cst_122, %cst_123 : f32
    %272 = arith.subf %269, %271 : f32
    %cst_124 = arith.constant 0.00999999977 : f32
    %273 = arith.mulf %cst_124, %272 : f32
    %cst_125 = arith.constant 0.00999999977 : f32
    %274 = arith.mulf %cst_125, %272 : f32
    %275 = arith.mulf %273, %274 : f32
    %cst_126 = arith.constant 3.000000e-02 : f32
    %276 = arith.mulf %cst_126, %272 : f32
    %cst_127 = arith.constant 3.000000e-02 : f32
    %277 = arith.mulf %cst_127, %272 : f32
    %278 = arith.mulf %276, %277 : f32
    %279 = arith.mulf %258, %258 : vector<8x12xf32>
    %280 = arith.mulf %259, %259 : vector<8x12xf32>
    %281 = arith.mulf %258, %259 : vector<8x12xf32>
    %282 = tpu.concatenate %258, %259, %279, %280, %281 in 0 : vector<8x12xf32>, vector<8x12xf32>, vector<8x12xf32>, vector<8x12xf32>, vector<8x12xf32> -> vector<40x12xf32>
    %c0_128 = arith.constant 0 : index
    %c0_129 = arith.constant 0 : index
    %283 = vector.load %arg18[%c0_128, %c0_129] : memref<40x40xf32, #tpu.memory_space<vmem>>, vector<40x40xf32>
    %c0_130 = arith.constant 0 : index
    %c0_131 = arith.constant 0 : index
    %284 = vector.load %arg19[%c0_130, %c0_131] : memref<12x6xf32, #tpu.memory_space<vmem>>, vector<12x6xf32>
    %cst_132 = arith.constant dense<0.000000e+00> : vector<40x12xf32>
    %285 = tpu.matmul %283, %282, %cst_132 {dimension_numbers = #tpu.dot_dimension_numbers<[1], [0], [0], [1], [0, 0, 1, 1], [], []>} : vector<40x40xf32>, vector<40x12xf32>, vector<40x12xf32> -> vector<40x12xf32>
    %cst_133 = arith.constant dense<0.000000e+00> : vector<40x6xf32>
    %286 = tpu.matmul %285, %284, %cst_133 {dimension_numbers = #tpu.dot_dimension_numbers<[1], [0], [0], [1], [0, 0, 1, 1], [], []>} : vector<40x12xf32>, vector<12x6xf32>, vector<40x6xf32> -> vector<40x6xf32>
    %287 = vector.extract_strided_slice %286 {offsets = [0, 0], sizes = [1, 6], strides = [1, 1]} : vector<40x6xf32> to vector<1x6xf32>
    %288 = vector.extract_strided_slice %286 {offsets = [8, 0], sizes = [1, 6], strides = [1, 1]} : vector<40x6xf32> to vector<1x6xf32>
    %289 = vector.extract_strided_slice %286 {offsets = [16, 0], sizes = [1, 6], strides = [1, 1]} : vector<40x6xf32> to vector<1x6xf32>
    %290 = vector.extract_strided_slice %286 {offsets = [24, 0], sizes = [1, 6], strides = [1, 1]} : vector<40x6xf32> to vector<1x6xf32>
    %291 = vector.extract_strided_slice %286 {offsets = [32, 0], sizes = [1, 6], strides = [1, 1]} : vector<40x6xf32> to vector<1x6xf32>
    %292 = arith.mulf %287, %287 : vector<1x6xf32>
    %293 = arith.mulf %288, %288 : vector<1x6xf32>
    %294 = arith.mulf %287, %288 : vector<1x6xf32>
    %295 = arith.subf %291, %294 : vector<1x6xf32>
    %cst_134 = arith.constant 2.000000e+00 : f32
    %296 = vector.broadcast %cst_134 : f32 to vector<1x6xf32>
    %297 = arith.mulf %296, %295 : vector<1x6xf32>
    %298 = vector.broadcast %278 : f32 to vector<1x6xf32>
    %299 = arith.addf %297, %298 : vector<1x6xf32>
    %300 = arith.subf %289, %292 : vector<1x6xf32>
    %301 = arith.subf %290, %293 : vector<1x6xf32>
    %302 = arith.addf %300, %301 : vector<1x6xf32>
    %303 = vector.broadcast %278 : f32 to vector<1x6xf32>
    %304 = arith.addf %302, %303 : vector<1x6xf32>
    %cst_135 = arith.constant 2.000000e+00 : f32
    %305 = vector.broadcast %cst_135 : f32 to vector<1x6xf32>
    %306 = arith.mulf %305, %294 : vector<1x6xf32>
    %307 = vector.broadcast %275 : f32 to vector<1x6xf32>
    %308 = arith.addf %306, %307 : vector<1x6xf32>
    %309 = arith.mulf %308, %299 : vector<1x6xf32>
    %310 = arith.addf %292, %293 : vector<1x6xf32>
    %311 = vector.broadcast %275 : f32 to vector<1x6xf32>
    %312 = arith.addf %310, %311 : vector<1x6xf32>
    %313 = arith.mulf %312, %304 : vector<1x6xf32>
    %314 = tpu.reciprocal %313 {approx = true} : vector<1x6xf32> -> vector<1x6xf32>
    %315 = arith.mulf %309, %314 : vector<1x6xf32>
    %316 = vector.shape_cast %315 : vector<1x6xf32> to vector<1x1x6xf32>
    %cst_136 = arith.constant dense<0.000000e+00> : vector<1xf32>
    %317 = vector.multi_reduction <add>, %316, %cst_136 [1, 2] : vector<1x1x6xf32> to vector<1xf32>
    %318 = vector.shape_cast %317 : vector<1xf32> to vector<1x1x1xf32>
    %319 = vector.extract %318[0, 0, 0] : f32 from vector<1x1x1xf32>
    %cst_137 = arith.constant 0.166666672 : f32
    %320 = arith.mulf %319, %cst_137 : f32
    %cst_138 = arith.constant 1.000000e+00 : f32
    %321 = arith.addf %320, %cst_138 : f32
    %cst_139 = arith.constant 5.000000e-01 : f32
    %322 = arith.mulf %321, %cst_139 : f32
    %323 = vector.broadcast %322 : f32 to vector<1x1xf32>
    %324 = arith.mulf %323, %2 : vector<1x1xf32>
    %325 = math.log %324 : vector<1x1xf32>
    %cst_140 = arith.constant 5.332000e-01 : f32
    %326 = vector.broadcast %cst_140 : f32 to vector<1x1xf32>
    %327 = arith.mulf %326, %325 : vector<1x1xf32>
    %328 = arith.addf %252, %327 : vector<1x1xf32>
    %329 = math.exp %328 : vector<1x1xf32>
    %cst_141 = arith.constant 1.000000e+00 : f32
    %330 = vector.broadcast %cst_141 : f32 to vector<1x1xf32>
    %331 = arith.subf %330, %329 : vector<1x1xf32>
    %c0_142 = arith.constant 0 : index
    %c0_143 = arith.constant 0 : index
    %332 = vector.load %arg20[%c0_142, %c0_143] : memref<1x1xf32, #tpu.memory_space<vmem>>, vector<1x1xf32>
    tpu.vector_store %arg20[%c0_142, %c0_143], %331 {strides = array<i32>} : memref<1x1xf32, #tpu.memory_space<vmem>>, vector<1x1xf32>,
    return
  }
}

</mosaic_0001>

<llo_original>
// kernel: reconstruction_loss.1
$region0: #{reconstruction_loss.1}
  #allocation0 [shape = 'u32[]', space=smem, size = 0x4, offset = 0x4, fixed_abs, tag = 'smem constant byte address 0x4 - core index']
  #allocation1 [shape = 'u32[144,128]{1,0:T(1,128)}', space=vmem, size = 0x12000, scoped, tag = 'internal scratch']
  %s0 = inlined_call_operand.vmem [shape: f32[32,192], index: 0, kind: input, shape index: {}]
  %s1 = inlined_call_operand.vmem [shape: f32[32,192], index: 1, kind: input, shape index: {}]
  %s2 = inlined_call_operand.vmem [shape: f32[120,160], index: 2, kind: input, shape index: {}]
  %s3 = inlined_call_operand.vmem [shape: f32[192,132], index: 3, kind: input, shape index: {}]
  %s4 = inlined_call_operand.vmem [shape: f32[32,64], index: 4, kind: input, shape index: {}]
  %s5 = inlined_call_operand.vmem [shape: f32[192,96], index: 5, kind: input, shape index: {}]
  %s6 = inlined_call_operand.vmem [shape: f32[40,80], index: 6, kind: input, shape index: {}]
  %s7 = inlined_call_operand.vmem [shape: f32[96,36], index: 7, kind: input, shape index: {}]
  %s8 = inlined_call_operand.hbm [shape: f32[16,32], index: 8, kind: input, shape index: {}]
  %s9 = inlined_call_operand.vmem [shape: f32[96,48], index: 9, kind: input, shape index: {}]
  %s10 = inlined_call_operand.vmem [shape: f32[40,40], index: 10, kind: input, shape index: {}]
  %s11 = inlined_call_operand.vmem [shape: f32[48,6], index: 11, kind: input, shape index: {}]
  %s12 = inlined_call_operand.hbm [shape: f32[16,16], index: 12, kind: input, shape index: {}]
  %s13 = inlined_call_operand.vmem [shape: f32[48,24], index: 13, kind: input, shape index: {}]
  %s14 = inlined_call_operand.vmem [shape: f32[40,40], index: 14, kind: input, shape index: {}]
  %s15 = inlined_call_operand.vmem [shape: f32[24,6], index: 15, kind: input, shape index: {}]
  %s16 = inlined_call_operand.vmem [shape: f32[16,16], index: 16, kind: input, shape index: {}]
  %s17 = inlined_call_operand.vmem [shape: f32[24,12], index: 17, kind: input, shape index: {}]
  %s18 = inlined_call_operand.vmem [shape: f32[40,40], index: 18, kind: input, shape index: {}]
  %s19 = inlined_call_operand.vmem [shape: f32[12,6], index: 19, kind: input, shape index: {}]
  %s20 = inlined_call_operand.hbm [shape: f32[1,1], index: 20, kind: output, shape index: {}]
  %s21 = sld [smem:[#allocation0]]
  $region98: #{reconstruction_loss.1} parent=0
    _
  %s23 = ssub.s32 1, %s21
  %s24 = scalar_select 0, %s23, %s21
  $region1: #{reconstruction_loss.1} parent=0
    #allocation2 [shape = 'u8[8192]{0}', space=vmem, size = 0x2000, scoped, tag = 'input window, operand 8, single buffered']
    #allocation3 [shape = 's32[1]{0}', space=sflag, size = 0x4, scoped, tag = 'scoped memory for reconstruction_loss.1']
    #allocation4 [shape = 's32[1]{0}', space=sflag, size = 0x4, scoped, tag = 'scoped memory for reconstruction_loss.1']
    #allocation5 [shape = 'u8[8192]{0}', space=vmem, size = 0x2000, scoped, tag = 'input window, operand 12, single buffered']
    #allocation6 [shape = 's32[1]{0}', space=sflag, size = 0x4, scoped, tag = 'scoped memory for reconstruction_loss.1']
    #allocation7 [shape = 'u8[512]{0}', space=vmem, size = 0x400, scoped, tag = 'output window, operand 0, single buffered']
    %25 = vsyncpa [#allocation3], 0
    %26 = vsyncpa [#allocation6], 0
    %27 = vsyncpa [#allocation4], 0
    // Predicated region
    $region2: #{reconstruction_loss.1} parent=1 // pred_check
      _
    $region3: #{reconstruction_loss.1} parent=1 // pred_check_branch
      %29 = sbr.rel (0) target = $region5
    $region4: #{reconstruction_loss.1} parent=1 // pred_region
      _
    $region5: #{reconstruction_loss.1} parent=1 // pred_fallthru
      _
    // Predicated region
    $region6: #{reconstruction_loss.1} parent=1 // pred_check
      _
    $region7: #{reconstruction_loss.1} parent=1 // pred_check_branch
      %31 = sbr.rel (0) target = $region9
    $region8: #{reconstruction_loss.1} parent=1 // pred_region
      _
    $region9: #{reconstruction_loss.1} parent=1 // pred_fallthru
      _
    // Predicated region
    $region10: #{reconstruction_loss.1} parent=1 // pred_check
      _
    $region11: #{reconstruction_loss.1} parent=1 // pred_check_branch
      %33 = sbr.rel (0) target = $region13
    $region12: #{reconstruction_loss.1} parent=1 // pred_region
      _
    $region13: #{reconstruction_loss.1} parent=1 // pred_fallthru
      _
    // Predicated region
    $region14: #{reconstruction_loss.1} parent=1 // pred_check
      _
    $region15: #{reconstruction_loss.1} parent=1 // pred_check_branch
      %35 = sbr.rel (0) target = $region17
    $region16: #{reconstruction_loss.1} parent=1 // pred_region
      _
    $region17: #{reconstruction_loss.1} parent=1 // pred_fallthru
      _
    // Predicated region
    $region18: #{reconstruction_loss.1} parent=1 // pred_check
      _
    $region19: #{reconstruction_loss.1} parent=1 // pred_check_branch
      %37 = sbr.rel (0) target = $region21
    $region20: #{reconstruction_loss.1} parent=1 // pred_region
      _
    $region21: #{reconstruction_loss.1} parent=1 // pred_fallthru
      _
    // Predicated region
    $region22: #{reconstruction_loss.1} parent=1 // pred_check
      _
    $region23: #{reconstruction_loss.1} parent=1 // pred_check_branch
      %39 = sbr.rel (0) target = $region25
    $region24: #{reconstruction_loss.1} parent=1 // pred_region
      _
    $region25: #{reconstruction_loss.1} parent=1 // pred_fallthru
      _
    // Predicated region
    $region26: #{reconstruction_loss.1} parent=1 // pred_check
      _
    $region27: #{reconstruction_loss.1} parent=1 // pred_check_branch
      %41 = sbr.rel (0) target = $region29
    $region28: #{reconstruction_loss.1} parent=1 // pred_region
      _
    $region29: #{reconstruction_loss.1} parent=1 // pred_fallthru
      _
    // Predicated region
    $region30: #{reconstruction_loss.1} parent=1 // pred_check
      _
    $region31: #{reconstruction_loss.1} parent=1 // pred_check_branch
      %43 = sbr.rel (0) target = $region33
    $region32: #{reconstruction_loss.1} parent=1 // pred_region
      _
    $region33: #{reconstruction_loss.1} parent=1 // pred_fallthru
      _
    // Predicated region
    $region34: #{reconstruction_loss.1} parent=1 // pred_check
      _
    $region35: #{reconstruction_loss.1} parent=1 // pred_check_branch
      %45 = sbr.rel (0) target = $region37
    $region36: #{reconstruction_loss.1} parent=1 // pred_region
      %s47 = ssub.s32 256, 256
      %48 = vsyncadd [#allocation3], %s47
      %s49 = sshll.u32 [#allocation2], 4
      %s50 = int_to_ptr.vmem [resolvable:$true] %s49
      %55 = dma.hbm_to_vmem [thread:$0]  %s8, 256, %s50, [#allocation3], 128, 128, 8
    $region37: #{reconstruction_loss.1} parent=1 // pred_fallthru
      _
    // Predicated region
    $region38: #{reconstruction_loss.1} parent=1 // pred_check
      _
    $region39: #{reconstruction_loss.1} parent=1 // pred_check_branch
      %57 = sbr.rel (0) target = $region41
    $region40: #{reconstruction_loss.1} parent=1 // pred_region
      _
    $region41: #{reconstruction_loss.1} parent=1 // pred_fallthru
      _
    // Predicated region
    $region42: #{reconstruction_loss.1} parent=1 // pred_check
      _
    $region43: #{reconstruction_loss.1} parent=1 // pred_check_branch
      %59 = sbr.rel (0) target = $region45
    $region44: #{reconstruction_loss.1} parent=1 // pred_region
      _
    $region45: #{reconstruction_loss.1} parent=1 // pred_fallthru
      _
    // Predicated region
    $region46: #{reconstruction_loss.1} parent=1 // pred_check
      _
    $region47: #{reconstruction_loss.1} parent=1 // pred_check_branch
      %61 = sbr.rel (0) target = $region49
    $region48: #{reconstruction_loss.1} parent=1 // pred_region
      _
    $region49: #{reconstruction_loss.1} parent=1 // pred_fallthru
      _
    // Predicated region
    $region50: #{reconstruction_loss.1} parent=1 // pred_check
      _
    $region51: #{reconstruction_loss.1} parent=1 // pred_check_branch
      %63 = sbr.rel (0) target = $region53
    $region52: #{reconstruction_loss.1} parent=1 // pred_region
      %s65 = ssub.s32 256, 256
      %66 = vsyncadd [#allocation6], %s65
      %s67 = sshll.u32 [#allocation5], 4
      %s68 = int_to_ptr.vmem [resolvable:$true] %s67
      %73 = dma.hbm_to_vmem [thread:$0]  %s12, 256, %s68, [#allocation6], 128, 128, 8
    $region53: #{reconstruction_loss.1} parent=1 // pred_fallthru
      _
    // Predicated region
    $region54: #{reconstruction_loss.1} parent=1 // pred_check
      _
    $region55: #{reconstruction_loss.1} parent=1 // pred_check_branch
      %75 = sbr.rel (0) target = $region57
    $region56: #{reconstruction_loss.1} parent=1 // pred_region
      _
    $region57: #{reconstruction_loss.1} parent=1 // pred_fallthru
      _
    // Predicated region
    $region58: #{reconstruction_loss.1} parent=1 // pred_check
      _
    $region59: #{reconstruction_loss.1} parent=1 // pred_check_branch
      %77 = sbr.rel (0) target = $region61
    $region60: #{reconstruction_loss.1} parent=1 // pred_region
      _
    $region61: #{reconstruction_loss.1} parent=1 // pred_fallthru
      _
    // Predicated region
    $region62: #{reconstruction_loss.1} parent=1 // pred_check
      _
    $region63: #{reconstruction_loss.1} parent=1 // pred_check_branch
      %79 = sbr.rel (0) target = $region65
    $region64: #{reconstruction_loss.1} parent=1 // pred_region
      _
    $region65: #{reconstruction_loss.1} parent=1 // pred_fallthru
      _
    // Predicated region
    $region66: #{reconstruction_loss.1} parent=1 // pred_check
      _
    $region67: #{reconstruction_loss.1} parent=1 // pred_check_branch
      %81 = sbr.rel (0) target = $region69
    $region68: #{reconstruction_loss.1} parent=1 // pred_region
      _
    $region69: #{reconstruction_loss.1} parent=1 // pred_fallthru
      _
    // Predicated region
    $region70: #{reconstruction_loss.1} parent=1 // pred_check
      _
    $region71: #{reconstruction_loss.1} parent=1 // pred_check_branch
      %83 = sbr.rel (0) target = $region73
    $region72: #{reconstruction_loss.1} parent=1 // pred_region
      _
    $region73: #{reconstruction_loss.1} parent=1 // pred_fallthru
      _
    // Predicated region
    $region74: #{reconstruction_loss.1} parent=1 // pred_check
      _
    $region75: #{reconstruction_loss.1} parent=1 // pred_check_branch
      %85 = sbr.rel (0) target = $region77
    $region76: #{reconstruction_loss.1} parent=1 // pred_region
      _
    $region77: #{reconstruction_loss.1} parent=1 // pred_fallthru
      _
    // Predicated region
    $region78: #{reconstruction_loss.1} parent=1 // pred_check
      _
    $region79: #{reconstruction_loss.1} parent=1 // pred_check_branch
      %87 = sbr.rel (0) target = $region81
    $region80: #{reconstruction_loss.1} parent=1 // pred_region
      _
    $region81: #{reconstruction_loss.1} parent=1 // pred_fallthru
      _
    // Predicated region
    $region82: #{reconstruction_loss.1} parent=1 // pred_check
      _
    $region83: #{reconstruction_loss.1} parent=1 // pred_check_branch
      %89 = sbr.rel (0) target = $region85
    $region84: #{reconstruction_loss.1} parent=1 // pred_region
      %90 = dma.done [#allocation3], 256
    $region85: #{reconstruction_loss.1} parent=1 // pred_fallthru
      _
    // Predicated region
    $region86: #{reconstruction_loss.1} parent=1 // pred_check
      _
    $region87: #{reconstruction_loss.1} parent=1 // pred_check_branch
      %92 = sbr.rel (0) target = $region89
    $region88: #{reconstruction_loss.1} parent=1 // pred_region
      %93 = dma.done [#allocation6], 256
    $region89: #{reconstruction_loss.1} parent=1 // pred_fallthru
      _
    %v94 = vld [vmem:[%s0] sm:$0xff]
    %v95 = vld [vmem:[%s0 + $0x8] sm:$0xff]
    %v96 = vld [vmem:[%s0 + $0x10] sm:$0xff]
    %v97 = vld [vmem:[%s0 + $0x18] sm:$0xff]
    %v98 = vld [vmem:[%s0 + $0x20] sm:$0xff]
    %v99 = vld [vmem:[%s0 + $0x28] sm:$0xff]
    %v100 = vld [vmem:[%s0 + $0x30] sm:$0xff]
    %v101 = vld [vmem:[%s0 + $0x38] sm:$0xff]
    %v102 = vld [vmem:[%s1] sm:$0xff]
    %v103 = vld [vmem:[%s1 + $0x8] sm:$0xff]
    %v104 = vld [vmem:[%s1 + $0x10] sm:$0xff]
    %v105 = vld [vmem:[%s1 + $0x18] sm:$0xff]
    %v106 = vld [vmem:[%s1 + $0x20] sm:$0xff]
    %v107 = vld [vmem:[%s1 + $0x28] sm:$0xff]
    %v108 = vld [vmem:[%s1 + $0x30] sm:$0xff]
    %v109 = vld [vmem:[%s1 + $0x38] sm:$0xff]
    %vm110 = vcmask 523264
    %v111 = vsel %vm110, %v95, -inf
    %v112 = vsel %vm110, %v97, -inf
    %v113 = vmax.f32 %v94, %v98
    %v114 = vsel %vm110, %v99, -inf
    %v115 = vmax.f32 %v111, %v114
    %v116 = vmax.f32 %v96, %v100
    %v117 = vsel %vm110, %v101, -inf
    %v118 = vmax.f32 %v112, %v117
    %v119 = vmax.f32 %v113, %v115
    %v120 = vmax.f32 %v116, %v118
    %v121 = vmax.f32 %v119, %v120
    %122 = vmax.xlane.f32.xlu0 %v121
    %v123 = vpop.xlane.xlu0 %122
    %v124 = vrot.slane %v123, 4
    %v125 = vmax.f32 %v123, %v124
    %v126 = vrot.slane %v125, 2
    %v127 = vmax.f32 %v125, %v126
    %v128 = vrot.slane %v127, 1
    %v129 = vmax.f32 %v127, %v128
    %s130 = vtos %v129
    %v131 = vsel %vm110, %v95, inf
    %v132 = vsel %vm110, %v97, inf
    %v133 = vmin.f32 %v94, %v98
    %v134 = vsel %vm110, %v99, inf
    %v135 = vmin.f32 %v131, %v134
    %v136 = vmin.f32 %v96, %v100
    %v137 = vsel %vm110, %v101, inf
    %v138 = vmin.f32 %v132, %v137
    %v139 = vmin.f32 %v133, %v135
    %v140 = vmin.f32 %v136, %v138
    %v141 = vmin.f32 %v139, %v140
    %142 = vmin.xlane.f32.xlu0 %v141
    %v143 = vpop.xlane.xlu0 %142
    %v144 = vrot.slane %v143, 4
    %v145 = vmin.f32 %v143, %v144
    %v146 = vrot.slane %v145, 2
    %v147 = vmin.f32 %v145, %v146
    %v148 = vrot.slane %v147, 1
    %v149 = vmin.f32 %v147, %v148
    %s150 = vtos %v149
    %p151 = scmp.gt.f32.partialorder %s130, 128.0
    %s152 = scalar_select %p151, 255.0, 1.0
    %p153 = scmp.lt.f32.partialorder %s150, -0.5
    %s154 = scalar_select %p153, -1.0, 0.0
    %s155 = ssub.f32 %s152, %s154
    %s156 = smul.f32 %s155, 0.03
    %s157 = smul.f32 %s156, %s156
    %v158 = vmul.f32 %v94, %v94
    %v159 = vmul.f32 %v95, %v95
    %v160 = vmul.f32 %v96, %v96
    %v161 = vmul.f32 %v97, %v97
    %v162 = vmul.f32 %v98, %v98
    %v163 = vmul.f32 %v99, %v99
    %v164 = vmul.f32 %v100, %v100
    %v165 = vmul.f32 %v101, %v101
    %v166 = vmul.f32 %v102, %v102
    %v167 = vmul.f32 %v103, %v103
    %v168 = vmul.f32 %v104, %v104
    %v169 = vmul.f32 %v105, %v105
    %v170 = vmul.f32 %v106, %v106
    %v171 = vmul.f32 %v107, %v107
    %v172 = vmul.f32 %v108, %v108
    %v173 = vmul.f32 %v109, %v109
    %v174 = vmul.f32 %v94, %v102
    %v175 = vmul.f32 %v95, %v103
    %v176 = vmul.f32 %v96, %v104
    %v177 = vmul.f32 %v97, %v105
    %v178 = vmul.f32 %v98, %v106
    %v179 = vmul.f32 %v99, %v107
    %v180 = vmul.f32 %v100, %v108
    %v181 = vmul.f32 %v101, %v109
    %v182 = vld [vmem:[%s2] sm:$0xff]
    %v183 = vld [vmem:[%s2 + $0x8] sm:$0xff]
    %v184 = vld [vmem:[%s2 + $0x10] sm:$0xff]
    %v185 = vld [vmem:[%s2 + $0x18] sm:$0xff]
    %v186 = vld [vmem:[%s2 + $0x20] sm:$0xff]
    %v187 = vld [vmem:[%s2 + $0x28] sm:$0xff]
    %v188 = vld [vmem:[%s2 + $0x30] sm:$0xff]
    %v189 = vld [vmem:[%s2 + $0x38] sm:$0xff]
    %v190 = vld [vmem:[%s2 + $0x40] sm:$0xff]
    %v191 = vld [vmem:[%s2 + $0x48] sm:$0xff]
    %v192 = vld [vmem:[%s2 + $0x50] sm:$0xff]
    %v193 = vld [vmem:[%s2 + $0x58] sm:$0xff]
    %v194 = vld [vmem:[%s2 + $0x60] sm:$0xff]
    %v195 = vld [vmem:[%s2 + $0x68] sm:$0xff]
    %v196 = vld [vmem:[%s2 + $0x70] sm:$0xff]
    %v197 = vld [vmem:[%s2 + $0x78] sm:$0xff]
    %v198 = vld [vmem:[%s2 + $0x80] sm:$0xff]
    %v199 = vld [vmem:[%s2 + $0x88] sm:$0xff]
    %v200 = vld [vmem:[%s2 + $0x90] sm:$0xff]
    %v201 = vld [vmem:[%s2 + $0x98] sm:$0xff]
    %v202 = vld [vmem:[%s2 + $0xa0] sm:$0xff]
    %v203 = vld [vmem:[%s2 + $0xa8] sm:$0xff]
    %v204 = vld [vmem:[%s2 + $0xb0] sm:$0xff]
    %v205 = vld [vmem:[%s2 + $0xb8] sm:$0xff]
    %v206 = vld [vmem:[%s2 + $0xc0] sm:$0xff]
    %v207 = vld [vmem:[%s2 + $0xc8] sm:$0xff]
    %v208 = vld [vmem:[%s2 + $0xd0] sm:$0xff]
    %v209 = vld [vmem:[%s2 + $0xd8] sm:$0xff]
    %v210 = vld [vmem:[%s2 + $0xe0] sm:$0xff]
    %v211 = vld [vmem:[%s2 + $0xe8] sm:$0xff]
    %v212 = vld [vmem:[%s3] sm:$0xff]
    %v213 = vld [vmem:[%s3 + $0x8] sm:$0xff]
    %v214 = vld [vmem:[%s3 + $0x10] sm:$0xff]
    %v215 = vld [vmem:[%s3 + $0x18] sm:$0xff]
    %v216 = vld [vmem:[%s3 + $0x20] sm:$0xff]
    %v217 = vld [vmem:[%s3 + $0x28] sm:$0xff]
    %v218 = vld [vmem:[%s3 + $0x30] sm:$0xff]
    %v219 = vld [vmem:[%s3 + $0x38] sm:$0xff]
    %v220 = vld [vmem:[%s3 + $0x40] sm:$0xff]
    %v221 = vld [vmem:[%s3 + $0x48] sm:$0xff]
    %v222 = vld [vmem:[%s3 + $0x50] sm:$0xff]
    %v223 = vld [vmem:[%s3 + $0x58] sm:$0xff]
    %v224 = vld [vmem:[%s3 + $0x60] sm:$0xff]
    %v225 = vld [vmem:[%s3 + $0x68] sm:$0xff]
    %v226 = vld [vmem:[%s3 + $0x70] sm:$0xff]
    %v227 = vld [vmem:[%s3 + $0x78] sm:$0xff]
    %v228 = vld [vmem:[%s3 + $0x80] sm:$0xff]
    %v229 = vld [vmem:[%s3 + $0x88] sm:$0xff]
    %v230 = vld [vmem:[%s3 + $0x90] sm:$0xff]
    %v231 = vld [vmem:[%s3 + $0x98] sm:$0xff]
    %v232 = vld [vmem:[%s3 + $0xa0] sm:$0xff]
    %v233 = vld [vmem:[%s3 + $0xa8] sm:$0xff]
    %v234 = vld [vmem:[%s3 + $0xb0] sm:$0xff]
    %v235 = vld [vmem:[%s3 + $0xb8] sm:$0xff]
    %v236 = vld [vmem:[%s3 + $0xc0] sm:$0xff]
    %v237 = vld [vmem:[%s3 + $0xc8] sm:$0xff]
    %v238 = vld [vmem:[%s3 + $0xd0] sm:$0xff]
    %v239 = vld [vmem:[%s3 + $0xd8] sm:$0xff]
    %v240 = vld [vmem:[%s3 + $0xe0] sm:$0xff]
    %v241 = vld [vmem:[%s3 + $0xe8] sm:$0xff]
    %v242 = vld [vmem:[%s3 + $0xf0] sm:$0xff]
    %v243 = vld [vmem:[%s3 + $0xf8] sm:$0xff]
    %v244 = vld [vmem:[%s3 + $0x100] sm:$0xff]
    %v245 = vld [vmem:[%s3 + $0x108] sm:$0xff]
    %v246 = vld [vmem:[%s3 + $0x110] sm:$0xff]
    %v247 = vld [vmem:[%s3 + $0x118] sm:$0xff]
    %v248 = vld [vmem:[%s3 + $0x120] sm:$0xff]
    %v249 = vld [vmem:[%s3 + $0x128] sm:$0xff]
    %v250 = vld [vmem:[%s3 + $0x130] sm:$0xff]
    %v251 = vld [vmem:[%s3 + $0x138] sm:$0xff]
    %v252 = vld [vmem:[%s3 + $0x140] sm:$0xff]
    %v253 = vld [vmem:[%s3 + $0x148] sm:$0xff]
    %v254 = vld [vmem:[%s3 + $0x150] sm:$0xff]
    %v255 = vld [vmem:[%s3 + $0x158] sm:$0xff]
    %v256 = vld [vmem:[%s3 + $0x160] sm:$0xff]
    %v257 = vld [vmem:[%s3 + $0x168] sm:$0xff]
    %v258 = vld [vmem:[%s3 + $0x170] sm:$0xff]
    %v259 = vld [vmem:[%s3 + $0x178] sm:$0xff]
    %vm260 = vcmask 261120
    %v262 = vsel %vm260, %v183, 0
    %v265 = vsel %vm260, %v185, 0
    %v268 = vsel %vm260, %v187, 0
    %v271 = vsel %vm260, %v189, 0
    %v274 = vsel %vm260, %v191, 0
    %v277 = vsel %vm260, %v193, 0
    %v280 = vsel %vm260, %v195, 0
    %v283 = vsel %vm260, %v197, 0
    %v286 = vsel %vm260, %v199, 0
    %v289 = vsel %vm260, %v201, 0
    %v292 = vsel %vm260, %v203, 0
    %v295 = vsel %vm260, %v205, 0
    %v298 = vsel %vm260, %v207, 0
    %v301 = vsel %vm260, %v209, 0
    %v304 = vsel %vm260, %v211, 0
    %306 = vmatprep.subr.mxu0 %v95
    %307 = vmatpush1.msra.mxu0 %v94
    %308 = vmatprep.subr.mxu0 %v97
    %309 = vmatpush1.msra.mxu0 %v96
    %310 = vmatprep.subr.mxu0 %v99
    %311 = vmatpush1.msra.mxu0 %v98
    %312 = vmatprep.subr.mxu0 %v101
    %313 = vmatpush1.msra.mxu0 %v100
    %314 = vmatprep.subr.mxu0 %v103
    %315 = vmatpush1.msra.mxu0 %v102
    %316 = vmatprep.subr.mxu0 %v105
    %317 = vmatpush1.msra.mxu0 %v104
    %318 = vmatprep.subr.mxu0 %v107
    %319 = vmatpush1.msra.mxu0 %v106
    %320 = vmatprep.subr.mxu0 %v109
    %321 = vmatpush1.msra.mxu0 %v108
    %322 = vmatprep.subr.mxu0 %v159
    %323 = vmatpush1.msra.mxu0 %v158
    %324 = vmatprep.subr.mxu0 %v161
    %325 = vmatpush1.msra.mxu0 %v160
    %326 = vmatprep.subr.mxu0 %v163
    %327 = vmatpush1.msra.mxu0 %v162
    %328 = vmatprep.subr.mxu0 %v165
    %329 = vmatpush1.msra.mxu0 %v164
    %330 = vmatprep.subr.mxu0 %v167
    %331 = vmatpush1.msra.mxu0 %v166
    %332 = vmatprep.subr.mxu0 %v169
    %333 = vmatpush1.msra.mxu0 %v168
    %334 = vmatprep.subr.mxu0 %v171
    %335 = vmatpush1.msra.mxu0 %v170
    %336 = vmatprep.subr.mxu0 %v173
    %337 = vmatpush1.msra.mxu0 %v172
    %338 = vmatprep.subr.mxu0 %v175
    %339 = vmatpush1.msra.mxu0 %v174
    %340 = vmatprep.subr.mxu0 %v177
    %341 = vmatpush1.msra.mxu0 %v176
    %342 = vmatprep.subr.mxu0 %v179
    %343 = vmatpush1.msra.mxu0 %v178
    %344 = vmatprep.subr.mxu0 %v181
    %345 = vmatpush1.msra.mxu0 %v180
    %346 = vmatprep.subr.mxu0 0.0
    %347 = vmatpush1.msra.mxu0 0.0
    %348 = vmatprep.subr.mxu0 0.0
    %349 = vmatpush1.msra.mxu0 0.0
    %350 = vmatprep.subr.mxu0 0.0
    %351 = vmatpush1.msra.mxu0 0.0
    %352 = vmatprep.subr.mxu0 0.0
    %353 = vmatpush1.msra.mxu0 0.0
    %354 = vmatprep.subr.mxu0 0.0
    %355 = vmatpush1.msra.mxu0 0.0
    %356 = vmatprep.subr.mxu0 0.0
    %357 = vmatpush1.msra.mxu0 0.0
    %358 = vmatprep.subr.mxu0 0.0
    %359 = vmatpush1.msra.mxu0 0.0
    %360 = vmatprep.subr.mxu0 0.0
    %361 = vmatpush1.msra.mxu0 0.0
    %362 = vmatprep.subr.mxu0 0.0
    %363 = vmatpush1.msra.mxu0 0.0
    %364 = vmatprep.subr.mxu0 0.0
    %365 = vmatpush1.msra.mxu0 0.0
    %366 = vmatprep.subr.mxu0 0.0
    %367 = vmatpush1.msra.mxu0 0.0
    %368 = vmatprep.subr.mxu0 0.0
    %369 = vmatpush1.msra.mxu0 0.0
    %370 = vmatprep.mubr.f32.mxu0 %v262
    %371 = vmatmul.mubr.f32.gmra.mrb[0].mxu0 %v182
    %v372 = vpop.f32.mrb[0].mxu0
    %v373 = vadd.f32 0.0, %v372
    %v374 = vpop.f32.mrb[0].mxu0
    %v375 = vadd.f32 0.0, %v374
    %376 = vmatprep.mubr.f32.mxu0 %v265
    %377 = vmatmul.mubr.f32.gmra.mrb[0].mxu0 %v184
    %v378 = vpop.f32.mrb[0].mxu0
    %v379 = vadd.f32 0.0, %v378
    %v380 = vpop.f32.mrb[0].mxu0
    %v381 = vadd.f32 0.0, %v380
    %382 = vmatprep.mubr.f32.mxu0 %v268
    %383 = vmatmul.mubr.f32.gmra.mrb[0].mxu0 %v186
    %v384 = vpop.f32.mrb[0].mxu0
    %v385 = vadd.f32 0.0, %v384
    %v386 = vpop.f32.mrb[0].mxu0
    %v387 = vadd.f32 0.0, %v386
    %388 = vmatprep.mubr.f32.mxu0 %v271
    %389 = vmatmul.mubr.f32.gmra.mrb[0].mxu0 %v188
    %v390 = vpop.f32.mrb[0].mxu0
    %v391 = vadd.f32 0.0, %v390
    %v392 = vpop.f32.mrb[0].mxu0
    %v393 = vadd.f32 0.0, %v392
    %394 = vmatprep.mubr.f32.mxu0 %v274
    %395 = vmatmul.mubr.f32.gmra.mrb[0].mxu0 %v190
    %v396 = vpop.f32.mrb[0].mxu0
    %v397 = vadd.f32 0.0, %v396
    %v398 = vpop.f32.mrb[0].mxu0
    %v399 = vadd.f32 0.0, %v398
    %400 = vmatprep.mubr.f32.mxu0 %v277
    %401 = vmatmul.mubr.f32.gmra.mrb[0].mxu0 %v192
    %v402 = vpop.f32.mrb[0].mxu0
    %v403 = vadd.f32 0.0, %v402
    %v404 = vpop.f32.mrb[0].mxu0
    %v405 = vadd.f32 0.0, %v404
    %406 = vmatprep.mubr.f32.mxu0 %v280
    %407 = vmatmul.mubr.f32.gmra.mrb[0].mxu0 %v194
    %v408 = vpop.f32.mrb[0].mxu0
    %v409 = vadd.f32 0.0, %v408
    %v410 = vpop.f32.mrb[0].mxu0
    %v411 = vadd.f32 0.0, %v410
    %412 = vmatprep.mubr.f32.mxu0 %v283
    %413 = vmatmul.mubr.f32.gmra.mrb[0].mxu0 %v196
    %v414 = vpop.f32.mrb[0].mxu0
    %v415 = vadd.f32 0.0, %v414
    %v416 = vpop.f32.mrb[0].mxu0
    %v417 = vadd.f32 0.0, %v416
    %418 = vmatprep.mubr.f32.mxu0 %v286
    %419 = vmatmul.mubr.f32.gmra.mrb[0].mxu0 %v198
    %v420 = vpop.f32.mrb[0].mxu0
    %v421 = vadd.f32 0.0, %v420
    %v422 = vpop.f32.mrb[0].mxu0
    %v423 = vadd.f32 0.0, %v422
    %424 = vmatprep.mubr.f32.mxu0 %v289
    %425 = vmatmul.mubr.f32.gmra.mrb[0].mxu0 %v200
    %v426 = vpop.f32.mrb[0].mxu0
    %v427 = vadd.f32 0.0, %v426
    %v428 = vpop.f32.mrb[0].mxu0
    %v429 = vadd.f32 0.0, %v428
    %430 = vmatprep.mubr.f32.mxu0 %v292
    %431 = vmatmul.mubr.f32.gmra.mrb[0].mxu0 %v202
    %v432 = vpop.f32.mrb[0].mxu0
    %v433 = vadd.f32 0.0, %v432
    %v434 = vpop.f32.mrb[0].mxu0
    %v435 = vadd.f32 0.0, %v434
    %436 = vmatprep.mubr.f32.mxu0 %v295
    %437 = vmatmul.mubr.f32.gmra.mrb[0].mxu0 %v204
    %v438 = vpop.f32.mrb[0].mxu0
    %v439 = vadd.f32 0.0, %v438
    %v440 = vpop.f32.mrb[0].mxu0
    %v441 = vadd.f32 0.0, %v440
    %442 = vmatprep.mubr.f32.mxu0 %v298
    %443 = vmatmul.mubr.f32.gmra.mrb[0].mxu0 %v206
    %v444 = vpop.f32.mrb[0].mxu0
    %v445 = vadd.f32 0.0, %v444
    %v446 = vpop.f32.mrb[0].mxu0
    %v447 = vadd.f32 0.0, %v446
    %448 = vmatprep.mubr.f32.mxu0 %v301
    %449 = vmatmul.mubr.f32.gmra.mrb[0].mxu0 %v208
    %v450 = vpop.f32.mrb[0].mxu0
    %v451 = vadd.f32 0.0, %v450
    %v452 = vpop.f32.mrb[0].mxu0
    %v453 = vadd.f32 0.0, %v452
    %454 = vmatprep.mubr.f32.mxu0 %v304
    %455 = vmatmul.mubr.f32.gmra.mrb[0].mxu0 %v210
    %v456 = vpop.f32.mrb[0].mxu0
    %v457 = vadd.f32 0.0, %v456
    %v458 = vpop.f32.mrb[0].mxu0
    %v459 = vadd.f32 0.0, %v458
    %460 = vdwg.mxu0
    %v462 = vsel %vm110, %v375, 0
    %v465 = vsel %vm110, %v381, 0
    %v468 = vsel %vm110, %v387, 0
    %v471 = vsel %vm110, %v393, 0
    %v474 = vsel %vm110, %v399, 0
    %v477 = vsel %vm110, %v405, 0
    %v480 = vsel %vm110, %v411, 0
    %v483 = vsel %vm110, %v417, 0
    %v486 = vsel %vm110, %v423, 0
    %v489 = vsel %vm110, %v429, 0
    %v492 = vsel %vm110, %v435, 0
    %v495 = vsel %vm110, %v441, 0
    %v498 = vsel %vm110, %v447, 0
    %v501 = vsel %vm110, %v453, 0
    %v504 = vsel %vm110, %v459, 0
    %506 = vmatprep.subr.mxu0 %v213
    %507 = vmatpush1.msra.mxu0 %v212
    %508 = vmatprep.subr.mxu0 %v215
    %509 = vmatpush1.msra.mxu0 %v214
    %510 = vmatprep.subr.mxu0 %v217
    %511 = vmatpush1.msra.mxu0 %v216
    %512 = vmatprep.subr.mxu0 %v219
    %513 = vmatpush1.msra.mxu0 %v218
    %514 = vmatprep.subr.mxu0 %v221
    %515 = vmatpush1.msra.mxu0 %v220
    %516 = vmatprep.subr.mxu0 %v223
    %517 = vmatpush1.msra.mxu0 %v222
    %518 = vmatprep.subr.mxu0 %v225
    %519 = vmatpush1.msra.mxu0 %v224
    %520 = vmatprep.subr.mxu0 %v227
    %521 = vmatpush1.msra.mxu0 %v226
    %522 = vmatprep.subr.mxu0 %v229
    %523 = vmatpush1.msra.mxu0 %v228
    %524 = vmatprep.subr.mxu0 %v231
    %525 = vmatpush1.msra.mxu0 %v230
    %526 = vmatprep.subr.mxu0 %v233
    %527 = vmatpush1.msra.mxu0 %v232
    %528 = vmatprep.subr.mxu0 %v235
    %529 = vmatpush1.msra.mxu0 %v234
    %530 = vmatprep.subr.mxu0 %v237
    %531 = vmatpush1.msra.mxu0 %v236
    %532 = vmatprep.subr.mxu0 %v239
    %533 = vmatpush1.msra.mxu0 %v238
    %534 = vmatprep.subr.mxu0 %v241
    %535 = vmatpush1.msra.mxu0 %v240
    %536 = vmatprep.subr.mxu0 %v243
    %537 = vmatpush1.msra.mxu0 %v242
    %538 = vmatprep.subr.mxu0 %v245
    %539 = vmatpush1.msra.mxu0 %v244
    %540 = vmatprep.subr.mxu0 %v247
    %541 = vmatpush1.msra.mxu0 %v246
    %542 = vmatprep.subr.mxu0 %v249
    %543 = vmatpush1.msra.mxu0 %v248
    %544 = vmatprep.subr.mxu0 %v251
    %545 = vmatpush1.msra.mxu0 %v250
    %546 = vmatprep.subr.mxu0 %v253
    %547 = vmatpush1.msra.mxu0 %v252
    %548 = vmatprep.subr.mxu0 %v255
    %549 = vmatpush1.msra.mxu0 %v254
    %550 = vmatprep.subr.mxu0 %v257
    %551 = vmatpush1.msra.mxu0 %v256
    %552 = vmatprep.subr.mxu0 %v259
    %553 = vmatpush1.msra.mxu0 %v258
    %554 = vmatprep.subr.mxu0 0.0
    %555 = vmatpush1.msra.mxu0 0.0
    %556 = vmatprep.subr.mxu0 0.0
    %557 = vmatpush1.msra.mxu0 0.0
    %558 = vmatprep.subr.mxu0 0.0
    %559 = vmatpush1.msra.mxu0 0.0
    %560 = vmatprep.subr.mxu0 0.0
    %561 = vmatpush1.msra.mxu0 0.0
    %562 = vmatprep.subr.mxu0 0.0
    %563 = vmatpush1.msra.mxu0 0.0
    %564 = vmatprep.subr.mxu0 0.0
    %565 = vmatpush1.msra.mxu0 0.0
    %566 = vmatprep.subr.mxu0 0.0
    %567 = vmatpush1.msra.mxu0 0.0
    %568 = vmatprep.subr.mxu0 0.0
    %569 = vmatpush1.msra.mxu0 0.0
    %570 = vmatprep.mubr.f32.mxu0 %v462
    %571 = vmatmul.mubr.f32.gmra.mrb[0].mxu0 %v373
    %v572 = vpop.f32.mrb[0].mxu0
    %v573 = vadd.f32 0.0, %v572
    %v574 = vpop.f32.mrb[0].mxu0
    %v575 = vadd.f32 0.0, %v574
    %576 = vmatprep.mubr.f32.mxu0 %v465
    %577 = vmatmul.mubr.f32.gmra.mrb[0].mxu0 %v379
    %v578 = vpop.f32.mrb[0].mxu0
    %v579 = vadd.f32 0.0, %v578
    %v580 = vpop.f32.mrb[0].mxu0
    %v581 = vadd.f32 0.0, %v580
    %582 = vmatprep.mubr.f32.mxu0 %v468
    %583 = vmatmul.mubr.f32.gmra.mrb[0].mxu0 %v385
    %v584 = vpop.f32.mrb[0].mxu0
    %v585 = vadd.f32 0.0, %v584
    %v586 = vpop.f32.mrb[0].mxu0
    %v587 = vadd.f32 0.0, %v586
    %588 = vmatprep.mubr.f32.mxu0 %v471
    %589 = vmatmul.mubr.f32.gmra.mrb[0].mxu0 %v391
    %v590 = vpop.f32.mrb[0].mxu0
    %v591 = vadd.f32 0.0, %v590
    %v592 = vpop.f32.mrb[0].mxu0
    %v593 = vadd.f32 0.0, %v592
    %594 = vmatprep.mubr.f32.mxu0 %v474
    %595 = vmatmul.mubr.f32.gmra.mrb[0].mxu0 %v397
    %v596 = vpop.f32.mrb[0].mxu0
    %v597 = vadd.f32 0.0, %v596
    %v598 = vpop.f32.mrb[0].mxu0
    %v599 = vadd.f32 0.0, %v598
    %600 = vmatprep.mubr.f32.mxu0 %v477
    %601 = vmatmul.mubr.f32.gmra.mrb[0].mxu0 %v403
    %v602 = vpop.f32.mrb[0].mxu0
    %v603 = vadd.f32 0.0, %v602
    %v604 = vpop.f32.mrb[0].mxu0
    %v605 = vadd.f32 0.0, %v604
    %606 = vmatprep.mubr.f32.mxu0 %v480
    %607 = vmatmul.mubr.f32.gmra.mrb[0].mxu0 %v409
    %v608 = vpop.f32.mrb[0].mxu0
    %v609 = vadd.f32 0.0, %v608
    %v610 = vpop.f32.mrb[0].mxu0
    %v611 = vadd.f32 0.0, %v610
    %612 = vmatprep.mubr.f32.mxu0 %v483
    %613 = vmatmul.mubr.f32.gmra.mrb[0].mxu0 %v415
    %v614 = vpop.f32.mrb[0].mxu0
    %v615 = vadd.f32 0.0, %v614
    %v616 = vpop.f32.mrb[0].mxu0
    %v617 = vadd.f32 0.0, %v616
    %618 = vmatprep.mubr.f32.mxu0 %v486
    %619 = vmatmul.mubr.f32.gmra.mrb[0].mxu0 %v421
    %v620 = vpop.f32.mrb[0].mxu0
    %v621 = vadd.f32 0.0, %v620
    %v622 = vpop.f32.mrb[0].mxu0
    %v623 = vadd.f32 0.0, %v622
    %624 = vmatprep.mubr.f32.mxu0 %v489
    %625 = vmatmul.mubr.f32.gmra.mrb[0].mxu0 %v427
    %v626 = vpop.f32.mrb[0].mxu0
    %v627 = vadd.f32 0.0, %v626
    %v628 = vpop.f32.mrb[0].mxu0
    %v629 = vadd.f32 0.0, %v628
    %630 = vmatprep.mubr.f32.mxu0 %v492
    %631 = vmatmul.mubr.f32.gmra.mrb[0].mxu0 %v433
    %v632 = vpop.f32.mrb[0].mxu0
    %v633 = vadd.f32 0.0, %v632
    %v634 = vpop.f32.mrb[0].mxu0
    %v635 = vadd.f32 0.0, %v634
    %636 = vmatprep.mubr.f32.mxu0 %v495
    %637 = vmatmul.mubr.f32.gmra.mrb[0].mxu0 %v439
    %v638 = vpop.f32.mrb[0].mxu0
    %v639 = vadd.f32 0.0, %v638
    %v640 = vpop.f32.mrb[0].mxu0
    %v641 = vadd.f32 0.0, %v640
    %642 = vmatprep.mubr.f32.mxu0 %v498
    %643 = vmatmul.mubr.f32.gmra.mrb[0].mxu0 %v445
    %v644 = vpop.f32.mrb[0].mxu0
    %v645 = vadd.f32 0.0, %v644
    %v646 = vpop.f32.mrb[0].mxu0
    %v647 = vadd.f32 0.0, %v646
    %648 = vmatprep.mubr.f32.mxu0 %v501
    %649 = vmatmul.mubr.f32.gmra.mrb[0].mxu0 %v451
    %v650 = vpop.f32.mrb[0].mxu0
    %v651 = vadd.f32 0.0, %v650
    %v652 = vpop.f32.mrb[0].mxu0
    %v653 = vadd.f32 0.0, %v652
    %654 = vmatprep.mubr.f32.mxu0 %v504
    %655 = vmatmul.mubr.f32.gmra.mrb[0].mxu0 %v457
    %v656 = vpop.f32.mrb[0].mxu0
    %v657 = vadd.f32 0.0, %v656
    %v658 = vpop.f32.mrb[0].mxu0
    %v659 = vadd.f32 0.0, %v658
    %660 = vdwg.mxu0
    %v661 = vmul.f32 %v573, %v573
    %v662 = vmul.f32 %v575, %v575
    %v663 = vmul.f32 %v579, %v579
    %v664 = vmul.f32 %v581, %v581
    %v665 = vmul.f32 %v585, %v585
    %v666 = vmul.f32 %v587, %v587
    %v667 = vmul.f32 %v591, %v591
    %v668 = vmul.f32 %v593, %v593
    %v669 = vmul.f32 %v597, %v597
    %v670 = vmul.f32 %v599, %v599
    %v671 = vmul.f32 %v603, %v603
    %v672 = vmul.f32 %v605, %v605
    %v673 = vmul.f32 %v573, %v591
    %v674 = vmul.f32 %v575, %v593
    %v675 = vmul.f32 %v579, %v597
    %v676 = vmul.f32 %v581, %v599
    %v677 = vmul.f32 %v585, %v603
    %v678 = vmul.f32 %v587, %v605
    %v679 = vsub.f32 %v645, %v673
    %v680 = vsub.f32 %v647, %v674
    %v681 = vsub.f32 %v651, %v675
    %v682 = vsub.f32 %v653, %v676
    %v683 = vsub.f32 %v657, %v677
    %v684 = vsub.f32 %v659, %v678
    %v685 = vmul.f32 %v679, 2.0
    %v686 = vmul.f32 %v680, 2.0
    %v687 = vmul.f32 %v681, 2.0
    %v688 = vmul.f32 %v682, 2.0
    %v689 = vmul.f32 %v683, 2.0
    %v690 = vmul.f32 %v684, 2.0
    %v691 = vstv %s157
    %v692 = vadd.f32 %v685, %v691
    %v693 = vadd.f32 %v686, %v691
    %v694 = vadd.f32 %v687, %v691
    %v695 = vadd.f32 %v688, %v691
    %v696 = vadd.f32 %v689, %v691
    %v697 = vadd.f32 %v690, %v691
    %v698 = vsub.f32 %v609, %v661
    %v699 = vsub.f32 %v611, %v662
    %v700 = vsub.f32 %v615, %v663
    %v701 = vsub.f32 %v617, %v664
    %v702 = vsub.f32 %v621, %v665
    %v703 = vsub.f32 %v623, %v666
    %v704 = vsub.f32 %v627, %v667
    %v705 = vsub.f32 %v629, %v668
    %v706 = vsub.f32 %v633, %v669
    %v707 = vsub.f32 %v635, %v670
    %v708 = vsub.f32 %v639, %v671
    %v709 = vsub.f32 %v641, %v672
    %v710 = vadd.f32 %v698, %v704
    %v711 = vadd.f32 %v699, %v705
    %v712 = vadd.f32 %v700, %v706
    %v713 = vadd.f32 %v701, %v707
    %v714 = vadd.f32 %v702, %v708
    %v715 = vadd.f32 %v703, %v709
    %v716 = vadd.f32 %v710, %v691
    %v717 = vadd.f32 %v711, %v691
    %v718 = vadd.f32 %v712, %v691
    %v719 = vadd.f32 %v713, %v691
    %v720 = vadd.f32 %v714, %v691
    %v721 = vadd.f32 %v715, %v691
    %v722 = vrcp.pop %v716
    %v723 = vrcp.pop %v717
    %v724 = vrcp.pop %v718
    %v725 = vrcp.pop %v719
    %v726 = vrcp.pop %v720
    %v727 = vrcp.pop %v721
    %v728 = vmul.f32 %v692, %v722
    %v729 = vmul.f32 %v693, %v723
    %v730 = vmul.f32 %v694, %v724
    %v731 = vmul.f32 %v695, %v725
    %v732 = vmul.f32 %v696, %v726
    %v733 = vmul.f32 %v697, %v727
    %vm734 = vcmask 31744
    %v735 = vsel %vm734, %v729, 0.0
    %v736 = vadd.f32 %v728, %v735
    %v737 = vadd.f32 %v736, %v730
    %v738 = vsel %vm734, %v731, 0.0
    %v739 = vadd.f32 %v737, %v738
    %vm740 = vcmask 1045504
    %v741 = vsel %vm740, %v732, 0.0
    %v742 = vadd.f32 %v739, %v741
    %vm743 = vcmask 29696
    %v744 = vsel %vm743, %v733, 0.0
    %v745 = vadd.f32 %v742, %v744
    %746 = vadd.xlane.f32.xlu0 %v745
    %v747 = vpop.xlane.xlu0 %746
    %v748 = vrot.slane %v747, 4
    %v749 = vadd.f32 %v747, %v748
    %v750 = vrot.slane %v749, 2
    %v751 = vadd.f32 %v749, %v750
    %v752 = vrot.slane %v751, 1
    %v753 = vadd.f32 %v751, %v752
    %s754 = vtos %v753
    %s755 = smul.f32 %s754, 0.00034435262
    %s756 = sadd.f32 %s755, 1.0
    %s757 = smul.f32 %s756, 0.5
    %v758 = vstv %s757
    %v759 = vlog2.pop %v758
    %v760 = vmul.f32 %v759, 0.6931472
    %v761 = vmul.f32 %v760, 0.0448
    %v762 = vadd.f32 %v761, 0.0
    %v763 = vld [vmem:[%s4] sm:$0xff]
    %v764 = vld [vmem:[%s4 + $0x8] sm:$0xff]
    %v765 = vld [vmem:[%s4 + $0x10] sm:$0xff]
    %v766 = vld [vmem:[%s4 + $0x18] sm:$0xff]
    %v767 = vld [vmem:[%s5] sm:$0xff]
    %v768 = vld [vmem:[%s5 + $0x8] sm:$0xff]
    %v769 = vld [vmem:[%s5 + $0x10] sm:$0xff]
    %v770 = vld [vmem:[%s5 + $0x18] sm:$0xff]
    %v771 = vld [vmem:[%s5 + $0x20] sm:$0xff]
    %v772 = vld [vmem:[%s5 + $0x28] sm:$0xff]
    %v773 = vld [vmem:[%s5 + $0x30] sm:$0xff]
    %v774 = vld [vmem:[%s5 + $0x38] sm:$0xff]
    %v775 = vld [vmem:[%s5 + $0x40] sm:$0xff]
    %v776 = vld [vmem:[%s5 + $0x48] sm:$0xff]
    %v777 = vld [vmem:[%s5 + $0x50] sm:$0xff]
    %v778 = vld [vmem:[%s5 + $0x58] sm:$0xff]
    %v779 = vld [vmem:[%s5 + $0x60] sm:$0xff]
    %v780 = vld [vmem:[%s5 + $0x68] sm:$0xff]
    %v781 = vld [vmem:[%s5 + $0x70] sm:$0xff]
    %v782 = vld [vmem:[%s5 + $0x78] sm:$0xff]
    %v783 = vld [vmem:[%s5 + $0x80] sm:$0xff]
    %v784 = vld [vmem:[%s5 + $0x88] sm:$0xff]
    %v785 = vld [vmem:[%s5 + $0x90] sm:$0xff]
    %v786 = vld [vmem:[%s5 + $0x98] sm:$0xff]
    %v787 = vld [vmem:[%s5 + $0xa0] sm:$0xff]
    %v788 = vld [vmem:[%s5 + $0xa8] sm:$0xff]
    %v789 = vld [vmem:[%s5 + $0xb0] sm:$0xff]
    %v790 = vld [vmem:[%s5 + $0xb8] sm:$0xff]
    %v792 = vsel %vm110, %v763, 0
    %v795 = vsel %vm110, %v764, 0
    %v798 = vsel %vm110, %v765, 0
    %v801 = vsel %vm110, %v766, 0
    %803 = vmatprep.subr.mxu0 %v95
    %804 = vmatpush1.msra.mxu0 %v94
    %805 = vmatprep.subr.mxu0 %v97
    %806 = vmatpush1.msra.mxu0 %v96
    %807 = vmatprep.subr.mxu0 %v99
    %808 = vmatpush1.msra.mxu0 %v98
    %809 = vmatprep.subr.mxu0 %v101
    %810 = vmatpush1.msra.mxu0 %v100
    %811 = vmatprep.subr.mxu0 %v103
    %812 = vmatpush1.msra.mxu0 %v102
    %813 = vmatprep.subr.mxu0 %v105
    %814 = vmatpush1.msra.mxu0 %v104
    %815 = vmatprep.subr.mxu0 %v107
    %816 = vmatpush1.msra.mxu0 %v106
    %817 = vmatprep.subr.mxu0 %v109
    %818 = vmatpush1.msra.mxu0 %v108
    %819 = vmatprep.subr.mxu0 0.0
    %820 = vmatpush1.msra.mxu0 0.0
    %821 = vmatprep.subr.mxu0 0.0
    %822 = vmatpush1.msra.mxu0 0.0
    %823 = vmatprep.subr.mxu0 0.0
    %824 = vmatpush1.msra.mxu0 0.0
    %825 = vmatprep.subr.mxu0 0.0
    %826 = vmatpush1.msra.mxu0 0.0
    %827 = vmatprep.subr.mxu0 0.0
    %828 = vmatpush1.msra.mxu0 0.0
    %829 = vmatprep.subr.mxu0 0.0
    %830 = vmatpush1.msra.mxu0 0.0
    %831 = vmatprep.subr.mxu0 0.0
    %832 = vmatpush1.msra.mxu0 0.0
    %833 = vmatprep.subr.mxu0 0.0
    %834 = vmatpush1.msra.mxu0 0.0
    %835 = vmatprep.subr.mxu0 0.0
    %836 = vmatpush1.msra.mxu0 0.0
    %837 = vmatprep.subr.mxu0 0.0
    %838 = vmatpush1.msra.mxu0 0.0
    %839 = vmatprep.subr.mxu0 0.0
    %840 = vmatpush1.msra.mxu0 0.0
    %841 = vmatprep.subr.mxu0 0.0
    %842 = vmatpush1.msra.mxu0 0.0
    %843 = vmatprep.subr.mxu0 0.0
    %844 = vmatpush1.msra.mxu0 0.0
    %845 = vmatprep.subr.mxu0 0.0
    %846 = vmatpush1.msra.mxu0 0.0
    %847 = vmatprep.subr.mxu0 0.0
    %848 = vmatpush1.msra.mxu0 0.0
    %849 = vmatprep.subr.mxu0 0.0
    %850 = vmatpush1.msra.mxu0 0.0
    %851 = vmatprep.subr.mxu0 0.0
    %852 = vmatpush1.msra.mxu0 0.0
    %853 = vmatprep.subr.mxu0 0.0
    %854 = vmatpush1.msra.mxu0 0.0
    %855 = vmatprep.subr.mxu0 0.0
    %856 = vmatpush1.msra.mxu0 0.0
    %857 = vmatprep.subr.mxu0 0.0
    %858 = vmatpush1.msra.mxu0 0.0
    %859 = vmatprep.subr.mxu0 0.0
    %860 = vmatpush1.msra.mxu0 0.0
    %861 = vmatprep.subr.mxu0 0.0
    %862 = vmatpush1.msra.mxu0 0.0
    %863 = vmatprep.subr.mxu0 0.0
    %864 = vmatpush1.msra.mxu0 0.0
    %865 = vmatprep.subr.mxu0 0.0
    %866 = vmatpush1.msra.mxu0 0.0
    %867 = vmatprep.mubr.f32.mxu0 0.0
    %868 = vmatmul.mubr.f32.gmra.mrb[0].mxu0 %v792
    %v869 = vpop.f32.mrb[0].mxu0
    %v870 = vadd.f32 0.0, %v869
    %v871 = vpop.f32.mrb[0].mxu0
    %v872 = vadd.f32 0.0, %v871
    %873 = vmatprep.mubr.f32.mxu0 0.0
    %874 = vmatmul.mubr.f32.gmra.mrb[0].mxu0 %v795
    %v875 = vpop.f32.mrb[0].mxu0
    %v876 = vadd.f32 0.0, %v875
    %v877 = vpop.f32.mrb[0].mxu0
    %v878 = vadd.f32 0.0, %v877
    %879 = vmatprep.mubr.f32.mxu0 0.0
    %880 = vmatmul.mubr.f32.gmra.mrb[0].mxu0 %v798
    %v881 = vpop.f32.mrb[0].mxu0
    %v882 = vadd.f32 0.0, %v881
    %v883 = vpop.f32.mrb[0].mxu0
    %v884 = vadd.f32 0.0, %v883
    %885 = vmatprep.mubr.f32.mxu0 0.0
    %886 = vmatmul.mubr.f32.gmra.mrb[0].mxu0 %v801
    %v887 = vpop.f32.mrb[0].mxu0
    %v888 = vadd.f32 0.0, %v887
    %v889 = vpop.f32.mrb[0].mxu0
    %v890 = vadd.f32 0.0, %v889
    %891 = vdwg.mxu0
    %v893 = vsel %vm110, %v872, 0
    %v896 = vsel %vm110, %v878, 0
    %v899 = vsel %vm110, %v884, 0
    %v902 = vsel %vm110, %v890, 0
    %904 = vmatprep.subr.mxu0 0.0
    %905 = vmatpush1.msra.mxu0 %v767
    %906 = vmatprep.subr.mxu0 0.0
    %907 = vmatpush1.msra.mxu0 %v768
    %908 = vmatprep.subr.mxu0 0.0
    %909 = vmatpush1.msra.mxu0 %v769
    %910 = vmatprep.subr.mxu0 0.0
    %911 = vmatpush1.msra.mxu0 %v770
    %912 = vmatprep.subr.mxu0 0.0
    %913 = vmatpush1.msra.mxu0 %v771
    %914 = vmatprep.subr.mxu0 0.0
    %915 = vmatpush1.msra.mxu0 %v772
    %916 = vmatprep.subr.mxu0 0.0
    %917 = vmatpush1.msra.mxu0 %v773
    %918 = vmatprep.subr.mxu0 0.0
    %919 = vmatpush1.msra.mxu0 %v774
    %920 = vmatprep.subr.mxu0 0.0
    %921 = vmatpush1.msra.mxu0 %v775
    %922 = vmatprep.subr.mxu0 0.0
    %923 = vmatpush1.msra.mxu0 %v776
    %924 = vmatprep.subr.mxu0 0.0
    %925 = vmatpush1.msra.mxu0 %v777
    %926 = vmatprep.subr.mxu0 0.0
    %927 = vmatpush1.msra.mxu0 %v778
    %928 = vmatprep.subr.mxu0 0.0
    %929 = vmatpush1.msra.mxu0 %v779
    %930 = vmatprep.subr.mxu0 0.0
    %931 = vmatpush1.msra.mxu0 %v780
    %932 = vmatprep.subr.mxu0 0.0
    %933 = vmatpush1.msra.mxu0 %v781
    %934 = vmatprep.subr.mxu0 0.0
    %935 = vmatpush1.msra.mxu0 %v782
    %936 = vmatprep.subr.mxu0 0.0
    %937 = vmatpush1.msra.mxu0 %v783
    %938 = vmatprep.subr.mxu0 0.0
    %939 = vmatpush1.msra.mxu0 %v784
    %940 = vmatprep.subr.mxu0 0.0
    %941 = vmatpush1.msra.mxu0 %v785
    %942 = vmatprep.subr.mxu0 0.0
    %943 = vmatpush1.msra.mxu0 %v786
    %944 = vmatprep.subr.mxu0 0.0
    %945 = vmatpush1.msra.mxu0 %v787
    %946 = vmatprep.subr.mxu0 0.0
    %947 = vmatpush1.msra.mxu0 %v788
    %948 = vmatprep.subr.mxu0 0.0
    %949 = vmatpush1.msra.mxu0 %v789
    %950 = vmatprep.subr.mxu0 0.0
    %951 = vmatpush1.msra.mxu0 %v790
    %952 = vmatprep.subr.mxu0 0.0
    %953 = vmatpush1.msra.mxu0 0.0
    %954 = vmatprep.subr.mxu0 0.0
    %955 = vmatpush1.msra.mxu0 0.0
    %956 = vmatprep.subr.mxu0 0.0
    %957 = vmatpush1.msra.mxu0 0.0
    %958 = vmatprep.subr.mxu0 0.0
    %959 = vmatpush1.msra.mxu0 0.0
    %960 = vmatprep.subr.mxu0 0.0
    %961 = vmatpush1.msra.mxu0 0.0
    %962 = vmatprep.subr.mxu0 0.0
    %963 = vmatpush1.msra.mxu0 0.0
    %964 = vmatprep.subr.mxu0 0.0
    %965 = vmatpush1.msra.mxu0 0.0
    %966 = vmatprep.subr.mxu0 0.0
    %967 = vmatpush1.msra.mxu0 0.0
    %968 = vmatprep.mubr.f32.mxu0 %v893
    %969 = vmatmul.mubr.f32.gmra.mrb[0].mxu0 %v870
    %v970 = vpop.f32.mrb[0].mxu0
    %v971 = vadd.f32 0.0, %v970
    %v972 = vpop.f32.mrb[0].mxu0
    %973 = vmatprep.mubr.f32.mxu0 %v896
    %974 = vmatmul.mubr.f32.gmra.mrb[0].mxu0 %v876
    %v975 = vpop.f32.mrb[0].mxu0
    %v976 = vadd.f32 0.0, %v975
    %v977 = vpop.f32.mrb[0].mxu0
    %978 = vmatprep.mubr.f32.mxu0 %v899
    %979 = vmatmul.mubr.f32.gmra.mrb[0].mxu0 %v882
    %v980 = vpop.f32.mrb[0].mxu0
    %v981 = vadd.f32 0.0, %v980
    %v982 = vpop.f32.mrb[0].mxu0
    %983 = vmatprep.mubr.f32.mxu0 %v902
    %984 = vmatmul.mubr.f32.gmra.mrb[0].mxu0 %v888
    %v985 = vpop.f32.mrb[0].mxu0
    %v986 = vadd.f32 0.0, %v985
    %v987 = vpop.f32.mrb[0].mxu0
    %988 = vdwg.mxu0
    %vm989 = vcmask 785408
    %v990 = vsel %vm989, %v971, -inf
    %v991 = vsel %vm989, %v976, -inf
    %v992 = vmax.f32 %v990, %v991
    %993 = vmax.xlane.f32.xlu0 %v992
    %v994 = vpop.xlane.xlu0 %993
    %v995 = vrot.slane %v994, 4
    %v996 = vmax.f32 %v994, %v995
    %v997 = vrot.slane %v996, 2
    %v998 = vmax.f32 %v996, %v997
    %v999 = vrot.slane %v998, 1
    %v1000 = vmax.f32 %v998, %v999
    %s1001 = vtos %v1000
    %v1002 = vsel %vm989, %v971, inf
    %v1003 = vsel %vm989, %v976, inf
    %v1004 = vmin.f32 %v1002, %v1003
    %1005 = vmin.xlane.f32.xlu0 %v1004
    %v1006 = vpop.xlane.xlu0 %1005
    %v1007 = vrot.slane %v1006, 4
    %v1008 = vmin.f32 %v1006, %v1007
    %v1009 = vrot.slane %v1008, 2
    %v1010 = vmin.f32 %v1008, %v1009
    %v1011 = vrot.slane %v1010, 1
    %v1012 = vmin.f32 %v1010, %v1011
    %s1013 = vtos %v1012
    %p1014 = scmp.gt.f32.partialorder %s1001, 128.0
    %s1015 = scalar_select %p1014, 255.0, 1.0
    %p1016 = scmp.lt.f32.partialorder %s1013, -0.5
    %s1017 = scalar_select %p1016, -1.0, 0.0
    %s1018 = ssub.f32 %s1015, %s1017
    %s1019 = smul.f32 %s1018, 0.03
    %s1020 = smul.f32 %s1019, %s1019
    %v1021 = vmul.f32 %v971, %v971
    %v1022 = vmul.f32 %v976, %v976
    %v1023 = vmul.f32 %v981, %v981
    %v1024 = vmul.f32 %v986, %v986
    %v1025 = vmul.f32 %v971, %v981
    %v1026 = vmul.f32 %v976, %v986
    %v1027 = vld [vmem:[%s6] sm:$0xff]
    %v1028 = vld [vmem:[%s6 + $0x8] sm:$0xff]
    %v1029 = vld [vmem:[%s6 + $0x10] sm:$0xff]
    %v1030 = vld [vmem:[%s6 + $0x18] sm:$0xff]
    %v1031 = vld [vmem:[%s6 + $0x20] sm:$0xff]
    %v1032 = vld [vmem:[%s7] sm:$0xff]
    %v1033 = vld [vmem:[%s7 + $0x8] sm:$0xff]
    %v1034 = vld [vmem:[%s7 + $0x10] sm:$0xff]
    %v1035 = vld [vmem:[%s7 + $0x18] sm:$0xff]
    %v1036 = vld [vmem:[%s7 + $0x20] sm:$0xff]
    %v1037 = vld [vmem:[%s7 + $0x28] sm:$0xff]
    %v1038 = vld [vmem:[%s7 + $0x30] sm:$0xff]
    %v1039 = vld [vmem:[%s7 + $0x38] sm:$0xff]
    %v1040 = vld [vmem:[%s7 + $0x40] sm:$0xff]
    %v1041 = vld [vmem:[%s7 + $0x48] sm:$0xff]
    %v1042 = vld [vmem:[%s7 + $0x50] sm:$0xff]
    %v1043 = vld [vmem:[%s7 + $0x58] sm:$0xff]
    %vm1044 = vcmask 654336
    %v1046 = vsel %vm1044, %v1027, 0
    %v1049 = vsel %vm1044, %v1028, 0
    %v1052 = vsel %vm1044, %v1029, 0
    %v1055 = vsel %vm1044, %v1030, 0
    %v1058 = vsel %vm1044, %v1031, 0
    %1060 = vmatprep.subr.mxu0 0.0
    %1061 = vmatpush1.msra.mxu0 %v971
    %1062 = vmatprep.subr.mxu0 0.0
    %1063 = vmatpush1.msra.mxu0 %v976
    %1064 = vmatprep.subr.mxu0 0.0
    %1065 = vmatpush1.msra.mxu0 %v981
    %1066 = vmatprep.subr.mxu0 0.0
    %1067 = vmatpush1.msra.mxu0 %v986
    %1068 = vmatprep.subr.mxu0 0.0
    %1069 = vmatpush1.msra.mxu0 %v1021
    %1070 = vmatprep.subr.mxu0 0.0
    %1071 = vmatpush1.msra.mxu0 %v1022
    %1072 = vmatprep.subr.mxu0 0.0
    %1073 = vmatpush1.msra.mxu0 %v1023
    %1074 = vmatprep.subr.mxu0 0.0
    %1075 = vmatpush1.msra.mxu0 %v1024
    %1076 = vmatprep.subr.mxu0 0.0
    %1077 = vmatpush1.msra.mxu0 %v1025
    %1078 = vmatprep.subr.mxu0 0.0
    %1079 = vmatpush1.msra.mxu0 %v1026
    %1080 = vmatprep.subr.mxu0 0.0
    %1081 = vmatpush1.msra.mxu0 0.0
    %1082 = vmatprep.subr.mxu0 0.0
    %1083 = vmatpush1.msra.mxu0 0.0
    %1084 = vmatprep.subr.mxu0 0.0
    %1085 = vmatpush1.msra.mxu0 0.0
    %1086 = vmatprep.subr.mxu0 0.0
    %1087 = vmatpush1.msra.mxu0 0.0
    %1088 = vmatprep.subr.mxu0 0.0
    %1089 = vmatpush1.msra.mxu0 0.0
    %1090 = vmatprep.subr.mxu0 0.0
    %1091 = vmatpush1.msra.mxu0 0.0
    %1092 = vmatprep.subr.mxu0 0.0
    %1093 = vmatpush1.msra.mxu0 0.0
    %1094 = vmatprep.subr.mxu0 0.0
    %1095 = vmatpush1.msra.mxu0 0.0
    %1096 = vmatprep.subr.mxu0 0.0
    %1097 = vmatpush1.msra.mxu0 0.0
    %1098 = vmatprep.subr.mxu0 0.0
    %1099 = vmatpush1.msra.mxu0 0.0
    %1100 = vmatprep.subr.mxu0 0.0
    %1101 = vmatpush1.msra.mxu0 0.0
    %1102 = vmatprep.subr.mxu0 0.0
    %1103 = vmatpush1.msra.mxu0 0.0
    %1104 = vmatprep.subr.mxu0 0.0
    %1105 = vmatpush1.msra.mxu0 0.0
    %1106 = vmatprep.subr.mxu0 0.0
    %1107 = vmatpush1.msra.mxu0 0.0
    %1108 = vmatprep.subr.mxu0 0.0
    %1109 = vmatpush1.msra.mxu0 0.0
    %1110 = vmatprep.subr.mxu0 0.0
    %1111 = vmatpush1.msra.mxu0 0.0
    %1112 = vmatprep.subr.mxu0 0.0
    %1113 = vmatpush1.msra.mxu0 0.0
    %1114 = vmatprep.subr.mxu0 0.0
    %1115 = vmatpush1.msra.mxu0 0.0
    %1116 = vmatprep.subr.mxu0 0.0
    %1117 = vmatpush1.msra.mxu0 0.0
    %1118 = vmatprep.subr.mxu0 0.0
    %1119 = vmatpush1.msra.mxu0 0.0
    %1120 = vmatprep.subr.mxu0 0.0
    %1121 = vmatpush1.msra.mxu0 0.0
    %1122 = vmatprep.subr.mxu0 0.0
    %1123 = vmatpush1.msra.mxu0 0.0
    %1124 = vmatprep.mubr.f32.mxu0 0.0
    %1125 = vmatmul.mubr.f32.gmra.mrb[0].mxu0 %v1046
    %v1126 = vpop.f32.mrb[0].mxu0
    %v1127 = vadd.f32 0.0, %v1126
    %v1128 = vpop.f32.mrb[0].mxu0
    %1129 = vmatprep.mubr.f32.mxu0 0.0
    %1130 = vmatmul.mubr.f32.gmra.mrb[0].mxu0 %v1049
    %v1131 = vpop.f32.mrb[0].mxu0
    %v1132 = vadd.f32 0.0, %v1131
    %v1133 = vpop.f32.mrb[0].mxu0
    %1134 = vmatprep.mubr.f32.mxu0 0.0
    %1135 = vmatmul.mubr.f32.gmra.mrb[0].mxu0 %v1052
    %v1136 = vpop.f32.mrb[0].mxu0
    %v1137 = vadd.f32 0.0, %v1136
    %v1138 = vpop.f32.mrb[0].mxu0
    %1139 = vmatprep.mubr.f32.mxu0 0.0
    %1140 = vmatmul.mubr.f32.gmra.mrb[0].mxu0 %v1055
    %v1141 = vpop.f32.mrb[0].mxu0
    %v1142 = vadd.f32 0.0, %v1141
    %v1143 = vpop.f32.mrb[0].mxu0
    %1144 = vmatprep.mubr.f32.mxu0 0.0
    %1145 = vmatmul.mubr.f32.gmra.mrb[0].mxu0 %v1058
    %v1146 = vpop.f32.mrb[0].mxu0
    %v1147 = vadd.f32 0.0, %v1146
    %v1148 = vpop.f32.mrb[0].mxu0
    %1149 = vdwg.mxu0
    %v1151 = vsel %vm989, %v1127, 0
    %v1154 = vsel %vm989, %v1132, 0
    %v1157 = vsel %vm989, %v1137, 0
    %v1160 = vsel %vm989, %v1142, 0
    %v1163 = vsel %vm989, %v1147, 0
    %1165 = vmatprep.subr.mxu0 0.0
    %1166 = vmatpush1.msra.mxu0 %v1032
    %1167 = vmatprep.subr.mxu0 0.0
    %1168 = vmatpush1.msra.mxu0 %v1033
    %1169 = vmatprep.subr.mxu0 0.0
    %1170 = vmatpush1.msra.mxu0 %v1034
    %1171 = vmatprep.subr.mxu0 0.0
    %1172 = vmatpush1.msra.mxu0 %v1035
    %1173 = vmatprep.subr.mxu0 0.0
    %1174 = vmatpush1.msra.mxu0 %v1036
    %1175 = vmatprep.subr.mxu0 0.0
    %1176 = vmatpush1.msra.mxu0 %v1037
    %1177 = vmatprep.subr.mxu0 0.0
    %1178 = vmatpush1.msra.mxu0 %v1038
    %1179 = vmatprep.subr.mxu0 0.0
    %1180 = vmatpush1.msra.mxu0 %v1039
    %1181 = vmatprep.subr.mxu0 0.0
    %1182 = vmatpush1.msra.mxu0 %v1040
    %1183 = vmatprep.subr.mxu0 0.0
    %1184 = vmatpush1.msra.mxu0 %v1041
    %1185 = vmatprep.subr.mxu0 0.0
    %1186 = vmatpush1.msra.mxu0 %v1042
    %1187 = vmatprep.subr.mxu0 0.0
    %1188 = vmatpush1.msra.mxu0 %v1043
    %1189 = vmatprep.subr.mxu0 0.0
    %1190 = vmatpush1.msra.mxu0 0.0
    %1191 = vmatprep.subr.mxu0 0.0
    %1192 = vmatpush1.msra.mxu0 0.0
    %1193 = vmatprep.subr.mxu0 0.0
    %1194 = vmatpush1.msra.mxu0 0.0
    %1195 = vmatprep.subr.mxu0 0.0
    %1196 = vmatpush1.msra.mxu0 0.0
    %1197 = vmatprep.subr.mxu0 0.0
    %1198 = vmatpush1.msra.mxu0 0.0
    %1199 = vmatprep.subr.mxu0 0.0
    %1200 = vmatpush1.msra.mxu0 0.0
    %1201 = vmatprep.subr.mxu0 0.0
    %1202 = vmatpush1.msra.mxu0 0.0
    %1203 = vmatprep.subr.mxu0 0.0
    %1204 = vmatpush1.msra.mxu0 0.0
    %1205 = vmatprep.subr.mxu0 0.0
    %1206 = vmatpush1.msra.mxu0 0.0
    %1207 = vmatprep.subr.mxu0 0.0
    %1208 = vmatpush1.msra.mxu0 0.0
    %1209 = vmatprep.subr.mxu0 0.0
    %1210 = vmatpush1.msra.mxu0 0.0
    %1211 = vmatprep.subr.mxu0 0.0
    %1212 = vmatpush1.msra.mxu0 0.0
    %1213 = vmatprep.subr.mxu0 0.0
    %1214 = vmatpush1.msra.mxu0 0.0
    %1215 = vmatprep.subr.mxu0 0.0
    %1216 = vmatpush1.msra.mxu0 0.0
    %1217 = vmatprep.subr.mxu0 0.0
    %1218 = vmatpush1.msra.mxu0 0.0
    %1219 = vmatprep.subr.mxu0 0.0
    %1220 = vmatpush1.msra.mxu0 0.0
    %1221 = vmatprep.subr.mxu0 0.0
    %1222 = vmatpush1.msra.mxu0 0.0
    %1223 = vmatprep.subr.mxu0 0.0
    %1224 = vmatpush1.msra.mxu0 0.0
    %1225 = vmatprep.subr.mxu0 0.0
    %1226 = vmatpush1.msra.mxu0 0.0
    %1227 = vmatprep.subr.mxu0 0.0
    %1228 = vmatpush1.msra.mxu0 0.0
    %1229 = vmatprep.mubr.f32.mxu0 0.0
    %1230 = vmatmul.mubr.f32.gmra.mrb[0].mxu0 %v1151
    %v1231 = vpop.f32.mrb[0].mxu0
    %v1232 = vadd.f32 0.0, %v1231
    %v1233 = vpop.f32.mrb[0].mxu0
    %1234 = vmatprep.mubr.f32.mxu0 0.0
    %1235 = vmatmul.mubr.f32.gmra.mrb[0].mxu0 %v1154
    %v1236 = vpop.f32.mrb[0].mxu0
    %v1237 = vadd.f32 0.0, %v1236
    %v1238 = vpop.f32.mrb[0].mxu0
    %1239 = vmatprep.mubr.f32.mxu0 0.0
    %1240 = vmatmul.mubr.f32.gmra.mrb[0].mxu0 %v1157
    %v1241 = vpop.f32.mrb[0].mxu0
    %v1242 = vadd.f32 0.0, %v1241
    %v1243 = vpop.f32.mrb[0].mxu0
    %1244 = vmatprep.mubr.f32.mxu0 0.0
    %1245 = vmatmul.mubr.f32.gmra.mrb[0].mxu0 %v1160
    %v1246 = vpop.f32.mrb[0].mxu0
    %v1247 = vadd.f32 0.0, %v1246
    %v1248 = vpop.f32.mrb[0].mxu0
    %1249 = vmatprep.mubr.f32.mxu0 0.0
    %1250 = vmatmul.mubr.f32.gmra.mrb[0].mxu0 %v1163
    %v1251 = vpop.f32.mrb[0].mxu0
    %v1252 = vadd.f32 0.0, %v1251
    %v1253 = vpop.f32.mrb[0].mxu0
    %1254 = vdwg.mxu0
    %v1255 = vmul.f32 %v1232, %v1232
    %v1256 = vmul.f32 %v1237, %v1237
    %v1257 = vmul.f32 %v1232, %v1237
    %v1258 = vsub.f32 %v1252, %v1257
    %v1259 = vmul.f32 %v1258, 2.0
    %v1260 = vstv %s1020
    %v1261 = vadd.f32 %v1259, %v1260
    %v1262 = vsub.f32 %v1242, %v1255
    %v1263 = vsub.f32 %v1247, %v1256
    %v1264 = vadd.f32 %v1262, %v1263
    %v1265 = vadd.f32 %v1264, %v1260
    %v1266 = vrcp.pop %v1265
    %v1267 = vmul.f32 %v1261, %v1266
    %vm1268 = vcmask 291840
    %v1269 = vsel %vm1268, %v1267, 0.0
    %1270 = vadd.xlane.f32.xlu0 %v1269
    %v1271 = vpop.xlane.xlu0 %1270
    %v1272 = vrot.slane %v1271, 4
    %v1273 = vadd.f32 %v1271, %v1272
    %v1274 = vrot.slane %v1273, 2
    %v1275 = vadd.f32 %v1273, %v1274
    %v1276 = vrot.slane %v1275, 1
    %v1277 = vadd.f32 %v1275, %v1276
    %s1278 = vtos %v1277
    %s1279 = smul.f32 %s1278, 0.0046296297
    %s1280 = sadd.f32 %s1279, 1.0
    %s1281 = smul.f32 %s1280, 0.5
    %v1282 = vstv %s1281
    %v1283 = vlog2.pop %v1282
    %v1284 = vmul.f32 %v1283, 0.6931472
    %v1285 = vmul.f32 %v1284, 0.2856
    %v1286 = vadd.f32 %v762, %v1285
    %v1287 = vld [vmem:[#allocation2] sm:$0xff]
    %v1288 = vld [vmem:[#allocation2 + $0x8] sm:$0xff]
    %v1289 = vld [vmem:[%s9] sm:$0xff]
    %v1290 = vld [vmem:[%s9 + $0x8] sm:$0xff]
    %v1291 = vld [vmem:[%s9 + $0x10] sm:$0xff]
    %v1292 = vld [vmem:[%s9 + $0x18] sm:$0xff]
    %v1293 = vld [vmem:[%s9 + $0x20] sm:$0xff]
    %v1294 = vld [vmem:[%s9 + $0x28] sm:$0xff]
    %v1295 = vld [vmem:[%s9 + $0x30] sm:$0xff]
    %v1296 = vld [vmem:[%s9 + $0x38] sm:$0xff]
    %v1297 = vld [vmem:[%s9 + $0x40] sm:$0xff]
    %v1298 = vld [vmem:[%s9 + $0x48] sm:$0xff]
    %v1299 = vld [vmem:[%s9 + $0x50] sm:$0xff]
    %v1300 = vld [vmem:[%s9 + $0x58] sm:$0xff]
    %v1302 = vsel %vm260, %v1287, 0
    %v1305 = vsel %vm260, %v1288, 0
    %1307 = vmatprep.subr.mxu0 0.0
    %1308 = vmatpush1.msra.mxu0 %v971
    %1309 = vmatprep.subr.mxu0 0.0
    %1310 = vmatpush1.msra.mxu0 %v976
    %1311 = vmatprep.subr.mxu0 0.0
    %1312 = vmatpush1.msra.mxu0 %v981
    %1313 = vmatprep.subr.mxu0 0.0
    %1314 = vmatpush1.msra.mxu0 %v986
    %1315 = vmatprep.subr.mxu0 0.0
    %1316 = vmatpush1.msra.mxu0 0.0
    %1317 = vmatprep.subr.mxu0 0.0
    %1318 = vmatpush1.msra.mxu0 0.0
    %1319 = vmatprep.subr.mxu0 0.0
    %1320 = vmatpush1.msra.mxu0 0.0
    %1321 = vmatprep.subr.mxu0 0.0
    %1322 = vmatpush1.msra.mxu0 0.0
    %1323 = vmatprep.subr.mxu0 0.0
    %1324 = vmatpush1.msra.mxu0 0.0
    %1325 = vmatprep.subr.mxu0 0.0
    %1326 = vmatpush1.msra.mxu0 0.0
    %1327 = vmatprep.subr.mxu0 0.0
    %1328 = vmatpush1.msra.mxu0 0.0
    %1329 = vmatprep.subr.mxu0 0.0
    %1330 = vmatpush1.msra.mxu0 0.0
    %1331 = vmatprep.subr.mxu0 0.0
    %1332 = vmatpush1.msra.mxu0 0.0
    %1333 = vmatprep.subr.mxu0 0.0
    %1334 = vmatpush1.msra.mxu0 0.0
    %1335 = vmatprep.subr.mxu0 0.0
    %1336 = vmatpush1.msra.mxu0 0.0
    %1337 = vmatprep.subr.mxu0 0.0
    %1338 = vmatpush1.msra.mxu0 0.0
    %1339 = vmatprep.subr.mxu0 0.0
    %1340 = vmatpush1.msra.mxu0 0.0
    %1341 = vmatprep.subr.mxu0 0.0
    %1342 = vmatpush1.msra.mxu0 0.0
    %1343 = vmatprep.subr.mxu0 0.0
    %1344 = vmatpush1.msra.mxu0 0.0
    %1345 = vmatprep.subr.mxu0 0.0
    %1346 = vmatpush1.msra.mxu0 0.0
    %1347 = vmatprep.subr.mxu0 0.0
    %1348 = vmatpush1.msra.mxu0 0.0
    %1349 = vmatprep.subr.mxu0 0.0
    %1350 = vmatpush1.msra.mxu0 0.0
    %1351 = vmatprep.subr.mxu0 0.0
    %1352 = vmatpush1.msra.mxu0 0.0
    %1353 = vmatprep.subr.mxu0 0.0
    %1354 = vmatpush1.msra.mxu0 0.0
    %1355 = vmatprep.subr.mxu0 0.0
    %1356 = vmatpush1.msra.mxu0 0.0
    %1357 = vmatprep.subr.mxu0 0.0
    %1358 = vmatpush1.msra.mxu0 0.0
    %1359 = vmatprep.subr.mxu0 0.0
    %1360 = vmatpush1.msra.mxu0 0.0
    %1361 = vmatprep.subr.mxu0 0.0
    %1362 = vmatpush1.msra.mxu0 0.0
    %1363 = vmatprep.subr.mxu0 0.0
    %1364 = vmatpush1.msra.mxu0 0.0
    %1365 = vmatprep.subr.mxu0 0.0
    %1366 = vmatpush1.msra.mxu0 0.0
    %1367 = vmatprep.subr.mxu0 0.0
    %1368 = vmatpush1.msra.mxu0 0.0
    %1369 = vmatprep.subr.mxu0 0.0
    %1370 = vmatpush1.msra.mxu0 0.0
    %1371 = vmatprep.mubr.f32.mxu0 0.0
    %1372 = vmatmul.mubr.f32.gmra.mrb[0].mxu0 %v1302
    %v1373 = vpop.f32.mrb[0].mxu0
    %v1374 = vadd.f32 0.0, %v1373
    %v1375 = vpop.f32.mrb[0].mxu0
    %1376 = vmatprep.mubr.f32.mxu0 0.0
    %1377 = vmatmul.mubr.f32.gmra.mrb[0].mxu0 %v1305
    %v1378 = vpop.f32.mrb[0].mxu0
    %v1379 = vadd.f32 0.0, %v1378
    %v1380 = vpop.f32.mrb[0].mxu0
    %1381 = vdwg.mxu0
    %v1383 = vsel %vm989, %v1374, 0
    %v1386 = vsel %vm989, %v1379, 0
    %1388 = vmatprep.subr.mxu0 0.0
    %1389 = vmatpush1.msra.mxu0 %v1289
    %1390 = vmatprep.subr.mxu0 0.0
    %1391 = vmatpush1.msra.mxu0 %v1290
    %1392 = vmatprep.subr.mxu0 0.0
    %1393 = vmatpush1.msra.mxu0 %v1291
    %1394 = vmatprep.subr.mxu0 0.0
    %1395 = vmatpush1.msra.mxu0 %v1292
    %1396 = vmatprep.subr.mxu0 0.0
    %1397 = vmatpush1.msra.mxu0 %v1293
    %1398 = vmatprep.subr.mxu0 0.0
    %1399 = vmatpush1.msra.mxu0 %v1294
    %1400 = vmatprep.subr.mxu0 0.0
    %1401 = vmatpush1.msra.mxu0 %v1295
    %1402 = vmatprep.subr.mxu0 0.0
    %1403 = vmatpush1.msra.mxu0 %v1296
    %1404 = vmatprep.subr.mxu0 0.0
    %1405 = vmatpush1.msra.mxu0 %v1297
    %1406 = vmatprep.subr.mxu0 0.0
    %1407 = vmatpush1.msra.mxu0 %v1298
    %1408 = vmatprep.subr.mxu0 0.0
    %1409 = vmatpush1.msra.mxu0 %v1299
    %1410 = vmatprep.subr.mxu0 0.0
    %1411 = vmatpush1.msra.mxu0 %v1300
    %1412 = vmatprep.subr.mxu0 0.0
    %1413 = vmatpush1.msra.mxu0 0.0
    %1414 = vmatprep.subr.mxu0 0.0
    %1415 = vmatpush1.msra.mxu0 0.0
    %1416 = vmatprep.subr.mxu0 0.0
    %1417 = vmatpush1.msra.mxu0 0.0
    %1418 = vmatprep.subr.mxu0 0.0
    %1419 = vmatpush1.msra.mxu0 0.0
    %1420 = vmatprep.subr.mxu0 0.0
    %1421 = vmatpush1.msra.mxu0 0.0
    %1422 = vmatprep.subr.mxu0 0.0
    %1423 = vmatpush1.msra.mxu0 0.0
    %1424 = vmatprep.subr.mxu0 0.0
    %1425 = vmatpush1.msra.mxu0 0.0
    %1426 = vmatprep.subr.mxu0 0.0
    %1427 = vmatpush1.msra.mxu0 0.0
    %1428 = vmatprep.subr.mxu0 0.0
    %1429 = vmatpush1.msra.mxu0 0.0
    %1430 = vmatprep.subr.mxu0 0.0
    %1431 = vmatpush1.msra.mxu0 0.0
    %1432 = vmatprep.subr.mxu0 0.0
    %1433 = vmatpush1.msra.mxu0 0.0
    %1434 = vmatprep.subr.mxu0 0.0
    %1435 = vmatpush1.msra.mxu0 0.0
    %1436 = vmatprep.subr.mxu0 0.0
    %1437 = vmatpush1.msra.mxu0 0.0
    %1438 = vmatprep.subr.mxu0 0.0
    %1439 = vmatpush1.msra.mxu0 0.0
    %1440 = vmatprep.subr.mxu0 0.0
    %1441 = vmatpush1.msra.mxu0 0.0
    %1442 = vmatprep.subr.mxu0 0.0
    %1443 = vmatpush1.msra.mxu0 0.0
    %1444 = vmatprep.subr.mxu0 0.0
    %1445 = vmatpush1.msra.mxu0 0.0
    %1446 = vmatprep.subr.mxu0 0.0
    %1447 = vmatpush1.msra.mxu0 0.0
    %1448 = vmatprep.subr.mxu0 0.0
    %1449 = vmatpush1.msra.mxu0 0.0
    %1450 = vmatprep.subr.mxu0 0.0
    %1451 = vmatpush1.msra.mxu0 0.0
    %1452 = vmatprep.mubr.f32.mxu0 0.0
    %1453 = vmatmul.mubr.f32.gmra.mrb[0].mxu0 %v1383
    %v1454 = vpop.f32.mrb[0].mxu0
    %v1455 = vadd.f32 0.0, %v1454
    %v1456 = vpop.f32.mrb[0].mxu0
    %1457 = vmatprep.mubr.f32.mxu0 0.0
    %1458 = vmatmul.mubr.f32.gmra.mrb[0].mxu0 %v1386
    %v1459 = vpop.f32.mrb[0].mxu0
    %v1460 = vadd.f32 0.0, %v1459
    %v1461 = vpop.f32.mrb[0].mxu0
    %1462 = vdwg.mxu0
    %vm1463 = vcmask 392192
    %v1464 = vsel %vm1463, %v1455, -inf
    %1465 = vmax.xlane.f32.xlu0 %v1464
    %v1466 = vpop.xlane.xlu0 %1465
    %v1467 = vrot.slane %v1466, 4
    %v1468 = vmax.f32 %v1466, %v1467
    %v1469 = vrot.slane %v1468, 2
    %v1470 = vmax.f32 %v1468, %v1469
    %v1471 = vrot.slane %v1470, 1
    %v1472 = vmax.f32 %v1470, %v1471
    %s1473 = vtos %v1472
    %v1474 = vsel %vm1463, %v1455, inf
    %1475 = vmin.xlane.f32.xlu0 %v1474
    %v1476 = vpop.xlane.xlu0 %1475
    %v1477 = vrot.slane %v1476, 4
    %v1478 = vmin.f32 %v1476, %v1477
    %v1479 = vrot.slane %v1478, 2
    %v1480 = vmin.f32 %v1478, %v1479
    %v1481 = vrot.slane %v1480, 1
    %v1482 = vmin.f32 %v1480, %v1481
    %s1483 = vtos %v1482
    %p1484 = scmp.gt.f32.partialorder %s1473, 128.0
    %s1485 = scalar_select %p1484, 255.0, 1.0
    %p1486 = scmp.lt.f32.partialorder %s1483, -0.5
    %s1487 = scalar_select %p1486, -1.0, 0.0
    %s1488 = ssub.f32 %s1485, %s1487
    %s1489 = smul.f32 %s1488, 0.03
    %s1490 = smul.f32 %s1489, %s1489
    %v1491 = vmul.f32 %v1455, %v1455
    %v1492 = vmul.f32 %v1460, %v1460
    %v1493 = vmul.f32 %v1455, %v1460
    %v1494 = vld [vmem:[%s10] sm:$0xff]
    %v1495 = vld [vmem:[%s10 + $0x8] sm:$0xff]
    %v1496 = vld [vmem:[%s10 + $0x10] sm:$0xff]
    %v1497 = vld [vmem:[%s10 + $0x18] sm:$0xff]
    %v1498 = vld [vmem:[%s10 + $0x20] sm:$0xff]
    %v1499 = vld [vmem:[%s11] sm:$0xff]
    %v1500 = vld [vmem:[%s11 + $0x8] sm:$0xff]
    %v1501 = vld [vmem:[%s11 + $0x10] sm:$0xff]
    %v1502 = vld [vmem:[%s11 + $0x18] sm:$0xff]
    %v1503 = vld [vmem:[%s11 + $0x20] sm:$0xff]
    %v1504 = vld [vmem:[%s11 + $0x28] sm:$0xff]
    %vm1505 = vcmask 326656
    %v1507 = vsel %vm1505, %v1494, 0
    %v1510 = vsel %vm1505, %v1495, 0
    %v1513 = vsel %vm1505, %v1496, 0
    %v1516 = vsel %vm1505, %v1497, 0
    %v1519 = vsel %vm1505, %v1498, 0
    %1521 = vmatprep.subr.mxu0 0.0
    %1522 = vmatpush1.msra.mxu0 %v1455
    %1523 = vmatprep.subr.mxu0 0.0
    %1524 = vmatpush1.msra.mxu0 %v1460
    %1525 = vmatprep.subr.mxu0 0.0
    %1526 = vmatpush1.msra.mxu0 %v1491
    %1527 = vmatprep.subr.mxu0 0.0
    %1528 = vmatpush1.msra.mxu0 %v1492
    %1529 = vmatprep.subr.mxu0 0.0
    %1530 = vmatpush1.msra.mxu0 %v1493
    %1531 = vmatprep.subr.mxu0 0.0
    %1532 = vmatpush1.msra.mxu0 0.0
    %1533 = vmatprep.subr.mxu0 0.0
    %1534 = vmatpush1.msra.mxu0 0.0
    %1535 = vmatprep.subr.mxu0 0.0
    %1536 = vmatpush1.msra.mxu0 0.0
    %1537 = vmatprep.subr.mxu0 0.0
    %1538 = vmatpush1.msra.mxu0 0.0
    %1539 = vmatprep.subr.mxu0 0.0
    %1540 = vmatpush1.msra.mxu0 0.0
    %1541 = vmatprep.subr.mxu0 0.0
    %1542 = vmatpush1.msra.mxu0 0.0
    %1543 = vmatprep.subr.mxu0 0.0
    %1544 = vmatpush1.msra.mxu0 0.0
    %1545 = vmatprep.subr.mxu0 0.0
    %1546 = vmatpush1.msra.mxu0 0.0
    %1547 = vmatprep.subr.mxu0 0.0
    %1548 = vmatpush1.msra.mxu0 0.0
    %1549 = vmatprep.subr.mxu0 0.0
    %1550 = vmatpush1.msra.mxu0 0.0
    %1551 = vmatprep.subr.mxu0 0.0
    %1552 = vmatpush1.msra.mxu0 0.0
    %1553 = vmatprep.subr.mxu0 0.0
    %1554 = vmatpush1.msra.mxu0 0.0
    %1555 = vmatprep.subr.mxu0 0.0
    %1556 = vmatpush1.msra.mxu0 0.0
    %1557 = vmatprep.subr.mxu0 0.0
    %1558 = vmatpush1.msra.mxu0 0.0
    %1559 = vmatprep.subr.mxu0 0.0
    %1560 = vmatpush1.msra.mxu0 0.0
    %1561 = vmatprep.subr.mxu0 0.0
    %1562 = vmatpush1.msra.mxu0 0.0
    %1563 = vmatprep.subr.mxu0 0.0
    %1564 = vmatpush1.msra.mxu0 0.0
    %1565 = vmatprep.subr.mxu0 0.0
    %1566 = vmatpush1.msra.mxu0 0.0
    %1567 = vmatprep.subr.mxu0 0.0
    %1568 = vmatpush1.msra.mxu0 0.0
    %1569 = vmatprep.subr.mxu0 0.0
    %1570 = vmatpush1.msra.mxu0 0.0
    %1571 = vmatprep.subr.mxu0 0.0
    %1572 = vmatpush1.msra.mxu0 0.0
    %1573 = vmatprep.subr.mxu0 0.0
    %1574 = vmatpush1.msra.mxu0 0.0
    %1575 = vmatprep.subr.mxu0 0.0
    %1576 = vmatpush1.msra.mxu0 0.0
    %1577 = vmatprep.subr.mxu0 0.0
    %1578 = vmatpush1.msra.mxu0 0.0
    %1579 = vmatprep.subr.mxu0 0.0
    %1580 = vmatpush1.msra.mxu0 0.0
    %1581 = vmatprep.subr.mxu0 0.0
    %1582 = vmatpush1.msra.mxu0 0.0
    %1583 = vmatprep.subr.mxu0 0.0
    %1584 = vmatpush1.msra.mxu0 0.0
    %1585 = vmatprep.mubr.f32.mxu0 0.0
    %1586 = vmatmul.mubr.f32.gmra.mrb[0].mxu0 %v1507
    %v1587 = vpop.f32.mrb[0].mxu0
    %v1588 = vadd.f32 0.0, %v1587
    %v1589 = vpop.f32.mrb[0].mxu0
    %1590 = vmatprep.mubr.f32.mxu0 0.0
    %1591 = vmatmul.mubr.f32.gmra.mrb[0].mxu0 %v1510
    %v1592 = vpop.f32.mrb[0].mxu0
    %v1593 = vadd.f32 0.0, %v1592
    %v1594 = vpop.f32.mrb[0].mxu0
    %1595 = vmatprep.mubr.f32.mxu0 0.0
    %1596 = vmatmul.mubr.f32.gmra.mrb[0].mxu0 %v1513
    %v1597 = vpop.f32.mrb[0].mxu0
    %v1598 = vadd.f32 0.0, %v1597
    %v1599 = vpop.f32.mrb[0].mxu0
    %1600 = vmatprep.mubr.f32.mxu0 0.0
    %1601 = vmatmul.mubr.f32.gmra.mrb[0].mxu0 %v1516
    %v1602 = vpop.f32.mrb[0].mxu0
    %v1603 = vadd.f32 0.0, %v1602
    %v1604 = vpop.f32.mrb[0].mxu0
    %1605 = vmatprep.mubr.f32.mxu0 0.0
    %1606 = vmatmul.mubr.f32.gmra.mrb[0].mxu0 %v1519
    %v1607 = vpop.f32.mrb[0].mxu0
    %v1608 = vadd.f32 0.0, %v1607
    %v1609 = vpop.f32.mrb[0].mxu0
    %1610 = vdwg.mxu0
    %v1612 = vsel %vm1463, %v1588, 0
    %v1615 = vsel %vm1463, %v1593, 0
    %v1618 = vsel %vm1463, %v1598, 0
    %v1621 = vsel %vm1463, %v1603, 0
    %v1624 = vsel %vm1463, %v1608, 0
    %1626 = vmatprep.subr.mxu0 0.0
    %1627 = vmatpush1.msra.mxu0 %v1499
    %1628 = vmatprep.subr.mxu0 0.0
    %1629 = vmatpush1.msra.mxu0 %v1500
    %1630 = vmatprep.subr.mxu0 0.0
    %1631 = vmatpush1.msra.mxu0 %v1501
    %1632 = vmatprep.subr.mxu0 0.0
    %1633 = vmatpush1.msra.mxu0 %v1502
    %1634 = vmatprep.subr.mxu0 0.0
    %1635 = vmatpush1.msra.mxu0 %v1503
    %1636 = vmatprep.subr.mxu0 0.0
    %1637 = vmatpush1.msra.mxu0 %v1504
    %1638 = vmatprep.subr.mxu0 0.0
    %1639 = vmatpush1.msra.mxu0 0.0
    %1640 = vmatprep.subr.mxu0 0.0
    %1641 = vmatpush1.msra.mxu0 0.0
    %1642 = vmatprep.subr.mxu0 0.0
    %1643 = vmatpush1.msra.mxu0 0.0
    %1644 = vmatprep.subr.mxu0 0.0
    %1645 = vmatpush1.msra.mxu0 0.0
    %1646 = vmatprep.subr.mxu0 0.0
    %1647 = vmatpush1.msra.mxu0 0.0
    %1648 = vmatprep.subr.mxu0 0.0
    %1649 = vmatpush1.msra.mxu0 0.0
    %1650 = vmatprep.subr.mxu0 0.0
    %1651 = vmatpush1.msra.mxu0 0.0
    %1652 = vmatprep.subr.mxu0 0.0
    %1653 = vmatpush1.msra.mxu0 0.0
    %1654 = vmatprep.subr.mxu0 0.0
    %1655 = vmatpush1.msra.mxu0 0.0
    %1656 = vmatprep.subr.mxu0 0.0
    %1657 = vmatpush1.msra.mxu0 0.0
    %1658 = vmatprep.subr.mxu0 0.0
    %1659 = vmatpush1.msra.mxu0 0.0
    %1660 = vmatprep.subr.mxu0 0.0
    %1661 = vmatpush1.msra.mxu0 0.0
    %1662 = vmatprep.subr.mxu0 0.0
    %1663 = vmatpush1.msra.mxu0 0.0
    %1664 = vmatprep.subr.mxu0 0.0
    %1665 = vmatpush1.msra.mxu0 0.0
    %1666 = vmatprep.subr.mxu0 0.0
    %1667 = vmatpush1.msra.mxu0 0.0
    %1668 = vmatprep.subr.mxu0 0.0
    %1669 = vmatpush1.msra.mxu0 0.0
    %1670 = vmatprep.subr.mxu0 0.0
    %1671 = vmatpush1.msra.mxu0 0.0
    %1672 = vmatprep.subr.mxu0 0.0
    %1673 = vmatpush1.msra.mxu0 0.0
    %1674 = vmatprep.subr.mxu0 0.0
    %1675 = vmatpush1.msra.mxu0 0.0
    %1676 = vmatprep.subr.mxu0 0.0
    %1677 = vmatpush1.msra.mxu0 0.0
    %1678 = vmatprep.subr.mxu0 0.0
    %1679 = vmatpush1.msra.mxu0 0.0
    %1680 = vmatprep.subr.mxu0 0.0
    %1681 = vmatpush1.msra.mxu0 0.0
    %1682 = vmatprep.subr.mxu0 0.0
    %1683 = vmatpush1.msra.mxu0 0.0
    %1684 = vmatprep.subr.mxu0 0.0
    %1685 = vmatpush1.msra.mxu0 0.0
    %1686 = vmatprep.subr.mxu0 0.0
    %1687 = vmatpush1.msra.mxu0 0.0
    %1688 = vmatprep.subr.mxu0 0.0
    %1689 = vmatpush1.msra.mxu0 0.0
    %1690 = vmatprep.mubr.f32.mxu0 0.0
    %1691 = vmatmul.mubr.f32.gmra.mrb[0].mxu0 %v1612
    %v1692 = vpop.f32.mrb[0].mxu0
    %v1693 = vadd.f32 0.0, %v1692
    %v1694 = vpop.f32.mrb[0].mxu0
    %1695 = vmatprep.mubr.f32.mxu0 0.0
    %1696 = vmatmul.mubr.f32.gmra.mrb[0].mxu0 %v1615
    %v1697 = vpop.f32.mrb[0].mxu0
    %v1698 = vadd.f32 0.0, %v1697
    %v1699 = vpop.f32.mrb[0].mxu0
    %1700 = vmatprep.mubr.f32.mxu0 0.0
    %1701 = vmatmul.mubr.f32.gmra.mrb[0].mxu0 %v1618
    %v1702 = vpop.f32.mrb[0].mxu0
    %v1703 = vadd.f32 0.0, %v1702
    %v1704 = vpop.f32.mrb[0].mxu0
    %1705 = vmatprep.mubr.f32.mxu0 0.0
    %1706 = vmatmul.mubr.f32.gmra.mrb[0].mxu0 %v1621
    %v1707 = vpop.f32.mrb[0].mxu0
    %v1708 = vadd.f32 0.0, %v1707
    %v1709 = vpop.f32.mrb[0].mxu0
    %1710 = vmatprep.mubr.f32.mxu0 0.0
    %1711 = vmatmul.mubr.f32.gmra.mrb[0].mxu0 %v1624
    %v1712 = vpop.f32.mrb[0].mxu0
    %v1713 = vadd.f32 0.0, %v1712
    %v1714 = vpop.f32.mrb[0].mxu0
    %1715 = vdwg.mxu0
    %v1716 = vmul.f32 %v1693, %v1693
    %v1717 = vmul.f32 %v1698, %v1698
    %v1718 = vmul.f32 %v1693, %v1698
    %v1719 = vsub.f32 %v1713, %v1718
    %v1720 = vmul.f32 %v1719, 2.0
    %v1721 = vstv %s1490
    %v1722 = vadd.f32 %v1720, %v1721
    %v1723 = vsub.f32 %v1703, %v1716
    %v1724 = vsub.f32 %v1708, %v1717
    %v1725 = vadd.f32 %v1723, %v1724
    %v1726 = vadd.f32 %v1725, %v1721
    %v1727 = vrcp.pop %v1726
    %v1728 = vmul.f32 %v1722, %v1727
    %vm1729 = vcmask 40960
    %v1730 = vsel %vm1729, %v1728, 0.0
    %1731 = vadd.xlane.f32.xlu0 %v1730
    %v1732 = vpop.xlane.xlu0 %1731
    %v1733 = vrot.slane %v1732, 4
    %v1734 = vadd.f32 %v1732, %v1733
    %v1735 = vrot.slane %v1734, 2
    %v1736 = vadd.f32 %v1734, %v1735
    %v1737 = vrot.slane %v1736, 1
    %v1738 = vadd.f32 %v1736, %v1737
    %s1739 = vtos %v1738
    %s1740 = smul.f32 %s1739, 0.16666667
    %s1741 = sadd.f32 %s1740, 1.0
    %s1742 = smul.f32 %s1741, 0.5
    %v1743 = vstv %s1742
    %v1744 = vlog2.pop %v1743
    %v1745 = vmul.f32 %v1744, 0.6931472
    %v1746 = vmul.f32 %v1745, 0.3001
    %v1747 = vadd.f32 %v1286, %v1746
    %v1748 = vld [vmem:[#allocation5] sm:$0xff]
    %v1749 = vld [vmem:[#allocation5 + $0x8] sm:$0xff]
    %v1750 = vld [vmem:[%s13] sm:$0xff]
    %v1751 = vld [vmem:[%s13 + $0x8] sm:$0xff]
    %v1752 = vld [vmem:[%s13 + $0x10] sm:$0xff]
    %v1753 = vld [vmem:[%s13 + $0x18] sm:$0xff]
    %v1754 = vld [vmem:[%s13 + $0x20] sm:$0xff]
    %v1755 = vld [vmem:[%s13 + $0x28] sm:$0xff]
    %vm1756 = vcmask 130048
    %v1758 = vsel %vm1756, %v1748, 0
    %v1761 = vsel %vm1756, %v1749, 0
    %1763 = vmatprep.subr.mxu0 0.0
    %1764 = vmatpush1.msra.mxu0 %v1455
    %1765 = vmatprep.subr.mxu0 0.0
    %1766 = vmatpush1.msra.mxu0 %v1460
    %1767 = vmatprep.subr.mxu0 0.0
    %1768 = vmatpush1.msra.mxu0 0.0
    %1769 = vmatprep.subr.mxu0 0.0
    %1770 = vmatpush1.msra.mxu0 0.0
    %1771 = vmatprep.subr.mxu0 0.0
    %1772 = vmatpush1.msra.mxu0 0.0
    %1773 = vmatprep.subr.mxu0 0.0
    %1774 = vmatpush1.msra.mxu0 0.0
    %1775 = vmatprep.subr.mxu0 0.0
    %1776 = vmatpush1.msra.mxu0 0.0
    %1777 = vmatprep.subr.mxu0 0.0
    %1778 = vmatpush1.msra.mxu0 0.0
    %1779 = vmatprep.subr.mxu0 0.0
    %1780 = vmatpush1.msra.mxu0 0.0
    %1781 = vmatprep.subr.mxu0 0.0
    %1782 = vmatpush1.msra.mxu0 0.0
    %1783 = vmatprep.subr.mxu0 0.0
    %1784 = vmatpush1.msra.mxu0 0.0
    %1785 = vmatprep.subr.mxu0 0.0
    %1786 = vmatpush1.msra.mxu0 0.0
    %1787 = vmatprep.subr.mxu0 0.0
    %1788 = vmatpush1.msra.mxu0 0.0
    %1789 = vmatprep.subr.mxu0 0.0
    %1790 = vmatpush1.msra.mxu0 0.0
    %1791 = vmatprep.subr.mxu0 0.0
    %1792 = vmatpush1.msra.mxu0 0.0
    %1793 = vmatprep.subr.mxu0 0.0
    %1794 = vmatpush1.msra.mxu0 0.0
    %1795 = vmatprep.subr.mxu0 0.0
    %1796 = vmatpush1.msra.mxu0 0.0
    %1797 = vmatprep.subr.mxu0 0.0
    %1798 = vmatpush1.msra.mxu0 0.0
    %1799 = vmatprep.subr.mxu0 0.0
    %1800 = vmatpush1.msra.mxu0 0.0
    %1801 = vmatprep.subr.mxu0 0.0
    %1802 = vmatpush1.msra.mxu0 0.0
    %1803 = vmatprep.subr.mxu0 0.0
    %1804 = vmatpush1.msra.mxu0 0.0
    %1805 = vmatprep.subr.mxu0 0.0
    %1806 = vmatpush1.msra.mxu0 0.0
    %1807 = vmatprep.subr.mxu0 0.0
    %1808 = vmatpush1.msra.mxu0 0.0
    %1809 = vmatprep.subr.mxu0 0.0
    %1810 = vmatpush1.msra.mxu0 0.0
    %1811 = vmatprep.subr.mxu0 0.0
    %1812 = vmatpush1.msra.mxu0 0.0
    %1813 = vmatprep.subr.mxu0 0.0
    %1814 = vmatpush1.msra.mxu0 0.0
    %1815 = vmatprep.subr.mxu0 0.0
    %1816 = vmatpush1.msra.mxu0 0.0
    %1817 = vmatprep.subr.mxu0 0.0
    %1818 = vmatpush1.msra.mxu0 0.0
    %1819 = vmatprep.subr.mxu0 0.0
    %1820 = vmatpush1.msra.mxu0 0.0
    %1821 = vmatprep.subr.mxu0 0.0
    %1822 = vmatpush1.msra.mxu0 0.0
    %1823 = vmatprep.subr.mxu0 0.0
    %1824 = vmatpush1.msra.mxu0 0.0
    %1825 = vmatprep.subr.mxu0 0.0
    %1826 = vmatpush1.msra.mxu0 0.0
    %1827 = vmatprep.mubr.f32.mxu0 0.0
    %1828 = vmatmul.mubr.f32.gmra.mrb[0].mxu0 %v1758
    %v1829 = vpop.f32.mrb[0].mxu0
    %v1830 = vadd.f32 0.0, %v1829
    %v1831 = vpop.f32.mrb[0].mxu0
    %1832 = vmatprep.mubr.f32.mxu0 0.0
    %1833 = vmatmul.mubr.f32.gmra.mrb[0].mxu0 %v1761
    %v1834 = vpop.f32.mrb[0].mxu0
    %v1835 = vadd.f32 0.0, %v1834
    %v1836 = vpop.f32.mrb[0].mxu0
    %1837 = vdwg.mxu0
    %v1839 = vsel %vm1463, %v1830, 0
    %v1842 = vsel %vm1463, %v1835, 0
    %1844 = vmatprep.subr.mxu0 0.0
    %1845 = vmatpush1.msra.mxu0 %v1750
    %1846 = vmatprep.subr.mxu0 0.0
    %1847 = vmatpush1.msra.mxu0 %v1751
    %1848 = vmatprep.subr.mxu0 0.0
    %1849 = vmatpush1.msra.mxu0 %v1752
    %1850 = vmatprep.subr.mxu0 0.0
    %1851 = vmatpush1.msra.mxu0 %v1753
    %1852 = vmatprep.subr.mxu0 0.0
    %1853 = vmatpush1.msra.mxu0 %v1754
    %1854 = vmatprep.subr.mxu0 0.0
    %1855 = vmatpush1.msra.mxu0 %v1755
    %1856 = vmatprep.subr.mxu0 0.0
    %1857 = vmatpush1.msra.mxu0 0.0
    %1858 = vmatprep.subr.mxu0 0.0
    %1859 = vmatpush1.msra.mxu0 0.0
    %1860 = vmatprep.subr.mxu0 0.0
    %1861 = vmatpush1.msra.mxu0 0.0
    %1862 = vmatprep.subr.mxu0 0.0
    %1863 = vmatpush1.msra.mxu0 0.0
    %1864 = vmatprep.subr.mxu0 0.0
    %1865 = vmatpush1.msra.mxu0 0.0
    %1866 = vmatprep.subr.mxu0 0.0
    %1867 = vmatpush1.msra.mxu0 0.0
    %1868 = vmatprep.subr.mxu0 0.0
    %1869 = vmatpush1.msra.mxu0 0.0
    %1870 = vmatprep.subr.mxu0 0.0
    %1871 = vmatpush1.msra.mxu0 0.0
    %1872 = vmatprep.subr.mxu0 0.0
    %1873 = vmatpush1.msra.mxu0 0.0
    %1874 = vmatprep.subr.mxu0 0.0
    %1875 = vmatpush1.msra.mxu0 0.0
    %1876 = vmatprep.subr.mxu0 0.0
    %1877 = vmatpush1.msra.mxu0 0.0
    %1878 = vmatprep.subr.mxu0 0.0
    %1879 = vmatpush1.msra.mxu0 0.0
    %1880 = vmatprep.subr.mxu0 0.0
    %1881 = vmatpush1.msra.mxu0 0.0
    %1882 = vmatprep.subr.mxu0 0.0
    %1883 = vmatpush1.msra.mxu0 0.0
    %1884 = vmatprep.subr.mxu0 0.0
    %1885 = vmatpush1.msra.mxu0 0.0
    %1886 = vmatprep.subr.mxu0 0.0
    %1887 = vmatpush1.msra.mxu0 0.0
    %1888 = vmatprep.subr.mxu0 0.0
    %1889 = vmatpush1.msra.mxu0 0.0
    %1890 = vmatprep.subr.mxu0 0.0
    %1891 = vmatpush1.msra.mxu0 0.0
    %1892 = vmatprep.subr.mxu0 0.0
    %1893 = vmatpush1.msra.mxu0 0.0
    %1894 = vmatprep.subr.mxu0 0.0
    %1895 = vmatpush1.msra.mxu0 0.0
    %1896 = vmatprep.subr.mxu0 0.0
    %1897 = vmatpush1.msra.mxu0 0.0
    %1898 = vmatprep.subr.mxu0 0.0
    %1899 = vmatpush1.msra.mxu0 0.0
    %1900 = vmatprep.subr.mxu0 0.0
    %1901 = vmatpush1.msra.mxu0 0.0
    %1902 = vmatprep.subr.mxu0 0.0
    %1903 = vmatpush1.msra.mxu0 0.0
    %1904 = vmatprep.subr.mxu0 0.0
    %1905 = vmatpush1.msra.mxu0 0.0
    %1906 = vmatprep.subr.mxu0 0.0
    %1907 = vmatpush1.msra.mxu0 0.0
    %1908 = vmatprep.mubr.f32.mxu0 0.0
    %1909 = vmatmul.mubr.f32.gmra.mrb[0].mxu0 %v1839
    %v1910 = vpop.f32.mrb[0].mxu0
    %v1911 = vadd.f32 0.0, %v1910
    %v1912 = vpop.f32.mrb[0].mxu0
    %1913 = vmatprep.mubr.f32.mxu0 0.0
    %1914 = vmatmul.mubr.f32.gmra.mrb[0].mxu0 %v1842
    %v1915 = vpop.f32.mrb[0].mxu0
    %v1916 = vadd.f32 0.0, %v1915
    %v1917 = vpop.f32.mrb[0].mxu0
    %1918 = vdwg.mxu0
    %vm1919 = vcmask 195584
    %v1920 = vsel %vm1919, %v1911, -inf
    %1921 = vmax.xlane.f32.xlu0 %v1920
    %v1922 = vpop.xlane.xlu0 %1921
    %v1923 = vrot.slane %v1922, 4
    %v1924 = vmax.f32 %v1922, %v1923
    %v1925 = vrot.slane %v1924, 2
    %v1926 = vmax.f32 %v1924, %v1925
    %v1927 = vrot.slane %v1926, 1
    %v1928 = vmax.f32 %v1926, %v1927
    %s1929 = vtos %v1928
    %v1930 = vsel %vm1919, %v1911, inf
    %1931 = vmin.xlane.f32.xlu0 %v1930
    %v1932 = vpop.xlane.xlu0 %1931
    %v1933 = vrot.slane %v1932, 4
    %v1934 = vmin.f32 %v1932, %v1933
    %v1935 = vrot.slane %v1934, 2
    %v1936 = vmin.f32 %v1934, %v1935
    %v1937 = vrot.slane %v1936, 1
    %v1938 = vmin.f32 %v1936, %v1937
    %s1939 = vtos %v1938
    %p1940 = scmp.gt.f32.partialorder %s1929, 128.0
    %s1941 = scalar_select %p1940, 255.0, 1.0
    %p1942 = scmp.lt.f32.partialorder %s1939, -0.5
    %s1943 = scalar_select %p1942, -1.0, 0.0
    %s1944 = ssub.f32 %s1941, %s1943
    %s1945 = smul.f32 %s1944, 0.03
    %s1946 = smul.f32 %s1945, %s1945
    %v1947 = vmul.f32 %v1911, %v1911
    %v1948 = vmul.f32 %v1916, %v1916
    %v1949 = vmul.f32 %v1911, %v1916
    %v1950 = vld [vmem:[%s14] sm:$0xff]
    %v1951 = vld [vmem:[%s14 + $0x8] sm:$0xff]
    %v1952 = vld [vmem:[%s14 + $0x10] sm:$0xff]
    %v1953 = vld [vmem:[%s14 + $0x18] sm:$0xff]
    %v1954 = vld [vmem:[%s14 + $0x20] sm:$0xff]
    %v1955 = vld [vmem:[%s15] sm:$0xff]
    %v1956 = vld [vmem:[%s15 + $0x8] sm:$0xff]
    %v1957 = vld [vmem:[%s15 + $0x10] sm:$0xff]
    %v1959 = vsel %vm1505, %v1950, 0
    %v1962 = vsel %vm1505, %v1951, 0
    %v1965 = vsel %vm1505, %v1952, 0
    %v1968 = vsel %vm1505, %v1953, 0
    %v1971 = vsel %vm1505, %v1954, 0
    %1973 = vmatprep.subr.mxu0 0.0
    %1974 = vmatpush1.msra.mxu0 %v1911
    %1975 = vmatprep.subr.mxu0 0.0
    %1976 = vmatpush1.msra.mxu0 %v1916
    %1977 = vmatprep.subr.mxu0 0.0
    %1978 = vmatpush1.msra.mxu0 %v1947
    %1979 = vmatprep.subr.mxu0 0.0
    %1980 = vmatpush1.msra.mxu0 %v1948
    %1981 = vmatprep.subr.mxu0 0.0
    %1982 = vmatpush1.msra.mxu0 %v1949
    %1983 = vmatprep.subr.mxu0 0.0
    %1984 = vmatpush1.msra.mxu0 0.0
    %1985 = vmatprep.subr.mxu0 0.0
    %1986 = vmatpush1.msra.mxu0 0.0
    %1987 = vmatprep.subr.mxu0 0.0
    %1988 = vmatpush1.msra.mxu0 0.0
    %1989 = vmatprep.subr.mxu0 0.0
    %1990 = vmatpush1.msra.mxu0 0.0
    %1991 = vmatprep.subr.mxu0 0.0
    %1992 = vmatpush1.msra.mxu0 0.0
    %1993 = vmatprep.subr.mxu0 0.0
    %1994 = vmatpush1.msra.mxu0 0.0
    %1995 = vmatprep.subr.mxu0 0.0
    %1996 = vmatpush1.msra.mxu0 0.0
    %1997 = vmatprep.subr.mxu0 0.0
    %1998 = vmatpush1.msra.mxu0 0.0
    %1999 = vmatprep.subr.mxu0 0.0
    %2000 = vmatpush1.msra.mxu0 0.0
    %2001 = vmatprep.subr.mxu0 0.0
    %2002 = vmatpush1.msra.mxu0 0.0
    %2003 = vmatprep.subr.mxu0 0.0
    %2004 = vmatpush1.msra.mxu0 0.0
    %2005 = vmatprep.subr.mxu0 0.0
    %2006 = vmatpush1.msra.mxu0 0.0
    %2007 = vmatprep.subr.mxu0 0.0
    %2008 = vmatpush1.msra.mxu0 0.0
    %2009 = vmatprep.subr.mxu0 0.0
    %2010 = vmatpush1.msra.mxu0 0.0
    %2011 = vmatprep.subr.mxu0 0.0
    %2012 = vmatpush1.msra.mxu0 0.0
    %2013 = vmatprep.subr.mxu0 0.0
    %2014 = vmatpush1.msra.mxu0 0.0
    %2015 = vmatprep.subr.mxu0 0.0
    %2016 = vmatpush1.msra.mxu0 0.0
    %2017 = vmatprep.subr.mxu0 0.0
    %2018 = vmatpush1.msra.mxu0 0.0
    %2019 = vmatprep.subr.mxu0 0.0
    %2020 = vmatpush1.msra.mxu0 0.0
    %2021 = vmatprep.subr.mxu0 0.0
    %2022 = vmatpush1.msra.mxu0 0.0
    %2023 = vmatprep.subr.mxu0 0.0
    %2024 = vmatpush1.msra.mxu0 0.0
    %2025 = vmatprep.subr.mxu0 0.0
    %2026 = vmatpush1.msra.mxu0 0.0
    %2027 = vmatprep.subr.mxu0 0.0
    %2028 = vmatpush1.msra.mxu0 0.0
    %2029 = vmatprep.subr.mxu0 0.0
    %2030 = vmatpush1.msra.mxu0 0.0
    %2031 = vmatprep.subr.mxu0 0.0
    %2032 = vmatpush1.msra.mxu0 0.0
    %2033 = vmatprep.subr.mxu0 0.0
    %2034 = vmatpush1.msra.mxu0 0.0
    %2035 = vmatprep.subr.mxu0 0.0
    %2036 = vmatpush1.msra.mxu0 0.0
    %2037 = vmatprep.mubr.f32.mxu0 0.0
    %2038 = vmatmul.mubr.f32.gmra.mrb[0].mxu0 %v1959
    %v2039 = vpop.f32.mrb[0].mxu0
    %v2040 = vadd.f32 0.0, %v2039
    %v2041 = vpop.f32.mrb[0].mxu0
    %2042 = vmatprep.mubr.f32.mxu0 0.0
    %2043 = vmatmul.mubr.f32.gmra.mrb[0].mxu0 %v1962
    %v2044 = vpop.f32.mrb[0].mxu0
    %v2045 = vadd.f32 0.0, %v2044
    %v2046 = vpop.f32.mrb[0].mxu0
    %2047 = vmatprep.mubr.f32.mxu0 0.0
    %2048 = vmatmul.mubr.f32.gmra.mrb[0].mxu0 %v1965
    %v2049 = vpop.f32.mrb[0].mxu0
    %v2050 = vadd.f32 0.0, %v2049
    %v2051 = vpop.f32.mrb[0].mxu0
    %2052 = vmatprep.mubr.f32.mxu0 0.0
    %2053 = vmatmul.mubr.f32.gmra.mrb[0].mxu0 %v1968
    %v2054 = vpop.f32.mrb[0].mxu0
    %v2055 = vadd.f32 0.0, %v2054
    %v2056 = vpop.f32.mrb[0].mxu0
    %2057 = vmatprep.mubr.f32.mxu0 0.0
    %2058 = vmatmul.mubr.f32.gmra.mrb[0].mxu0 %v1971
    %v2059 = vpop.f32.mrb[0].mxu0
    %v2060 = vadd.f32 0.0, %v2059
    %v2061 = vpop.f32.mrb[0].mxu0
    %2062 = vdwg.mxu0
    %v2064 = vsel %vm1919, %v2040, 0
    %v2067 = vsel %vm1919, %v2045, 0
    %v2070 = vsel %vm1919, %v2050, 0
    %v2073 = vsel %vm1919, %v2055, 0
    %v2076 = vsel %vm1919, %v2060, 0
    %2078 = vmatprep.subr.mxu0 0.0
    %2079 = vmatpush1.msra.mxu0 %v1955
    %2080 = vmatprep.subr.mxu0 0.0
    %2081 = vmatpush1.msra.mxu0 %v1956
    %2082 = vmatprep.subr.mxu0 0.0
    %2083 = vmatpush1.msra.mxu0 %v1957
    %2084 = vmatprep.subr.mxu0 0.0
    %2085 = vmatpush1.msra.mxu0 0.0
    %2086 = vmatprep.subr.mxu0 0.0
    %2087 = vmatpush1.msra.mxu0 0.0
    %2088 = vmatprep.subr.mxu0 0.0
    %2089 = vmatpush1.msra.mxu0 0.0
    %2090 = vmatprep.subr.mxu0 0.0
    %2091 = vmatpush1.msra.mxu0 0.0
    %2092 = vmatprep.subr.mxu0 0.0
    %2093 = vmatpush1.msra.mxu0 0.0
    %2094 = vmatprep.subr.mxu0 0.0
    %2095 = vmatpush1.msra.mxu0 0.0
    %2096 = vmatprep.subr.mxu0 0.0
    %2097 = vmatpush1.msra.mxu0 0.0
    %2098 = vmatprep.subr.mxu0 0.0
    %2099 = vmatpush1.msra.mxu0 0.0
    %2100 = vmatprep.subr.mxu0 0.0
    %2101 = vmatpush1.msra.mxu0 0.0
    %2102 = vmatprep.subr.mxu0 0.0
    %2103 = vmatpush1.msra.mxu0 0.0
    %2104 = vmatprep.subr.mxu0 0.0
    %2105 = vmatpush1.msra.mxu0 0.0
    %2106 = vmatprep.subr.mxu0 0.0
    %2107 = vmatpush1.msra.mxu0 0.0
    %2108 = vmatprep.subr.mxu0 0.0
    %2109 = vmatpush1.msra.mxu0 0.0
    %2110 = vmatprep.subr.mxu0 0.0
    %2111 = vmatpush1.msra.mxu0 0.0
    %2112 = vmatprep.subr.mxu0 0.0
    %2113 = vmatpush1.msra.mxu0 0.0
    %2114 = vmatprep.subr.mxu0 0.0
    %2115 = vmatpush1.msra.mxu0 0.0
    %2116 = vmatprep.subr.mxu0 0.0
    %2117 = vmatpush1.msra.mxu0 0.0
    %2118 = vmatprep.subr.mxu0 0.0
    %2119 = vmatpush1.msra.mxu0 0.0
    %2120 = vmatprep.subr.mxu0 0.0
    %2121 = vmatpush1.msra.mxu0 0.0
    %2122 = vmatprep.subr.mxu0 0.0
    %2123 = vmatpush1.msra.mxu0 0.0
    %2124 = vmatprep.subr.mxu0 0.0
    %2125 = vmatpush1.msra.mxu0 0.0
    %2126 = vmatprep.subr.mxu0 0.0
    %2127 = vmatpush1.msra.mxu0 0.0
    %2128 = vmatprep.subr.mxu0 0.0
    %2129 = vmatpush1.msra.mxu0 0.0
    %2130 = vmatprep.subr.mxu0 0.0
    %2131 = vmatpush1.msra.mxu0 0.0
    %2132 = vmatprep.subr.mxu0 0.0
    %2133 = vmatpush1.msra.mxu0 0.0
    %2134 = vmatprep.subr.mxu0 0.0
    %2135 = vmatpush1.msra.mxu0 0.0
    %2136 = vmatprep.subr.mxu0 0.0
    %2137 = vmatpush1.msra.mxu0 0.0
    %2138 = vmatprep.subr.mxu0 0.0
    %2139 = vmatpush1.msra.mxu0 0.0
    %2140 = vmatprep.subr.mxu0 0.0
    %2141 = vmatpush1.msra.mxu0 0.0
    %2142 = vmatprep.mubr.f32.mxu0 0.0
    %2143 = vmatmul.mubr.f32.gmra.mrb[0].mxu0 %v2064
    %v2144 = vpop.f32.mrb[0].mxu0
    %v2145 = vadd.f32 0.0, %v2144
    %v2146 = vpop.f32.mrb[0].mxu0
    %2147 = vmatprep.mubr.f32.mxu0 0.0
    %2148 = vmatmul.mubr.f32.gmra.mrb[0].mxu0 %v2067
    %v2149 = vpop.f32.mrb[0].mxu0
    %v2150 = vadd.f32 0.0, %v2149
    %v2151 = vpop.f32.mrb[0].mxu0
    %2152 = vmatprep.mubr.f32.mxu0 0.0
    %2153 = vmatmul.mubr.f32.gmra.mrb[0].mxu0 %v2070
    %v2154 = vpop.f32.mrb[0].mxu0
    %v2155 = vadd.f32 0.0, %v2154
    %v2156 = vpop.f32.mrb[0].mxu0
    %2157 = vmatprep.mubr.f32.mxu0 0.0
    %2158 = vmatmul.mubr.f32.gmra.mrb[0].mxu0 %v2073
    %v2159 = vpop.f32.mrb[0].mxu0
    %v2160 = vadd.f32 0.0, %v2159
    %v2161 = vpop.f32.mrb[0].mxu0
    %2162 = vmatprep.mubr.f32.mxu0 0.0
    %2163 = vmatmul.mubr.f32.gmra.mrb[0].mxu0 %v2076
    %v2164 = vpop.f32.mrb[0].mxu0
    %v2165 = vadd.f32 0.0, %v2164
    %v2166 = vpop.f32.mrb[0].mxu0
    %2167 = vdwg.mxu0
    %v2168 = vmul.f32 %v2145, %v2145
    %v2169 = vmul.f32 %v2150, %v2150
    %v2170 = vmul.f32 %v2145, %v2150
    %v2171 = vsub.f32 %v2165, %v2170
    %v2172 = vmul.f32 %v2171, 2.0
    %v2173 = vstv %s1946
    %v2174 = vadd.f32 %v2172, %v2173
    %v2175 = vsub.f32 %v2155, %v2168
    %v2176 = vsub.f32 %v2160, %v2169
    %v2177 = vadd.f32 %v2175, %v2176
    %v2178 = vadd.f32 %v2177, %v2173
    %v2179 = vrcp.pop %v2178
    %v2180 = vmul.f32 %v2174, %v2179
    %v2181 = vsel %vm1729, %v2180, 0.0
    %2182 = vadd.xlane.f32.xlu0 %v2181
    %v2183 = vpop.xlane.xlu0 %2182
    %v2184 = vrot.slane %v2183, 4
    %v2185 = vadd.f32 %v2183, %v2184
    %v2186 = vrot.slane %v2185, 2
    %v2187 = vadd.f32 %v2185, %v2186
    %v2188 = vrot.slane %v2187, 1
    %v2189 = vadd.f32 %v2187, %v2188
    %s2190 = vtos %v2189
    %s2191 = smul.f32 %s2190, 0.16666667
    %s2192 = sadd.f32 %s2191, 1.0
    %s2193 = smul.f32 %s2192, 0.5
    %v2194 = vstv %s2193
    %v2195 = vlog2.pop %v2194
    %v2196 = vmul.f32 %v2195, 0.6931472
    %v2197 = vmul.f32 %v2196, 0.2363
    %v2198 = vadd.f32 %v1747, %v2197
    %v2199 = vld [vmem:[%s16] sm:$0xff]
    %v2200 = vld [vmem:[%s16 + $0x8] sm:$0xff]
    %v2201 = vld [vmem:[%s17] sm:$0xff]
    %v2202 = vld [vmem:[%s17 + $0x8] sm:$0xff]
    %v2203 = vld [vmem:[%s17 + $0x10] sm:$0xff]
    %v2205 = vsel %vm1756, %v2199, 0
    %v2208 = vsel %vm1756, %v2200, 0
    %2210 = vmatprep.subr.mxu0 0.0
    %2211 = vmatpush1.msra.mxu0 %v1911
    %2212 = vmatprep.subr.mxu0 0.0
    %2213 = vmatpush1.msra.mxu0 %v1916
    %2214 = vmatprep.subr.mxu0 0.0
    %2215 = vmatpush1.msra.mxu0 0.0
    %2216 = vmatprep.subr.mxu0 0.0
    %2217 = vmatpush1.msra.mxu0 0.0
    %2218 = vmatprep.subr.mxu0 0.0
    %2219 = vmatpush1.msra.mxu0 0.0
    %2220 = vmatprep.subr.mxu0 0.0
    %2221 = vmatpush1.msra.mxu0 0.0
    %2222 = vmatprep.subr.mxu0 0.0
    %2223 = vmatpush1.msra.mxu0 0.0
    %2224 = vmatprep.subr.mxu0 0.0
    %2225 = vmatpush1.msra.mxu0 0.0
    %2226 = vmatprep.subr.mxu0 0.0
    %2227 = vmatpush1.msra.mxu0 0.0
    %2228 = vmatprep.subr.mxu0 0.0
    %2229 = vmatpush1.msra.mxu0 0.0
    %2230 = vmatprep.subr.mxu0 0.0
    %2231 = vmatpush1.msra.mxu0 0.0
    %2232 = vmatprep.subr.mxu0 0.0
    %2233 = vmatpush1.msra.mxu0 0.0
    %2234 = vmatprep.subr.mxu0 0.0
    %2235 = vmatpush1.msra.mxu0 0.0
    %2236 = vmatprep.subr.mxu0 0.0
    %2237 = vmatpush1.msra.mxu0 0.0
    %2238 = vmatprep.subr.mxu0 0.0
    %2239 = vmatpush1.msra.mxu0 0.0
    %2240 = vmatprep.subr.mxu0 0.0
    %2241 = vmatpush1.msra.mxu0 0.0
    %2242 = vmatprep.subr.mxu0 0.0
    %2243 = vmatpush1.msra.mxu0 0.0
    %2244 = vmatprep.subr.mxu0 0.0
    %2245 = vmatpush1.msra.mxu0 0.0
    %2246 = vmatprep.subr.mxu0 0.0
    %2247 = vmatpush1.msra.mxu0 0.0
    %2248 = vmatprep.subr.mxu0 0.0
    %2249 = vmatpush1.msra.mxu0 0.0
    %2250 = vmatprep.subr.mxu0 0.0
    %2251 = vmatpush1.msra.mxu0 0.0
    %2252 = vmatprep.subr.mxu0 0.0
    %2253 = vmatpush1.msra.mxu0 0.0
    %2254 = vmatprep.subr.mxu0 0.0
    %2255 = vmatpush1.msra.mxu0 0.0
    %2256 = vmatprep.subr.mxu0 0.0
    %2257 = vmatpush1.msra.mxu0 0.0
    %2258 = vmatprep.subr.mxu0 0.0
    %2259 = vmatpush1.msra.mxu0 0.0
    %2260 = vmatprep.subr.mxu0 0.0
    %2261 = vmatpush1.msra.mxu0 0.0
    %2262 = vmatprep.subr.mxu0 0.0
    %2263 = vmatpush1.msra.mxu0 0.0
    %2264 = vmatprep.subr.mxu0 0.0
    %2265 = vmatpush1.msra.mxu0 0.0
    %2266 = vmatprep.subr.mxu0 0.0
    %2267 = vmatpush1.msra.mxu0 0.0
    %2268 = vmatprep.subr.mxu0 0.0
    %2269 = vmatpush1.msra.mxu0 0.0
    %2270 = vmatprep.subr.mxu0 0.0
    %2271 = vmatpush1.msra.mxu0 0.0
    %2272 = vmatprep.subr.mxu0 0.0
    %2273 = vmatpush1.msra.mxu0 0.0
    %2274 = vmatprep.mubr.f32.mxu0 0.0
    %2275 = vmatmul.mubr.f32.gmra.mrb[0].mxu0 %v2205
    %v2276 = vpop.f32.mrb[0].mxu0
    %v2277 = vadd.f32 0.0, %v2276
    %v2278 = vpop.f32.mrb[0].mxu0
    %2279 = vmatprep.mubr.f32.mxu0 0.0
    %2280 = vmatmul.mubr.f32.gmra.mrb[0].mxu0 %v2208
    %v2281 = vpop.f32.mrb[0].mxu0
    %v2282 = vadd.f32 0.0, %v2281
    %v2283 = vpop.f32.mrb[0].mxu0
    %2284 = vdwg.mxu0
    %v2286 = vsel %vm1919, %v2277, 0
    %v2289 = vsel %vm1919, %v2282, 0
    %2291 = vmatprep.subr.mxu0 0.0
    %2292 = vmatpush1.msra.mxu0 %v2201
    %2293 = vmatprep.subr.mxu0 0.0
    %2294 = vmatpush1.msra.mxu0 %v2202
    %2295 = vmatprep.subr.mxu0 0.0
    %2296 = vmatpush1.msra.mxu0 %v2203
    %2297 = vmatprep.subr.mxu0 0.0
    %2298 = vmatpush1.msra.mxu0 0.0
    %2299 = vmatprep.subr.mxu0 0.0
    %2300 = vmatpush1.msra.mxu0 0.0
    %2301 = vmatprep.subr.mxu0 0.0
    %2302 = vmatpush1.msra.mxu0 0.0
    %2303 = vmatprep.subr.mxu0 0.0
    %2304 = vmatpush1.msra.mxu0 0.0
    %2305 = vmatprep.subr.mxu0 0.0
    %2306 = vmatpush1.msra.mxu0 0.0
    %2307 = vmatprep.subr.mxu0 0.0
    %2308 = vmatpush1.msra.mxu0 0.0
    %2309 = vmatprep.subr.mxu0 0.0
    %2310 = vmatpush1.msra.mxu0 0.0
    %2311 = vmatprep.subr.mxu0 0.0
    %2312 = vmatpush1.msra.mxu0 0.0
    %2313 = vmatprep.subr.mxu0 0.0
    %2314 = vmatpush1.msra.mxu0 0.0
    %2315 = vmatprep.subr.mxu0 0.0
    %2316 = vmatpush1.msra.mxu0 0.0
    %2317 = vmatprep.subr.mxu0 0.0
    %2318 = vmatpush1.msra.mxu0 0.0
    %2319 = vmatprep.subr.mxu0 0.0
    %2320 = vmatpush1.msra.mxu0 0.0
    %2321 = vmatprep.subr.mxu0 0.0
    %2322 = vmatpush1.msra.mxu0 0.0
    %2323 = vmatprep.subr.mxu0 0.0
    %2324 = vmatpush1.msra.mxu0 0.0
    %2325 = vmatprep.subr.mxu0 0.0
    %2326 = vmatpush1.msra.mxu0 0.0
    %2327 = vmatprep.subr.mxu0 0.0
    %2328 = vmatpush1.msra.mxu0 0.0
    %2329 = vmatprep.subr.mxu0 0.0
    %2330 = vmatpush1.msra.mxu0 0.0
    %2331 = vmatprep.subr.mxu0 0.0
    %2332 = vmatpush1.msra.mxu0 0.0
    %2333 = vmatprep.subr.mxu0 0.0
    %2334 = vmatpush1.msra.mxu0 0.0
    %2335 = vmatprep.subr.mxu0 0.0
    %2336 = vmatpush1.msra.mxu0 0.0
    %2337 = vmatprep.subr.mxu0 0.0
    %2338 = vmatpush1.msra.mxu0 0.0
    %2339 = vmatprep.subr.mxu0 0.0
    %2340 = vmatpush1.msra.mxu0 0.0
    %2341 = vmatprep.subr.mxu0 0.0
    %2342 = vmatpush1.msra.mxu0 0.0
    %2343 = vmatprep.subr.mxu0 0.0
    %2344 = vmatpush1.msra.mxu0 0.0
    %2345 = vmatprep.subr.mxu0 0.0
    %2346 = vmatpush1.msra.mxu0 0.0
    %2347 = vmatprep.subr.mxu0 0.0
    %2348 = vmatpush1.msra.mxu0 0.0
    %2349 = vmatprep.subr.mxu0 0.0
    %2350 = vmatpush1.msra.mxu0 0.0
    %2351 = vmatprep.subr.mxu0 0.0
    %2352 = vmatpush1.msra.mxu0 0.0
    %2353 = vmatprep.subr.mxu0 0.0
    %2354 = vmatpush1.msra.mxu0 0.0
    %2355 = vmatprep.mubr.f32.mxu0 0.0
    %2356 = vmatmul.mubr.f32.gmra.mrb[0].mxu0 %v2286
    %v2357 = vpop.f32.mrb[0].mxu0
    %v2358 = vadd.f32 0.0, %v2357
    %v2359 = vpop.f32.mrb[0].mxu0
    %2360 = vmatprep.mubr.f32.mxu0 0.0
    %2361 = vmatmul.mubr.f32.gmra.mrb[0].mxu0 %v2289
    %v2362 = vpop.f32.mrb[0].mxu0
    %v2363 = vadd.f32 0.0, %v2362
    %v2364 = vpop.f32.mrb[0].mxu0
    %2365 = vdwg.mxu0
    %vm2366 = vcmask 97280
    %v2367 = vsel %vm2366, %v2358, -inf
    %2368 = vmax.xlane.f32.xlu0 %v2367
    %v2369 = vpop.xlane.xlu0 %2368
    %v2370 = vrot.slane %v2369, 4
    %v2371 = vmax.f32 %v2369, %v2370
    %v2372 = vrot.slane %v2371, 2
    %v2373 = vmax.f32 %v2371, %v2372
    %v2374 = vrot.slane %v2373, 1
    %v2375 = vmax.f32 %v2373, %v2374
    %s2376 = vtos %v2375
    %v2377 = vsel %vm2366, %v2358, inf
    %2378 = vmin.xlane.f32.xlu0 %v2377
    %v2379 = vpop.xlane.xlu0 %2378
    %v2380 = vrot.slane %v2379, 4
    %v2381 = vmin.f32 %v2379, %v2380
    %v2382 = vrot.slane %v2381, 2
    %v2383 = vmin.f32 %v2381, %v2382
    %v2384 = vrot.slane %v2383, 1
    %v2385 = vmin.f32 %v2383, %v2384
    %s2386 = vtos %v2385
    %p2387 = scmp.gt.f32.partialorder %s2376, 128.0
    %s2388 = scalar_select %p2387, 255.0, 1.0
    %p2389 = scmp.lt.f32.partialorder %s2386, -0.5
    %s2390 = scalar_select %p2389, -1.0, 0.0
    %s2391 = ssub.f32 %s2388, %s2390
    %s2392 = smul.f32 %s2391, 0.01
    %s2393 = smul.f32 %s2392, %s2392
    %s2394 = smul.f32 %s2391, 0.03
    %s2395 = smul.f32 %s2394, %s2394
    %v2396 = vmul.f32 %v2358, %v2358
    %v2397 = vmul.f32 %v2363, %v2363
    %v2398 = vmul.f32 %v2358, %v2363
    %v2399 = vld [vmem:[%s18] sm:$0xff]
    %v2400 = vld [vmem:[%s18 + $0x8] sm:$0xff]
    %v2401 = vld [vmem:[%s18 + $0x10] sm:$0xff]
    %v2402 = vld [vmem:[%s18 + $0x18] sm:$0xff]
    %v2403 = vld [vmem:[%s18 + $0x20] sm:$0xff]
    %v2404 = vld [vmem:[%s19] sm:$0xff]
    %v2405 = vld [vmem:[%s19 + $0x8] sm:$0xf]
    %v2407 = vsel %vm1505, %v2399, 0
    %v2410 = vsel %vm1505, %v2400, 0
    %v2413 = vsel %vm1505, %v2401, 0
    %v2416 = vsel %vm1505, %v2402, 0
    %v2419 = vsel %vm1505, %v2403, 0
    %2421 = vmatprep.subr.mxu0 0.0
    %2422 = vmatpush1.msra.mxu0 %v2358
    %2423 = vmatprep.subr.mxu0 0.0
    %2424 = vmatpush1.msra.mxu0 %v2363
    %2425 = vmatprep.subr.mxu0 0.0
    %2426 = vmatpush1.msra.mxu0 %v2396
    %2427 = vmatprep.subr.mxu0 0.0
    %2428 = vmatpush1.msra.mxu0 %v2397
    %2429 = vmatprep.subr.mxu0 0.0
    %2430 = vmatpush1.msra.mxu0 %v2398
    %2431 = vmatprep.subr.mxu0 0.0
    %2432 = vmatpush1.msra.mxu0 0.0
    %2433 = vmatprep.subr.mxu0 0.0
    %2434 = vmatpush1.msra.mxu0 0.0
    %2435 = vmatprep.subr.mxu0 0.0
    %2436 = vmatpush1.msra.mxu0 0.0
    %2437 = vmatprep.subr.mxu0 0.0
    %2438 = vmatpush1.msra.mxu0 0.0
    %2439 = vmatprep.subr.mxu0 0.0
    %2440 = vmatpush1.msra.mxu0 0.0
    %2441 = vmatprep.subr.mxu0 0.0
    %2442 = vmatpush1.msra.mxu0 0.0
    %2443 = vmatprep.subr.mxu0 0.0
    %2444 = vmatpush1.msra.mxu0 0.0
    %2445 = vmatprep.subr.mxu0 0.0
    %2446 = vmatpush1.msra.mxu0 0.0
    %2447 = vmatprep.subr.mxu0 0.0
    %2448 = vmatpush1.msra.mxu0 0.0
    %2449 = vmatprep.subr.mxu0 0.0
    %2450 = vmatpush1.msra.mxu0 0.0
    %2451 = vmatprep.subr.mxu0 0.0
    %2452 = vmatpush1.msra.mxu0 0.0
    %2453 = vmatprep.subr.mxu0 0.0
    %2454 = vmatpush1.msra.mxu0 0.0
    %2455 = vmatprep.subr.mxu0 0.0
    %2456 = vmatpush1.msra.mxu0 0.0
    %2457 = vmatprep.subr.mxu0 0.0
    %2458 = vmatpush1.msra.mxu0 0.0
    %2459 = vmatprep.subr.mxu0 0.0
    %2460 = vmatpush1.msra.mxu0 0.0
    %2461 = vmatprep.subr.mxu0 0.0
    %2462 = vmatpush1.msra.mxu0 0.0
    %2463 = vmatprep.subr.mxu0 0.0
    %2464 = vmatpush1.msra.mxu0 0.0
    %2465 = vmatprep.subr.mxu0 0.0
    %2466 = vmatpush1.msra.mxu0 0.0
    %2467 = vmatprep.subr.mxu0 0.0
    %2468 = vmatpush1.msra.mxu0 0.0
    %2469 = vmatprep.subr.mxu0 0.0
    %2470 = vmatpush1.msra.mxu0 0.0
    %2471 = vmatprep.subr.mxu0 0.0
    %2472 = vmatpush1.msra.mxu0 0.0
    %2473 = vmatprep.subr.mxu0 0.0
    %2474 = vmatpush1.msra.mxu0 0.0
    %2475 = vmatprep.subr.mxu0 0.0
    %2476 = vmatpush1.msra.mxu0 0.0
    %2477 = vmatprep.subr.mxu0 0.0
    %2478 = vmatpush1.msra.mxu0 0.0
    %2479 = vmatprep.subr.mxu0 0.0
    %2480 = vmatpush1.msra.mxu0 0.0
    %2481 = vmatprep.subr.mxu0 0.0
    %2482 = vmatpush1.msra.mxu0 0.0
    %2483 = vmatprep.subr.mxu0 0.0
    %2484 = vmatpush1.msra.mxu0 0.0
    %2485 = vmatprep.mubr.f32.mxu0 0.0
    %2486 = vmatmul.mubr.f32.gmra.mrb[0].mxu0 %v2407
    %v2487 = vpop.f32.mrb[0].mxu0
    %v2488 = vadd.f32 0.0, %v2487
    %v2489 = vpop.f32.mrb[0].mxu0
    %2490 = vmatprep.mubr.f32.mxu0 0.0
    %2491 = vmatmul.mubr.f32.gmra.mrb[0].mxu0 %v2410
    %v2492 = vpop.f32.mrb[0].mxu0
    %v2493 = vadd.f32 0.0, %v2492
    %v2494 = vpop.f32.mrb[0].mxu0
    %2495 = vmatprep.mubr.f32.mxu0 0.0
    %2496 = vmatmul.mubr.f32.gmra.mrb[0].mxu0 %v2413
    %v2497 = vpop.f32.mrb[0].mxu0
    %v2498 = vadd.f32 0.0, %v2497
    %v2499 = vpop.f32.mrb[0].mxu0
    %2500 = vmatprep.mubr.f32.mxu0 0.0
    %2501 = vmatmul.mubr.f32.gmra.mrb[0].mxu0 %v2416
    %v2502 = vpop.f32.mrb[0].mxu0
    %v2503 = vadd.f32 0.0, %v2502
    %v2504 = vpop.f32.mrb[0].mxu0
    %2505 = vmatprep.mubr.f32.mxu0 0.0
    %2506 = vmatmul.mubr.f32.gmra.mrb[0].mxu0 %v2419
    %v2507 = vpop.f32.mrb[0].mxu0
    %v2508 = vadd.f32 0.0, %v2507
    %v2509 = vpop.f32.mrb[0].mxu0
    %2510 = vdwg.mxu0
    %v2512 = vsel %vm2366, %v2488, 0
    %v2515 = vsel %vm2366, %v2493, 0
    %v2518 = vsel %vm2366, %v2498, 0
    %v2521 = vsel %vm2366, %v2503, 0
    %v2524 = vsel %vm2366, %v2508, 0
    %vm2526 = vcmask 1043456
    %v2528 = vsel %vm2526, %v2405, 0
    %2530 = vmatprep.subr.mxu0 0.0
    %2531 = vmatpush1.msra.mxu0 %v2404
    %2532 = vmatprep.subr.mxu0 0.0
    %2533 = vmatpush1.msra.mxu0 %v2528
    %2534 = vmatprep.subr.mxu0 0.0
    %2535 = vmatpush1.msra.mxu0 0.0
    %2536 = vmatprep.subr.mxu0 0.0
    %2537 = vmatpush1.msra.mxu0 0.0
    %2538 = vmatprep.subr.mxu0 0.0
    %2539 = vmatpush1.msra.mxu0 0.0
    %2540 = vmatprep.subr.mxu0 0.0
    %2541 = vmatpush1.msra.mxu0 0.0
    %2542 = vmatprep.subr.mxu0 0.0
    %2543 = vmatpush1.msra.mxu0 0.0
    %2544 = vmatprep.subr.mxu0 0.0
    %2545 = vmatpush1.msra.mxu0 0.0
    %2546 = vmatprep.subr.mxu0 0.0
    %2547 = vmatpush1.msra.mxu0 0.0
    %2548 = vmatprep.subr.mxu0 0.0
    %2549 = vmatpush1.msra.mxu0 0.0
    %2550 = vmatprep.subr.mxu0 0.0
    %2551 = vmatpush1.msra.mxu0 0.0
    %2552 = vmatprep.subr.mxu0 0.0
    %2553 = vmatpush1.msra.mxu0 0.0
    %2554 = vmatprep.subr.mxu0 0.0
    %2555 = vmatpush1.msra.mxu0 0.0
    %2556 = vmatprep.subr.mxu0 0.0
    %2557 = vmatpush1.msra.mxu0 0.0
    %2558 = vmatprep.subr.mxu0 0.0
    %2559 = vmatpush1.msra.mxu0 0.0
    %2560 = vmatprep.subr.mxu0 0.0
    %2561 = vmatpush1.msra.mxu0 0.0
    %2562 = vmatprep.subr.mxu0 0.0
    %2563 = vmatpush1.msra.mxu0 0.0
    %2564 = vmatprep.subr.mxu0 0.0
    %2565 = vmatpush1.msra.mxu0 0.0
    %2566 = vmatprep.subr.mxu0 0.0
    %2567 = vmatpush1.msra.mxu0 0.0
    %2568 = vmatprep.subr.mxu0 0.0
    %2569 = vmatpush1.msra.mxu0 0.0
    %2570 = vmatprep.subr.mxu0 0.0
    %2571 = vmatpush1.msra.mxu0 0.0
    %2572 = vmatprep.subr.mxu0 0.0
    %2573 = vmatpush1.msra.mxu0 0.0
    %2574 = vmatprep.subr.mxu0 0.0
    %2575 = vmatpush1.msra.mxu0 0.0
    %2576 = vmatprep.subr.mxu0 0.0
    %2577 = vmatpush1.msra.mxu0 0.0
    %2578 = vmatprep.subr.mxu0 0.0
    %2579 = vmatpush1.msra.mxu0 0.0
    %2580 = vmatprep.subr.mxu0 0.0
    %2581 = vmatpush1.msra.mxu0 0.0
    %2582 = vmatprep.subr.mxu0 0.0
    %2583 = vmatpush1.msra.mxu0 0.0
    %2584 = vmatprep.subr.mxu0 0.0
    %2585 = vmatpush1.msra.mxu0 0.0
    %2586 = vmatprep.subr.mxu0 0.0
    %2587 = vmatpush1.msra.mxu0 0.0
    %2588 = vmatprep.subr.mxu0 0.0
    %2589 = vmatpush1.msra.mxu0 0.0
    %2590 = vmatprep.subr.mxu0 0.0
    %2591 = vmatpush1.msra.mxu0 0.0
    %2592 = vmatprep.subr.mxu0 0.0
    %2593 = vmatpush1.msra.mxu0 0.0
    %2594 = vmatprep.mubr.f32.mxu0 0.0
    %2595 = vmatmul.mubr.f32.gmra.mrb[0].mxu0 %v2512
    %v2596 = vpop.f32.mrb[0].mxu0
    %v2597 = vadd.f32 0.0, %v2596
    %v2598 = vpop.f32.mrb[0].mxu0
    %2599 = vmatprep.mubr.f32.mxu0 0.0
    %2600 = vmatmul.mubr.f32.gmra.mrb[0].mxu0 %v2515
    %v2601 = vpop.f32.mrb[0].mxu0
    %v2602 = vadd.f32 0.0, %v2601
    %v2603 = vpop.f32.mrb[0].mxu0
    %2604 = vmatprep.mubr.f32.mxu0 0.0
    %2605 = vmatmul.mubr.f32.gmra.mrb[0].mxu0 %v2518
    %v2606 = vpop.f32.mrb[0].mxu0
    %v2607 = vadd.f32 0.0, %v2606
    %v2608 = vpop.f32.mrb[0].mxu0
    %2609 = vmatprep.mubr.f32.mxu0 0.0
    %2610 = vmatmul.mubr.f32.gmra.mrb[0].mxu0 %v2521
    %v2611 = vpop.f32.mrb[0].mxu0
    %v2612 = vadd.f32 0.0, %v2611
    %v2613 = vpop.f32.mrb[0].mxu0
    %2614 = vmatprep.mubr.f32.mxu0 0.0
    %2615 = vmatmul.mubr.f32.gmra.mrb[0].mxu0 %v2524
    %v2616 = vpop.f32.mrb[0].mxu0
    %v2617 = vadd.f32 0.0, %v2616
    %v2618 = vpop.f32.mrb[0].mxu0
    %2619 = vdwg.mxu0
    %v2620 = vmul.f32 %v2597, %v2597
    %v2621 = vmul.f32 %v2602, %v2602
    %v2622 = vmul.f32 %v2597, %v2602
    %v2623 = vsub.f32 %v2617, %v2622
    %v2624 = vmul.f32 %v2623, 2.0
    %v2625 = vstv %s2395
    %v2626 = vadd.f32 %v2624, %v2625
    %v2627 = vsub.f32 %v2607, %v2620
    %v2628 = vsub.f32 %v2612, %v2621
    %v2629 = vadd.f32 %v2627, %v2628
    %v2630 = vadd.f32 %v2629, %v2625
    %v2631 = vmul.f32 %v2622, 2.0
    %v2632 = vstv %s2393
    %v2633 = vadd.f32 %v2631, %v2632
    %v2634 = vmul.f32 %v2633, %v2626
    %v2635 = vadd.f32 %v2620, %v2621
    %v2636 = vadd.f32 %v2635, %v2632
    %v2637 = vmul.f32 %v2636, %v2630
    %v2638 = vrcp.pop %v2637
    %v2639 = vmul.f32 %v2634, %v2638
    %v2640 = vsel %vm1729, %v2639, 0.0
    %2641 = vadd.xlane.f32.xlu0 %v2640
    %v2642 = vpop.xlane.xlu0 %2641
    %v2643 = vrot.slane %v2642, 4
    %v2644 = vadd.f32 %v2642, %v2643
    %v2645 = vrot.slane %v2644, 2
    %v2646 = vadd.f32 %v2644, %v2645
    %v2647 = vrot.slane %v2646, 1
    %v2648 = vadd.f32 %v2646, %v2647
    %s2649 = vtos %v2648
    %s2650 = smul.f32 %s2649, 0.16666667
    %s2651 = sadd.f32 %s2650, 1.0
    %s2652 = smul.f32 %s2651, 0.5
    %v2653 = vstv %s2652
    %v2654 = vlog2.pop %v2653
    %v2655 = vmul.f32 %v2654, 0.6931472
    %v2656 = vmul.f32 %v2655, 0.5332
    %v2657 = vadd.f32 %v2198, %v2656
    %v2658 = vmul.f32 %v2657, 1.442695
    %v2659 = vpow.pop %v2658
    %v2660 = vsub.f32 1.0, %v2659
    %vm2661 = vcmask 0
    %2662 = vst.msk [vmem:[#allocation7] sm:$0x1] %vm2661, %v2660
    // Predicated region
    $region90: #{reconstruction_loss.1} parent=1 // pred_check
      _
    $region91: #{reconstruction_loss.1} parent=1 // pred_check_branch
      %2664 = sbr.rel (0) target = $region93
    $region92: #{reconstruction_loss.1} parent=1 // pred_region
      %s2666 = ssub.s32 16, 16
      %2667 = vsyncadd [#allocation4], %s2666
      %s2669 = sshll.u32 [#allocation7], 4
      %s2670 = int_to_ptr.vmem [resolvable:$true] %s2669
      %2672 = dma.vmem_to_hbm [thread:$0]  %s2670, 16, %s20, [#allocation4]
    $region93: #{reconstruction_loss.1} parent=1 // pred_fallthru
      _
    // Predicated region
    $region94: #{reconstruction_loss.1} parent=1 // pred_check
      _
    $region95: #{reconstruction_loss.1} parent=1 // pred_check_branch
      %2674 = sbr.rel (0) target = $region97
    $region96: #{reconstruction_loss.1} parent=1 // pred_region
      %2675 = dma.done [#allocation4], 16
    $region97: #{reconstruction_loss.1} parent=1 // pred_fallthru
      _
    %2676 = vsyncpa [#allocation3], 1
    %2677 = vsyncpa [#allocation6], 1
    %2678 = vsyncpa [#allocation4], 1

</llo_original>
